<compile_context>
chip_gen: v6e
topology: v6e:2x2x1
jax: 0.10.0
libtpu: 0.0.40
codegen_flags: <defaults>
</compile_context>

<pallas_src>
import jax
import jax.numpy as jnp
import numpy as np
from jax.experimental import pallas as pl
from jax.experimental.pallas import tpu as pltpu

BN_EPS = 1e-5


# --------------------------- pass 1: conv + stats ---------------------------
def _conv_stats_kernel(x_ref, w_ref, b_ref, y_ref, psum_ref, psq_ref, acc_ref):
    """Grid = (row_tiles, col_tiles, 3 kd taps). One banded matmul per step,
    accumulated into a VMEM f32 scratch; bias + partial BN stats on the last
    kd tap. No slices / reshapes -> no in-kernel relayouts."""
    kd = pl.program_id(2)

    @pl.when(kd == 0)
    def _():
        acc_ref[...] = jnp.zeros_like(acc_ref)

    acc_ref[...] += jnp.dot(x_ref[...], w_ref[...],
                            preferred_element_type=jnp.float32)

    @pl.when(kd == pl.num_programs(2) - 1)
    def _():
        acc = acc_ref[...]                                   # conv w/o bias, f32
        # Bias-free partial stats (bias folded into the mean in JAX glue).
        psum_ref[...] = jnp.sum(acc, axis=0, keepdims=True)
        psq_ref[...] = jnp.sum(acc * acc, axis=0, keepdims=True)
        y_ref[...] = (acc + b_ref[...]).astype(y_ref.dtype)


# ------------------------- pass 2: normalize + ReLU -------------------------
def _bn_relu_kernel(y_ref, scale_ref, shift_ref, o_ref):
    y = y_ref[...].astype(jnp.float32)
    o_ref[...] = jnp.maximum(y * scale_ref[...] + shift_ref[...], 0.0
                             ).astype(o_ref.dtype)


# ------------------------------- weight banding ------------------------------
def _fold_weights(w, H, W):
    """(3,3,3,Cin,Cout) -> (3, (H+2)*(W+2)*Cin, H*W*Cout) per-kd banded weights.

    band[kd, (u*(W+2)+v)*Cin+ci, (h*W+w)*Cout+co] = w[kd, u-h, v-w, ci, co]
    when 0 <= u-h <= 2 and 0 <= v-w <= 2, else 0 — so one matmul against a
    (rows, (H+2)*(W+2)*Cin) slab applies the whole kh/kw receptive field.
    """
    # TODO(synk): for large H/W (>16) tile the band over spatial windows
    # (Wt=8-16) + an extra grid axis to cap the O((HW)^2) footprint and the
    # zero-FLOP fraction; at the H=W=8 shapes used here the full band is the
    # reviewer-suggested tile size.
    Cin, Cout = w.shape[3], w.shape[4]
    eye_h = jnp.eye(H, dtype=w.dtype)
    eye_w = jnp.eye(W, dtype=w.dtype)
    out = jnp.zeros((3, (H + 2) * (W + 2) * Cin, H * W * Cout), w.dtype)
    for kh in range(3):
        sh = jnp.pad(eye_h, ((kh, 2 - kh), (0, 0)))        # (H+2, H): 1 iff u==h+kh
        for kw in range(3):
            sw = jnp.pad(eye_w, ((kw, 2 - kw), (0, 0)))    # (W+2, W): 1 iff v==w+kw
            blk = jnp.einsum("uh,vw,dio->duvihwo", sh, sw, w[:, kh, kw])
            out = out + blk.reshape(out.shape)
    return out


# ---------------------------------- helpers ----------------------------------
def _pick_tile(total, candidates):
    for c in candidates:
        if total % c == 0:
            return c
    return total                      # full extent is always a legal block


def _vmem_limit(block_bytes, scratch_bytes=0):
    est = 2 * block_bytes + scratch_bytes        # double-buffered blocks + scratch
    return int(min(64 * 2**20, max(32 * 2**20, 2 * est)))


# ------------------------------ one conv stage -------------------------------
def conv_bn_relu(x, w, b, gamma, beta, out_dtype=jnp.float32):
    """x: [N,D,H,W,Cin]; w: [3,3,3,Cin,Cout]; b/gamma/beta: [Cout].
    conv(pad=1) -> BN (training-mode batch stats) -> ReLU, as [N,D,H,W,Cout]."""
    N, D, H, W, Cin = x.shape
    Cout = w.shape[-1]
    R = N * D                              # matmul rows: one per (n, d)
    Kc = (H + 2) * (W + 2) * Cin           # contraction depth (>= 128)
    Nc = H * W * Cout                      # output columns

    # Spatial zero-pad, fold (h, w, cin) into the minor dim, and pre-shift the
    # 3 kd taps onto the LEADING axis (selected by index_map -> no in-kernel
    # sublane-crossing slices).
    xp = jnp.pad(x, ((0, 0), (1, 1), (1, 1), (1, 1), (0, 0)))
    xp = xp.reshape(N, D + 2, Kc).astype(jnp.bfloat16)
    x3 = jnp.stack([xp[:, k:k + D] for k in range(3)], axis=0).reshape(3, R, Kc)

    wband = _fold_weights(w.astype(jnp.float32), H, W).astype(jnp.bfloat16)
    b_t = jnp.tile(b, H * W).reshape(1, Nc).astype(jnp.float32)

    # Row tile: as many (n, d) rows per dot as divisibility allows (<= 256),
    # 16-row granularity so bf16 blocks keep native sublane packing.
    TM = _pick_tile(R, (256, 128, 64, 32, 16))
    # Column tile: 256 output lanes per dot (v6e/v7x MXU width; 2x128 on v5e).
    TN = _pick_tile(Nc, (256, 128))
    n_row, n_col = R // TM, Nc // TN

    block_bytes = (TM * Kc * 2 + Kc * TN * 2 + TN * 4      # x3 / wband / bias
                   + TM * TN * 2 + 2 * TN * 4)             # y / psum / psq

    y, psum, psq = pl.pallas_call(
        _conv_stats_kernel,
        out_shape=(
            jax.ShapeDtypeStruct((R, Nc), jnp.bfloat16),
            jax.ShapeDtypeStruct((n_row, 1, Nc), jnp.float32),
            jax.ShapeDtypeStruct((n_row, 1, Nc), jnp.float32),
        ),
        grid_spec=pltpu.PrefetchScalarGridSpec(
            num_scalar_prefetch=0,
            grid=(n_row, n_col, 3),
            in_specs=[
                pl.BlockSpec((None, TM, Kc), lambda i, j, k: (k, i, 0)),
                pl.BlockSpec((None, Kc, TN), lambda i, j, k: (k, 0, j)),
                pl.BlockSpec((1, TN), lambda i, j, k: (0, j)),
            ],
            out_specs=(
                pl.BlockSpec((TM, TN), lambda i, j, k: (i, j)),
                pl.BlockSpec((None, 1, TN), lambda i, j, k: (i, 0, j)),
                pl.BlockSpec((None, 1, TN), lambda i, j, k: (i, 0, j)),
            ),
            scratch_shapes=[pltpu.VMEM((TM, TN), jnp.float32)],
        ),
        compiler_params=pltpu.CompilerParams(
            dimension_semantics=("parallel", "parallel", "arbitrary"),
            vmem_limit_bytes=_vmem_limit(block_bytes, TM * TN * 4),
        ),
    )(x3, wband, b_t)

    # JAX glue: reduce partials -> per-channel batch stats (biased variance,
    # as in PyTorch BN forward) folded into scale/shift. Stats were computed
    # bias-free, so E[y^2]-E[y]^2 is not distorted by a bias-shifted mean.
    Msz = N * D * H * W
    s = psum.sum(axis=(0, 1)).reshape(H * W, Cout).sum(axis=0)
    sq = psq.sum(axis=(0, 1)).reshape(H * W, Cout).sum(axis=0)
    mean_nb = s / Msz
    var = jnp.maximum(sq / Msz - mean_nb * mean_nb, 0.0)    # bias-invariant
    mean = mean_nb + b
    scale = gamma * jax.lax.rsqrt(var + BN_EPS)
    shift = beta - mean * scale
    scale_t = jnp.tile(scale, H * W).reshape(1, Nc).astype(jnp.float32)
    shift_t = jnp.tile(shift, H * W).reshape(1, Nc).astype(jnp.float32)

    # Pass 2: lane-dense FMA + ReLU; large divisor-picked row tiles (no 8-row
    # fallback) + 256-wide column tiles so both TCs get work.
    TR = _pick_tile(R, (1024, 512, 256, 128, 64, 32, 16))
    TNb = _pick_tile(Nc, (256, 128))
    out = pl.pallas_call(
        _bn_relu_kernel,
        out_shape=jax.ShapeDtypeStruct((R, Nc), out_dtype),
        grid_spec=pltpu.PrefetchScalarGridSpec(
            num_scalar_prefetch=0,
            grid=(R // TR, Nc // TNb),
            in_specs=[
                pl.BlockSpec((TR, TNb), lambda i, j: (i, j)),
                pl.BlockSpec((1, TNb), lambda i, j: (0, j)),
                pl.BlockSpec((1, TNb), lambda i, j: (0, j)),
            ],
            out_specs=pl.BlockSpec((TR, TNb), lambda i, j: (i, j)),
        ),
        compiler_params=pltpu.CompilerParams(
            dimension_semantics=("parallel", "parallel"),
            vmem_limit_bytes=_vmem_limit(TR * TNb * 2 + 2 * TNb * 4
                                         + TR * TNb * 4),
        ),
    )(y, scale_t, shift_t)

    return out.reshape(N, D, H, W, Cout)


def conv_block(x_ncdhw, params):
    """Equivalent of ConvBlock.forward (training-mode BN) on NCDHW input."""
    x = jnp.transpose(x_ncdhw, (0, 2, 3, 4, 1))  # NCDHW -> NDHWC
    # Stage 1 emits bf16 (halves inter-stage HBM traffic); stage 2's pad +
    # kd-stack consumes it directly.
    # TODO(synk): fully fuse the inter-stage pad/kd-stack into stage 1's
    # BN+ReLU kernel (emit the padded, kd-shifted bf16 slab directly) to drop
    # one more HBM round trip.
    x = conv_bn_relu(x, params["w1"], params["b1"], params["g1"], params["be1"],
                     out_dtype=jnp.bfloat16)
    x = conv_bn_relu(x, params["w2"], params["b2"], params["g2"], params["be2"],
                     out_dtype=jnp.float32)
    return jnp.transpose(x, (0, 4, 1, 2, 3))     # NDHWC -> NCDHW


# ---------------- pure-JAX reference (for correctness check) ----------------
def _ref_stage(x, w, b, gamma, beta):
    y = jax.lax.conv_general_dilated(
        x, w, window_strides=(1, 1, 1),
        padding=((1, 1), (1, 1), (1, 1)),
        dimension_numbers=("NDHWC", "DHWIO", "NDHWC"))
    y = y + b
    mean = jnp.mean(y, axis=(0, 1, 2, 3))
    var = jnp.var(y, axis=(0, 1, 2, 3))          # biased var (PyTorch BN forward)
    yhat = (y - mean) / jnp.sqrt(var + BN_EPS)
    return jnp.maximum(yhat * gamma + beta, 0.0)


def _ref_conv_block(x_ncdhw, p):
    x = jnp.transpose(x_ncdhw, (0, 2, 3, 4, 1))
    x = _ref_stage(x, p["w1"], p["b1"], p["g1"], p["be1"])
    x = _ref_stage(x, p["w2"], p["b2"], p["g2"], p["be2"])
    return jnp.transpose(x, (0, 4, 1, 2, 3))


if __name__ == "__main__":
    key = jax.random.PRNGKey(0)
    N, Cin, Cout, D, H, W = 2, 4, 8, 8, 8, 8

    k = jax.random.split(key, 5)
    x = jax.random.normal(k[0], (N, Cin, D, H, W), jnp.float32)

    # Deterministic parameter init (synthetic; matches nn.Conv3d/BatchNorm3d shapes).
    params = {
        "w1": jax.random.normal(k[1], (3, 3, 3, Cin, Cout), jnp.float32) * 0.1,
        "b1": jax.random.normal(k[2], (Cout,), jnp.float32) * 0.1,
        "w2": jax.random.normal(k[3], (3, 3, 3, Cout, Cout), jnp.float32) * 0.1,
        "b2": jax.random.normal(k[4], (Cout,), jnp.float32) * 0.1,
        "g1": jnp.ones((Cout,), jnp.float32),    # BN gamma default init
        "be1": jnp.zeros((Cout,), jnp.float32),  # BN beta default init
        "g2": jnp.ones((Cout,), jnp.float32),
        "be2": jnp.zeros((Cout,), jnp.float32),
    }

    conv_block_jit = jax.jit(conv_block)
    out = jax.block_until_ready(conv_block_jit(x, params))
    assert out.shape == (N, Cout, D, H, W)

    ref = jax.block_until_ready(_ref_conv_block(x, params))
    # Tolerance accounts for bf16 matmul operands and a bf16 intermediate
    # activation between the two stages; the reference path is full f32.
    np.testing.assert_allclose(np.asarray(out), np.asarray(ref), rtol=5e-2, atol=5e-2)

    print("KERNEL_OK")
</pallas_src>

<mosaic_0001>
module attributes {stable_mosaic.version = 11 : i64} {
  func.func @_conv_stats_kernel(%arg0: i32, %arg1: i32, %arg2: i32, %arg3: memref<1x16x400xbf16, #tpu.memory_space<vmem>>, %arg4: memref<1x400x256xbf16, #tpu.memory_space<vmem>>, %arg5: memref<1x256xf32, #tpu.memory_space<vmem>>, %arg6: memref<16x256xbf16, #tpu.memory_space<vmem>>, %arg7: memref<1x1x256xf32, #tpu.memory_space<vmem>>, %arg8: memref<1x1x256xf32, #tpu.memory_space<vmem>>, %arg9: memref<16x256xf32, #tpu.memory_space<vmem>>) attributes {dimension_semantics = [#tpu.dimension_semantics<parallel>, #tpu.dimension_semantics<parallel>, #tpu.dimension_semantics<arbitrary>], iteration_bounds = array<i64: 1, 2, 3>, scalar_prefetch = 0 : i64, scratch_operands = 1 : i64, tpu.core_type = #tpu.core_type<tc>, window_params = [{transform_indices = @transform_0, window_bounds = array<i64: 1, 16, 400>}, {transform_indices = @transform_1, window_bounds = array<i64: 1, 400, 256>}, {transform_indices = @transform_2, window_bounds = array<i64: 1, 256>}, {transform_indices = @transform_3, window_bounds = array<i64: 16, 256>}, {transform_indices = @transform_4, window_bounds = array<i64: 1, 1, 256>}, {transform_indices = @transform_5, window_bounds = array<i64: 1, 1, 256>}]} {
    %c0_i32 = arith.constant 0 : i32
    %0 = arith.cmpi eq, %arg2, %c0_i32 : i32
    %1 = arith.extui %0 : i1 to i32
    %c0_i32_0 = arith.constant 0 : i32
    %2 = arith.cmpi ne, %1, %c0_i32_0 : i32
    scf.if %2 {
      %cst_11 = arith.constant 0.000000e+00 : f32
      %14 = vector.broadcast %cst_11 : f32 to vector<16x256xf32>
      %c0_12 = arith.constant 0 : index
      %c0_13 = arith.constant 0 : index
      %15 = vector.load %arg9[%c0_12, %c0_13] : memref<16x256xf32, #tpu.memory_space<vmem>>, vector<16x256xf32>
      tpu.vector_store %arg9[%c0_12, %c0_13], %14 {strides = array<i32>} : memref<16x256xf32, #tpu.memory_space<vmem>>, vector<16x256xf32>,
    } else {
    }
    %c0 = arith.constant 0 : index
    %c0_1 = arith.constant 0 : index
    %3 = vector.load %arg9[%c0, %c0_1] : memref<16x256xf32, #tpu.memory_space<vmem>>, vector<16x256xf32>
    %c0_2 = arith.constant 0 : index
    %c0_3 = arith.constant 0 : index
    %c0_4 = arith.constant 0 : index
    %4 = vector.load %arg3[%c0_2, %c0_3, %c0_4] : memref<1x16x400xbf16, #tpu.memory_space<vmem>>, vector<1x16x400xbf16>
    %5 = vector.shape_cast %4 : vector<1x16x400xbf16> to vector<16x400xbf16>
    %c0_5 = arith.constant 0 : index
    %c0_6 = arith.constant 0 : index
    %c0_7 = arith.constant 0 : index
    %6 = vector.load %arg4[%c0_5, %c0_6, %c0_7] : memref<1x400x256xbf16, #tpu.memory_space<vmem>>, vector<1x400x256xbf16>
    %7 = vector.shape_cast %6 : vector<1x400x256xbf16> to vector<400x256xbf16>
    %cst = arith.constant dense<0.000000e+00> : vector<16x256xf32>
    %8 = tpu.matmul %5, %7, %cst {dimension_numbers = #tpu.dot_dimension_numbers<[1], [0], [0], [1], [0, 0, 1, 1], [], []>} : vector<16x400xbf16>, vector<400x256xbf16>, vector<16x256xf32> -> vector<16x256xf32>
    %9 = arith.addf %3, %8 : vector<16x256xf32>
    %c0_8 = arith.constant 0 : index
    %c0_9 = arith.constant 0 : index
    %10 = vector.load %arg9[%c0_8, %c0_9] : memref<16x256xf32, #tpu.memory_space<vmem>>, vector<16x256xf32>
    tpu.vector_store %arg9[%c0_8, %c0_9], %9 {strides = array<i32>} : memref<16x256xf32, #tpu.memory_space<vmem>>, vector<16x256xf32>,
    %c2_i32 = arith.constant 2 : i32
    %11 = arith.cmpi eq, %arg2, %c2_i32 : i32
    %12 = arith.extui %11 : i1 to i32
    %c0_i32_10 = arith.constant 0 : i32
    %13 = arith.cmpi ne, %12, %c0_i32_10 : i32
    scf.if %13 {
      %c0_11 = arith.constant 0 : index
      %c0_12 = arith.constant 0 : index
      %14 = vector.load %arg9[%c0_11, %c0_12] : memref<16x256xf32, #tpu.memory_space<vmem>>, vector<16x256xf32>
      %cst_13 = arith.constant dense<0.000000e+00> : vector<256xf32>
      %15 = vector.multi_reduction <add>, %14, %cst_13 [0] : vector<16x256xf32> to vector<256xf32>
      %16 = vector.shape_cast %15 : vector<256xf32> to vector<1x256xf32>
      %c0_14 = arith.constant 0 : index
      %c0_15 = arith.constant 0 : index
      %c0_16 = arith.constant 0 : index
      %17 = vector.load %arg7[%c0_14, %c0_15, %c0_16] : memref<1x1x256xf32, #tpu.memory_space<vmem>>, vector<1x1x256xf32>
      %18 = vector.shape_cast %17 : vector<1x1x256xf32> to vector<1x256xf32>
      %19 = vector.shape_cast %16 : vector<1x256xf32> to vector<1x1x256xf32>
      tpu.vector_store %arg7[%c0_14, %c0_15, %c0_16], %19 {strides = array<i32>} : memref<1x1x256xf32, #tpu.memory_space<vmem>>, vector<1x1x256xf32>,
      %20 = arith.mulf %14, %14 : vector<16x256xf32>
      %cst_17 = arith.constant dense<0.000000e+00> : vector<256xf32>
      %21 = vector.multi_reduction <add>, %20, %cst_17 [0] : vector<16x256xf32> to vector<256xf32>
      %22 = vector.shape_cast %21 : vector<256xf32> to vector<1x256xf32>
      %c0_18 = arith.constant 0 : index
      %c0_19 = arith.constant 0 : index
      %c0_20 = arith.constant 0 : index
      %23 = vector.load %arg8[%c0_18, %c0_19, %c0_20] : memref<1x1x256xf32, #tpu.memory_space<vmem>>, vector<1x1x256xf32>
      %24 = vector.shape_cast %23 : vector<1x1x256xf32> to vector<1x256xf32>
      %25 = vector.shape_cast %22 : vector<1x256xf32> to vector<1x1x256xf32>
      tpu.vector_store %arg8[%c0_18, %c0_19, %c0_20], %25 {strides = array<i32>} : memref<1x1x256xf32, #tpu.memory_space<vmem>>, vector<1x1x256xf32>,
      %c0_21 = arith.constant 0 : index
      %c0_22 = arith.constant 0 : index
      %26 = vector.load %arg5[%c0_21, %c0_22] : memref<1x256xf32, #tpu.memory_space<vmem>>, vector<1x256xf32>
      %27 = vector.broadcast %26 : vector<1x256xf32> to vector<16x256xf32>
      %28 = arith.addf %14, %27 : vector<16x256xf32>
      %29 = arith.truncf %28 : vector<16x256xf32> to vector<16x256xbf16>
      %c0_23 = arith.constant 0 : index
      %c0_24 = arith.constant 0 : index
      %30 = vector.load %arg6[%c0_23, %c0_24] : memref<16x256xbf16, #tpu.memory_space<vmem>>, vector<16x256xbf16>
      tpu.vector_store %arg6[%c0_23, %c0_24], %29 {strides = array<i32>} : memref<16x256xbf16, #tpu.memory_space<vmem>>, vector<16x256xbf16>,
    } else {
    }
    return
  }
  func.func @transform_0(%arg0: i32, %arg1: i32, %arg2: i32) -> (i32, i32, i32) {
    %c0_i32 = arith.constant 0 : i32
    %c0_i32_0 = arith.constant 0 : i32
    return %arg2, %arg0, %c0_i32 : i32, i32, i32
  }
  func.func @transform_1(%arg0: i32, %arg1: i32, %arg2: i32) -> (i32, i32, i32) {
    %c0_i32 = arith.constant 0 : i32
    %c0_i32_0 = arith.constant 0 : i32
    return %arg2, %c0_i32, %arg1 : i32, i32, i32
  }
  func.func @transform_2(%arg0: i32, %arg1: i32, %arg2: i32) -> (i32, i32) {
    %c0_i32 = arith.constant 0 : i32
    %c0_i32_0 = arith.constant 0 : i32
    return %c0_i32, %arg1 : i32, i32
  }
  func.func @transform_3(%arg0: i32, %arg1: i32, %arg2: i32) -> (i32, i32) {
    %c0_i32 = arith.constant 0 : i32
    return %arg0, %arg1 : i32, i32
  }
  func.func @transform_4(%arg0: i32, %arg1: i32, %arg2: i32) -> (i32, i32, i32) {
    %c0_i32 = arith.constant 0 : i32
    %c0_i32_0 = arith.constant 0 : i32
    return %arg0, %c0_i32, %arg1 : i32, i32, i32
  }
  func.func @transform_5(%arg0: i32, %arg1: i32, %arg2: i32) -> (i32, i32, i32) {
    %c0_i32 = arith.constant 0 : i32
    %c0_i32_0 = arith.constant 0 : i32
    return %arg0, %c0_i32, %arg1 : i32, i32, i32
  }
}

module attributes {stable_mosaic.version = 11 : i64} {
  func.func @_bn_relu_kernel(%arg0: i32, %arg1: i32, %arg2: memref<16x256xbf16, #tpu.memory_space<vmem>>, %arg3: memref<1x256xf32, #tpu.memory_space<vmem>>, %arg4: memref<1x256xf32, #tpu.memory_space<vmem>>, %arg5: memref<16x256xbf16, #tpu.memory_space<vmem>>) attributes {dimension_semantics = [#tpu.dimension_semantics<parallel>, #tpu.dimension_semantics<parallel>], iteration_bounds = array<i64: 1, 2>, scalar_prefetch = 0 : i64, scratch_operands = 0 : i64, tpu.core_type = #tpu.core_type<tc>, window_params = [{transform_indices = @transform_0, window_bounds = array<i64: 16, 256>}, {transform_indices = @transform_1, window_bounds = array<i64: 1, 256>}, {transform_indices = @transform_2, window_bounds = array<i64: 1, 256>}, {transform_indices = @transform_3, window_bounds = array<i64: 16, 256>}]} {
    %c0 = arith.constant 0 : index
    %c0_0 = arith.constant 0 : index
    %0 = vector.load %arg2[%c0, %c0_0] : memref<16x256xbf16, #tpu.memory_space<vmem>>, vector<16x256xbf16>
    %1 = arith.extf %0 : vector<16x256xbf16> to vector<16x256xf32>
    %c0_1 = arith.constant 0 : index
    %c0_2 = arith.constant 0 : index
    %2 = vector.load %arg3[%c0_1, %c0_2] : memref<1x256xf32, #tpu.memory_space<vmem>>, vector<1x256xf32>
    %3 = vector.broadcast %2 : vector<1x256xf32> to vector<16x256xf32>
    %4 = arith.mulf %1, %3 : vector<16x256xf32>
    %c0_3 = arith.constant 0 : index
    %c0_4 = arith.constant 0 : index
    %5 = vector.load %arg4[%c0_3, %c0_4] : memref<1x256xf32, #tpu.memory_space<vmem>>, vector<1x256xf32>
    %6 = vector.broadcast %5 : vector<1x256xf32> to vector<16x256xf32>
    %7 = arith.addf %4, %6 : vector<16x256xf32>
    %cst = arith.constant 0.000000e+00 : f32
    %8 = vector.broadcast %cst : f32 to vector<16x256xf32>
    %9 = arith.maximumf %7, %8 : vector<16x256xf32>
    %10 = arith.truncf %9 : vector<16x256xf32> to vector<16x256xbf16>
    %c0_5 = arith.constant 0 : index
    %c0_6 = arith.constant 0 : index
    %11 = vector.load %arg5[%c0_5, %c0_6] : memref<16x256xbf16, #tpu.memory_space<vmem>>, vector<16x256xbf16>
    tpu.vector_store %arg5[%c0_5, %c0_6], %10 {strides = array<i32>} : memref<16x256xbf16, #tpu.memory_space<vmem>>, vector<16x256xbf16>,
    return
  }
  func.func @transform_0(%arg0: i32, %arg1: i32) -> (i32, i32) {
    %c0_i32 = arith.constant 0 : i32
    return %arg0, %arg1 : i32, i32
  }
  func.func @transform_1(%arg0: i32, %arg1: i32) -> (i32, i32) {
    %c0_i32 = arith.constant 0 : i32
    %c0_i32_0 = arith.constant 0 : i32
    return %c0_i32, %arg1 : i32, i32
  }
  func.func @transform_2(%arg0: i32, %arg1: i32) -> (i32, i32) {
    %c0_i32 = arith.constant 0 : i32
    %c0_i32_0 = arith.constant 0 : i32
    return %c0_i32, %arg1 : i32, i32
  }
  func.func @transform_3(%arg0: i32, %arg1: i32) -> (i32, i32) {
    %c0_i32 = arith.constant 0 : i32
    return %arg0, %arg1 : i32, i32
  }
}

module attributes {stable_mosaic.version = 11 : i64} {
  func.func @_conv_stats_kernel(%arg0: i32, %arg1: i32, %arg2: i32, %arg3: memref<1x16x800xbf16, #tpu.memory_space<vmem>>, %arg4: memref<1x800x256xbf16, #tpu.memory_space<vmem>>, %arg5: memref<1x256xf32, #tpu.memory_space<vmem>>, %arg6: memref<16x256xbf16, #tpu.memory_space<vmem>>, %arg7: memref<1x1x256xf32, #tpu.memory_space<vmem>>, %arg8: memref<1x1x256xf32, #tpu.memory_space<vmem>>, %arg9: memref<16x256xf32, #tpu.memory_space<vmem>>) attributes {dimension_semantics = [#tpu.dimension_semantics<parallel>, #tpu.dimension_semantics<parallel>, #tpu.dimension_semantics<arbitrary>], iteration_bounds = array<i64: 1, 2, 3>, scalar_prefetch = 0 : i64, scratch_operands = 1 : i64, tpu.core_type = #tpu.core_type<tc>, window_params = [{transform_indices = @transform_0, window_bounds = array<i64: 1, 16, 800>}, {transform_indices = @transform_1, window_bounds = array<i64: 1, 800, 256>}, {transform_indices = @transform_2, window_bounds = array<i64: 1, 256>}, {transform_indices = @transform_3, window_bounds = array<i64: 16, 256>}, {transform_indices = @transform_4, window_bounds = array<i64: 1, 1, 256>}, {transform_indices = @transform_5, window_bounds = array<i64: 1, 1, 256>}]} {
    %c0_i32 = arith.constant 0 : i32
    %0 = arith.cmpi eq, %arg2, %c0_i32 : i32
    %1 = arith.extui %0 : i1 to i32
    %c0_i32_0 = arith.constant 0 : i32
    %2 = arith.cmpi ne, %1, %c0_i32_0 : i32
    scf.if %2 {
      %cst_11 = arith.constant 0.000000e+00 : f32
      %14 = vector.broadcast %cst_11 : f32 to vector<16x256xf32>
      %c0_12 = arith.constant 0 : index
      %c0_13 = arith.constant 0 : index
      %15 = vector.load %arg9[%c0_12, %c0_13] : memref<16x256xf32, #tpu.memory_space<vmem>>, vector<16x256xf32>
      tpu.vector_store %arg9[%c0_12, %c0_13], %14 {strides = array<i32>} : memref<16x256xf32, #tpu.memory_space<vmem>>, vector<16x256xf32>,
    } else {
    }
    %c0 = arith.constant 0 : index
    %c0_1 = arith.constant 0 : index
    %3 = vector.load %arg9[%c0, %c0_1] : memref<16x256xf32, #tpu.memory_space<vmem>>, vector<16x256xf32>
    %c0_2 = arith.constant 0 : index
    %c0_3 = arith.constant 0 : index
    %c0_4 = arith.constant 0 : index
    %4 = vector.load %arg3[%c0_2, %c0_3, %c0_4] : memref<1x16x800xbf16, #tpu.memory_space<vmem>>, vector<1x16x800xbf16>
    %5 = vector.shape_cast %4 : vector<1x16x800xbf16> to vector<16x800xbf16>
    %c0_5 = arith.constant 0 : index
    %c0_6 = arith.constant 0 : index
    %c0_7 = arith.constant 0 : index
    %6 = vector.load %arg4[%c0_5, %c0_6, %c0_7] : memref<1x800x256xbf16, #tpu.memory_space<vmem>>, vector<1x800x256xbf16>
    %7 = vector.shape_cast %6 : vector<1x800x256xbf16> to vector<800x256xbf16>
    %cst = arith.constant dense<0.000000e+00> : vector<16x256xf32>
    %8 = tpu.matmul %5, %7, %cst {dimension_numbers = #tpu.dot_dimension_numbers<[1], [0], [0], [1], [0, 0, 1, 1], [], []>} : vector<16x800xbf16>, vector<800x256xbf16>, vector<16x256xf32> -> vector<16x256xf32>
    %9 = arith.addf %3, %8 : vector<16x256xf32>
    %c0_8 = arith.constant 0 : index
    %c0_9 = arith.constant 0 : index
    %10 = vector.load %arg9[%c0_8, %c0_9] : memref<16x256xf32, #tpu.memory_space<vmem>>, vector<16x256xf32>
    tpu.vector_store %arg9[%c0_8, %c0_9], %9 {strides = array<i32>} : memref<16x256xf32, #tpu.memory_space<vmem>>, vector<16x256xf32>,
    %c2_i32 = arith.constant 2 : i32
    %11 = arith.cmpi eq, %arg2, %c2_i32 : i32
    %12 = arith.extui %11 : i1 to i32
    %c0_i32_10 = arith.constant 0 : i32
    %13 = arith.cmpi ne, %12, %c0_i32_10 : i32
    scf.if %13 {
      %c0_11 = arith.constant 0 : index
      %c0_12 = arith.constant 0 : index
      %14 = vector.load %arg9[%c0_11, %c0_12] : memref<16x256xf32, #tpu.memory_space<vmem>>, vector<16x256xf32>
      %cst_13 = arith.constant dense<0.000000e+00> : vector<256xf32>
      %15 = vector.multi_reduction <add>, %14, %cst_13 [0] : vector<16x256xf32> to vector<256xf32>
      %16 = vector.shape_cast %15 : vector<256xf32> to vector<1x256xf32>
      %c0_14 = arith.constant 0 : index
      %c0_15 = arith.constant 0 : index
      %c0_16 = arith.constant 0 : index
      %17 = vector.load %arg7[%c0_14, %c0_15, %c0_16] : memref<1x1x256xf32, #tpu.memory_space<vmem>>, vector<1x1x256xf32>
      %18 = vector.shape_cast %17 : vector<1x1x256xf32> to vector<1x256xf32>
      %19 = vector.shape_cast %16 : vector<1x256xf32> to vector<1x1x256xf32>
      tpu.vector_store %arg7[%c0_14, %c0_15, %c0_16], %19 {strides = array<i32>} : memref<1x1x256xf32, #tpu.memory_space<vmem>>, vector<1x1x256xf32>,
      %20 = arith.mulf %14, %14 : vector<16x256xf32>
      %cst_17 = arith.constant dense<0.000000e+00> : vector<256xf32>
      %21 = vector.multi_reduction <add>, %20, %cst_17 [0] : vector<16x256xf32> to vector<256xf32>
      %22 = vector.shape_cast %21 : vector<256xf32> to vector<1x256xf32>
      %c0_18 = arith.constant 0 : index
      %c0_19 = arith.constant 0 : index
      %c0_20 = arith.constant 0 : index
      %23 = vector.load %arg8[%c0_18, %c0_19, %c0_20] : memref<1x1x256xf32, #tpu.memory_space<vmem>>, vector<1x1x256xf32>
      %24 = vector.shape_cast %23 : vector<1x1x256xf32> to vector<1x256xf32>
      %25 = vector.shape_cast %22 : vector<1x256xf32> to vector<1x1x256xf32>
      tpu.vector_store %arg8[%c0_18, %c0_19, %c0_20], %25 {strides = array<i32>} : memref<1x1x256xf32, #tpu.memory_space<vmem>>, vector<1x1x256xf32>,
      %c0_21 = arith.constant 0 : index
      %c0_22 = arith.constant 0 : index
      %26 = vector.load %arg5[%c0_21, %c0_22] : memref<1x256xf32, #tpu.memory_space<vmem>>, vector<1x256xf32>
      %27 = vector.broadcast %26 : vector<1x256xf32> to vector<16x256xf32>
      %28 = arith.addf %14, %27 : vector<16x256xf32>
      %29 = arith.truncf %28 : vector<16x256xf32> to vector<16x256xbf16>
      %c0_23 = arith.constant 0 : index
      %c0_24 = arith.constant 0 : index
      %30 = vector.load %arg6[%c0_23, %c0_24] : memref<16x256xbf16, #tpu.memory_space<vmem>>, vector<16x256xbf16>
      tpu.vector_store %arg6[%c0_23, %c0_24], %29 {strides = array<i32>} : memref<16x256xbf16, #tpu.memory_space<vmem>>, vector<16x256xbf16>,
    } else {
    }
    return
  }
  func.func @transform_0(%arg0: i32, %arg1: i32, %arg2: i32) -> (i32, i32, i32) {
    %c0_i32 = arith.constant 0 : i32
    %c0_i32_0 = arith.constant 0 : i32
    return %arg2, %arg0, %c0_i32 : i32, i32, i32
  }
  func.func @transform_1(%arg0: i32, %arg1: i32, %arg2: i32) -> (i32, i32, i32) {
    %c0_i32 = arith.constant 0 : i32
    %c0_i32_0 = arith.constant 0 : i32
    return %arg2, %c0_i32, %arg1 : i32, i32, i32
  }
  func.func @transform_2(%arg0: i32, %arg1: i32, %arg2: i32) -> (i32, i32) {
    %c0_i32 = arith.constant 0 : i32
    %c0_i32_0 = arith.constant 0 : i32
    return %c0_i32, %arg1 : i32, i32
  }
  func.func @transform_3(%arg0: i32, %arg1: i32, %arg2: i32) -> (i32, i32) {
    %c0_i32 = arith.constant 0 : i32
    return %arg0, %arg1 : i32, i32
  }
  func.func @transform_4(%arg0: i32, %arg1: i32, %arg2: i32) -> (i32, i32, i32) {
    %c0_i32 = arith.constant 0 : i32
    %c0_i32_0 = arith.constant 0 : i32
    return %arg0, %c0_i32, %arg1 : i32, i32, i32
  }
  func.func @transform_5(%arg0: i32, %arg1: i32, %arg2: i32) -> (i32, i32, i32) {
    %c0_i32 = arith.constant 0 : i32
    %c0_i32_0 = arith.constant 0 : i32
    return %arg0, %c0_i32, %arg1 : i32, i32, i32
  }
}

module attributes {stable_mosaic.version = 11 : i64} {
  func.func @_bn_relu_kernel(%arg0: i32, %arg1: i32, %arg2: memref<16x256xbf16, #tpu.memory_space<vmem>>, %arg3: memref<1x256xf32, #tpu.memory_space<vmem>>, %arg4: memref<1x256xf32, #tpu.memory_space<vmem>>, %arg5: memref<16x256xf32, #tpu.memory_space<vmem>>) attributes {dimension_semantics = [#tpu.dimension_semantics<parallel>, #tpu.dimension_semantics<parallel>], iteration_bounds = array<i64: 1, 2>, scalar_prefetch = 0 : i64, scratch_operands = 0 : i64, tpu.core_type = #tpu.core_type<tc>, window_params = [{transform_indices = @transform_0, window_bounds = array<i64: 16, 256>}, {transform_indices = @transform_1, window_bounds = array<i64: 1, 256>}, {transform_indices = @transform_2, window_bounds = array<i64: 1, 256>}, {transform_indices = @transform_3, window_bounds = array<i64: 16, 256>}]} {
    %c0 = arith.constant 0 : index
    %c0_0 = arith.constant 0 : index
    %0 = vector.load %arg2[%c0, %c0_0] : memref<16x256xbf16, #tpu.memory_space<vmem>>, vector<16x256xbf16>
    %1 = arith.extf %0 : vector<16x256xbf16> to vector<16x256xf32>
    %c0_1 = arith.constant 0 : index
    %c0_2 = arith.constant 0 : index
    %2 = vector.load %arg3[%c0_1, %c0_2] : memref<1x256xf32, #tpu.memory_space<vmem>>, vector<1x256xf32>
    %3 = vector.broadcast %2 : vector<1x256xf32> to vector<16x256xf32>
    %4 = arith.mulf %1, %3 : vector<16x256xf32>
    %c0_3 = arith.constant 0 : index
    %c0_4 = arith.constant 0 : index
    %5 = vector.load %arg4[%c0_3, %c0_4] : memref<1x256xf32, #tpu.memory_space<vmem>>, vector<1x256xf32>
    %6 = vector.broadcast %5 : vector<1x256xf32> to vector<16x256xf32>
    %7 = arith.addf %4, %6 : vector<16x256xf32>
    %cst = arith.constant 0.000000e+00 : f32
    %8 = vector.broadcast %cst : f32 to vector<16x256xf32>
    %9 = arith.maximumf %7, %8 : vector<16x256xf32>
    %c0_5 = arith.constant 0 : index
    %c0_6 = arith.constant 0 : index
    %10 = vector.load %arg5[%c0_5, %c0_6] : memref<16x256xf32, #tpu.memory_space<vmem>>, vector<16x256xf32>
    tpu.vector_store %arg5[%c0_5, %c0_6], %9 {strides = array<i32>} : memref<16x256xf32, #tpu.memory_space<vmem>>, vector<16x256xf32>,
    return
  }
  func.func @transform_0(%arg0: i32, %arg1: i32) -> (i32, i32) {
    %c0_i32 = arith.constant 0 : i32
    return %arg0, %arg1 : i32, i32
  }
  func.func @transform_1(%arg0: i32, %arg1: i32) -> (i32, i32) {
    %c0_i32 = arith.constant 0 : i32
    %c0_i32_0 = arith.constant 0 : i32
    return %c0_i32, %arg1 : i32, i32
  }
  func.func @transform_2(%arg0: i32, %arg1: i32) -> (i32, i32) {
    %c0_i32 = arith.constant 0 : i32
    %c0_i32_0 = arith.constant 0 : i32
    return %c0_i32, %arg1 : i32, i32
  }
  func.func @transform_3(%arg0: i32, %arg1: i32) -> (i32, i32) {
    %c0_i32 = arith.constant 0 : i32
    return %arg0, %arg1 : i32, i32
  }
}

</mosaic_0001>

<llo_original>
// kernel: tile.33
$region0: #{tile.33}
  #allocation0 [shape = 's32[1]{0}', space=sflag, size = 0x4, scoped, tag = 'scoped memory for tile.33']
  %s0 = inlined_call_operand.vmem [shape: f32[8], index: 0, kind: input, shape index: {}]
  %s1 = inlined_call_operand.vmem [shape: f32[64,8], index: 1, kind: output, shape index: {}]
  // Predicated region
  $region2: #{tile.33} parent=0 // pred_check
    _
  $region3: #{tile.33} parent=0 // pred_check_branch
    %3 = sbr.rel (0) target = $region5
  $region4: #{tile.33} parent=0 // pred_region
    _
  $region5: #{tile.33} parent=0 // pred_fallthru
    _
  %v4 = vld [vmem:[%s0] ss:$0 sm:$0xff]
  %5 = vst [vmem:[%s1] sm:$0xff] %v4
  %s6 = scalar_lea.vmem %s1, 8
  %7 = vst [vmem:[%s6] sm:$0xff] %v4
  %s8 = scalar_lea.vmem %s1, 16
  %9 = vst [vmem:[%s8] sm:$0xff] %v4
  %s10 = scalar_lea.vmem %s1, 24
  %11 = vst [vmem:[%s10] sm:$0xff] %v4
  %s12 = scalar_lea.vmem %s1, 32
  %13 = vst [vmem:[%s12] sm:$0xff] %v4
  %s14 = scalar_lea.vmem %s1, 40
  %15 = vst [vmem:[%s14] sm:$0xff] %v4
  %s16 = scalar_lea.vmem %s1, 48
  %17 = vst [vmem:[%s16] sm:$0xff] %v4
  %s18 = scalar_lea.vmem %s1, 56
  %19 = vst [vmem:[%s18] sm:$0xff] %v4

// kernel: tile.34
$region0: #{tile.34}
  %s0 = inlined_call_operand.vmem [shape: f32[64,8], index: 0, kind: input, shape index: {}]
  %s1 = inlined_call_operand.vmem [shape: f32[1,512], index: 1, kind: output, shape index: {}]
  $region1: #{tile.34} parent=0
    #allocation0 [shape = 'u8[16384]{0}', space=vmem, size = 0x4000, scoped, tag = 'scoped mem for output reshape']
    %s2 = smov 3
    %v3 = vld [vmem:[%s0] ss:$16 sm:%s2]
    %s4 = smov 12
    %v5 = vld [vmem:[%s0] ss:$16 sm:%s4]
    %vm6 = vcmask 1043458
    %v7 = vsel %vm6, %v5, %v3
    %vm8 = vcmask 64512
    %9 = vst.msk [vmem:[#allocation0] ss:$8 sm:$0xf] %vm8, %v7
    %s10 = scalar_lea.vmem %s0, 15
    %s11 = smov 3
    %v12 = vld [vmem:[%s10] ss:$16 sm:%s11]
    %s13 = scalar_lea.vmem %s0, 15
    %s14 = smov 12
    %v15 = vld [vmem:[%s13] ss:$16 sm:%s14]
    %vm16 = vcmask 1043458
    %v17 = vsel %vm16, %v15, %v12
    %18 = vrot.lane.b32.xlu0 %v17, 120
    %v19 = vpop.permute.xlu0 %18
    %vm20 = vcmask 1048512
    %21 = vst.msk [vmem:[#allocation0] ss:$8 sm:$0xf] %vm20, %v19
    %s22 = scalar_lea.vmem %s0, 14
    %s23 = smov 3
    %v24 = vld [vmem:[%s22] ss:$16 sm:%s23]
    %s25 = scalar_lea.vmem %s0, 14
    %s26 = smov 12
    %v27 = vld [vmem:[%s25] ss:$16 sm:%s26]
    %vm28 = vcmask 1043458
    %v29 = vsel %vm28, %v27, %v24
    %30 = vrot.lane.b32.xlu0 %v29, 112
    %v31 = vpop.permute.xlu0 %30
    %vm32 = vcmask 982912
    %33 = vst.msk [vmem:[#allocation0] ss:$8 sm:$0xf] %vm32, %v31
    %s34 = scalar_lea.vmem %s0, 13
    %s35 = smov 3
    %v36 = vld [vmem:[%s34] ss:$16 sm:%s35]
    %s37 = scalar_lea.vmem %s0, 13
    %s38 = smov 12
    %v39 = vld [vmem:[%s37] ss:$16 sm:%s38]
    %vm40 = vcmask 1043458
    %v41 = vsel %vm40, %v39, %v36
    %42 = vrot.lane.b32.xlu0 %v41, 104
    %v43 = vpop.permute.xlu0 %42
    %vm44 = vcmask 917312
    %45 = vst.msk [vmem:[#allocation0] ss:$8 sm:$0xf] %vm44, %v43
    %s46 = scalar_lea.vmem %s0, 12
    %s47 = smov 3
    %v48 = vld [vmem:[%s46] ss:$16 sm:%s47]
    %s49 = scalar_lea.vmem %s0, 12
    %s50 = smov 12
    %v51 = vld [vmem:[%s49] ss:$16 sm:%s50]
    %vm52 = vcmask 1043458
    %v53 = vsel %vm52, %v51, %v48
    %54 = vrot.lane.b32.xlu0 %v53, 96
    %v55 = vpop.permute.xlu0 %54
    %vm56 = vcmask 851712
    %57 = vst.msk [vmem:[#allocation0] ss:$8 sm:$0xf] %vm56, %v55
    %s58 = scalar_lea.vmem %s0, 11
    %s59 = smov 3
    %v60 = vld [vmem:[%s58] ss:$16 sm:%s59]
    %s61 = scalar_lea.vmem %s0, 11
    %s62 = smov 12
    %v63 = vld [vmem:[%s61] ss:$16 sm:%s62]
    %vm64 = vcmask 1043458
    %v65 = vsel %vm64, %v63, %v60
    %66 = vrot.lane.b32.xlu0 %v65, 88
    %v67 = vpop.permute.xlu0 %66
    %vm68 = vcmask 786112
    %69 = vst.msk [vmem:[#allocation0] ss:$8 sm:$0xf] %vm68, %v67
    %s70 = scalar_lea.vmem %s0, 10
    %s71 = smov 3
    %v72 = vld [vmem:[%s70] ss:$16 sm:%s71]
    %s73 = scalar_lea.vmem %s0, 10
    %s74 = smov 12
    %v75 = vld [vmem:[%s73] ss:$16 sm:%s74]
    %vm76 = vcmask 1043458
    %v77 = vsel %vm76, %v75, %v72
    %78 = vrot.lane.b32.xlu0 %v77, 80
    %v79 = vpop.permute.xlu0 %78
    %vm80 = vcmask 720512
    %81 = vst.msk [vmem:[#allocation0] ss:$8 sm:$0xf] %vm80, %v79
    %s82 = scalar_lea.vmem %s0, 9
    %s83 = smov 3
    %v84 = vld [vmem:[%s82] ss:$16 sm:%s83]
    %s85 = scalar_lea.vmem %s0, 9
    %s86 = smov 12
    %v87 = vld [vmem:[%s85] ss:$16 sm:%s86]
    %vm88 = vcmask 1043458
    %v89 = vsel %vm88, %v87, %v84
    %90 = vrot.lane.b32.xlu0 %v89, 72
    %v91 = vpop.permute.xlu0 %90
    %vm92 = vcmask 654912
    %93 = vst.msk [vmem:[#allocation0] ss:$8 sm:$0xf] %vm92, %v91
    %s94 = scalar_lea.vmem %s0, 8
    %s95 = smov 3
    %v96 = vld [vmem:[%s94] ss:$16 sm:%s95]
    %s97 = scalar_lea.vmem %s0, 8
    %s98 = smov 12
    %v99 = vld [vmem:[%s97] ss:$16 sm:%s98]
    %vm100 = vcmask 1043458
    %v101 = vsel %vm100, %v99, %v96
    %102 = vrot.lane.b32.xlu0 %v101, 64
    %v103 = vpop.permute.xlu0 %102
    %vm104 = vcmask 589312
    %105 = vst.msk [vmem:[#allocation0] ss:$8 sm:$0xf] %vm104, %v103
    %s106 = scalar_lea.vmem %s0, 7
    %s107 = smov 3
    %v108 = vld [vmem:[%s106] ss:$16 sm:%s107]
    %s109 = scalar_lea.vmem %s0, 7
    %s110 = smov 12
    %v111 = vld [vmem:[%s109] ss:$16 sm:%s110]
    %vm112 = vcmask 1043458
    %v113 = vsel %vm112, %v111, %v108
    %114 = vrot.lane.b32.xlu0 %v113, 56
    %v115 = vpop.permute.xlu0 %114
    %vm116 = vcmask 523712
    %117 = vst.msk [vmem:[#allocation0] ss:$8 sm:$0xf] %vm116, %v115
    %s118 = scalar_lea.vmem %s0, 6
    %s119 = smov 3
    %v120 = vld [vmem:[%s118] ss:$16 sm:%s119]
    %s121 = scalar_lea.vmem %s0, 6
    %s122 = smov 12
    %v123 = vld [vmem:[%s121] ss:$16 sm:%s122]
    %vm124 = vcmask 1043458
    %v125 = vsel %vm124, %v123, %v120
    %126 = vrot.lane.b32.xlu0 %v125, 48
    %v127 = vpop.permute.xlu0 %126
    %vm128 = vcmask 458112
    %129 = vst.msk [vmem:[#allocation0] ss:$8 sm:$0xf] %vm128, %v127
    %s130 = scalar_lea.vmem %s0, 5
    %s131 = smov 3
    %v132 = vld [vmem:[%s130] ss:$16 sm:%s131]
    %s133 = scalar_lea.vmem %s0, 5
    %s134 = smov 12
    %v135 = vld [vmem:[%s133] ss:$16 sm:%s134]
    %vm136 = vcmask 1043458
    %v137 = vsel %vm136, %v135, %v132
    %138 = vrot.lane.b32.xlu0 %v137, 40
    %v139 = vpop.permute.xlu0 %138
    %vm140 = vcmask 392512
    %141 = vst.msk [vmem:[#allocation0] ss:$8 sm:$0xf] %vm140, %v139
    %s142 = scalar_lea.vmem %s0, 4
    %s143 = smov 3
    %v144 = vld [vmem:[%s142] ss:$16 sm:%s143]
    %s145 = scalar_lea.vmem %s0, 4
    %s146 = smov 12
    %v147 = vld [vmem:[%s145] ss:$16 sm:%s146]
    %vm148 = vcmask 1043458
    %v149 = vsel %vm148, %v147, %v144
    %150 = vrot.lane.b32.xlu0 %v149, 32
    %v151 = vpop.permute.xlu0 %150
    %vm152 = vcmask 326912
    %153 = vst.msk [vmem:[#allocation0] ss:$8 sm:$0xf] %vm152, %v151
    %s154 = scalar_lea.vmem %s0, 3
    %s155 = smov 3
    %v156 = vld [vmem:[%s154] ss:$16 sm:%s155]
    %s157 = scalar_lea.vmem %s0, 3
    %s158 = smov 12
    %v159 = vld [vmem:[%s157] ss:$16 sm:%s158]
    %vm160 = vcmask 1043458
    %v161 = vsel %vm160, %v159, %v156
    %162 = vrot.lane.b32.xlu0 %v161, 24
    %v163 = vpop.permute.xlu0 %162
    %vm164 = vcmask 261312
    %165 = vst.msk [vmem:[#allocation0] ss:$8 sm:$0xf] %vm164, %v163
    %s166 = scalar_lea.vmem %s0, 2
    %s167 = smov 3
    %v168 = vld [vmem:[%s166] ss:$16 sm:%s167]
    %s169 = scalar_lea.vmem %s0, 2
    %s170 = smov 12
    %v171 = vld [vmem:[%s169] ss:$16 sm:%s170]
    %vm172 = vcmask 1043458
    %v173 = vsel %vm172, %v171, %v168
    %174 = vrot.lane.b32.xlu0 %v173, 16
    %v175 = vpop.permute.xlu0 %174
    %vm176 = vcmask 195712
    %177 = vst.msk [vmem:[#allocation0] ss:$8 sm:$0xf] %vm176, %v175
    %s178 = scalar_lea.vmem %s0, 1
    %s179 = smov 3
    %v180 = vld [vmem:[%s178] ss:$16 sm:%s179]
    %s181 = scalar_lea.vmem %s0, 1
    %s182 = smov 12
    %v183 = vld [vmem:[%s181] ss:$16 sm:%s182]
    %vm184 = vcmask 1043458
    %v185 = vsel %vm184, %v183, %v180
    %186 = vrot.lane.b32.xlu0 %v185, 8
    %v187 = vpop.permute.xlu0 %186
    %vm188 = vcmask 130112
    %189 = vst.msk [vmem:[#allocation0] ss:$8 sm:$0xf] %vm188, %v187
    %s191 = sshll.u32 1, 1
    %s192 = ssub.s32 %s191, 1
    %v194 = vld [vmem:[#allocation0] sm:%s192]
    %s195 = sshll.u32 1, 1
    %s196 = ssub.s32 %s195, 1
    %197 = vst [vmem:[%s1] sm:%s196] %v194
    %s198 = scalar_lea.vmem [#allocation0], 8
    %v199 = vld [vmem:[%s198] sm:%s192]
    %s200 = sshll.u32 1, 1
    %s201 = ssub.s32 %s200, 1
    %s202 = scalar_lea.vmem %s1, 1
    %203 = vst [vmem:[%s202] sm:%s201] %v199
    %s204 = scalar_lea.vmem [#allocation0], 16
    %v205 = vld [vmem:[%s204] sm:%s192]
    %s206 = sshll.u32 1, 1
    %s207 = ssub.s32 %s206, 1
    %s208 = smul.addr 1, 2
    %s209 = scalar_lea.vmem %s1, %s208
    %210 = vst [vmem:[%s209] sm:%s207] %v205
    %s211 = scalar_lea.vmem [#allocation0], 24
    %v212 = vld [vmem:[%s211] sm:%s192]
    %s213 = sshll.u32 1, 1
    %s214 = ssub.s32 %s213, 1
    %s215 = smul.addr 1, 3
    %s216 = scalar_lea.vmem %s1, %s215
    %217 = vst [vmem:[%s216] sm:%s214] %v212

// kernel: conv_block.4
$region0: #{conv_block.4}
  #allocation0 [shape = 'u32[]', space=smem, size = 0x4, offset = 0x4, fixed_abs, tag = 'smem constant byte address 0x4 - core index']
  #allocation1 [shape = 'u32[144,128]{1,0:T(1,128)}', space=vmem, size = 0x12000, scoped, tag = 'internal scratch']
  #allocation2 [shape = 'f32[16,256]{1,0:T(8,128)}', space=vmem, size = 0x4000, scoped, tag = 'scratch operand']
  %s0 = inlined_call_operand.vmem [shape: bf16[3,16,400], index: 0, kind: input, shape index: {}]
  %s1 = inlined_call_operand.vmem [shape: bf16[3,400,512], index: 1, kind: input, shape index: {}]
  %s2 = inlined_call_operand.vmem [shape: f32[1,512], index: 2, kind: input, shape index: {}]
  %s3 = inlined_call_operand.vmem [shape: bf16[16,512], index: 3, kind: output, shape index: {0}]
  %s4 = inlined_call_operand.vmem [shape: f32[1,1,512], index: 4, kind: output, shape index: {1}]
  %s5 = inlined_call_operand.vmem [shape: f32[1,1,512], index: 5, kind: output, shape index: {2}]
  %6 = xla_tuple %s3, %s4, %s5
  %s7 = sld [smem:[#allocation0]]
  $region141: #{conv_block.4} parent=0
    _
  %s9 = ssub.s32 1, %s7
  %s10 = scalar_select 0, %s9, %s7
  $region1: #{conv_block.4} parent=0
    #allocation3 [shape = 'u8[409600]{0}', space=vmem, size = 0x64000, scoped, tag = 'input window, operand 1']
    #allocation4 [shape = 'u8[16384]{0}', space=vmem, size = 0x4000, scoped, tag = 'output window, operand 0']
    loop: start=0, step=1, limit=8
    $region2: #{conv_block.4} parent=1 // loop_pre_header
      _
    $region3: #{conv_block.4} parent=1 // loop_header
      %s12 = sphi 0, %s16
      %p13 = scmp.ge.s32.totalorder %s12, 8
      %s19 = sphi 0, %s38
      %s20 = sphi 0, %s34
      %s21 = sphi 0, %s30
      %s22 = sphi 0, %s19
      %s23 = sphi 0, %s20
      %s24 = sphi 0, %s21
      %s25 = sphi 0, %s22
      %s26 = sphi 0, %s23
      %s27 = sphi 0, %s24
      %s43 = sphi 0, %s45
      %s46 = sphi 0, %s43
      %s47 = sphi 0, %s46
      %s63 = sphi 0, %s47
      %s71 = sphi 0, %s73
      %s74 = sphi 0, %s71
      %s75 = sphi 0, %s74
      %s91 = sphi 0, %s75
      %s97 = sphi 0, %s99
      %s100 = sphi 0, %s97
      %s101 = sphi 0, %s100
      %s117 = sphi 0, %s101
      %s125 = sphi 0, %s127
      %s128 = sphi 0, %s125
      %s129 = sphi 0, %s128
      %s145 = sphi 0, %s129
      %s153 = sphi 0, %s155
      %s156 = sphi 0, %s153
      %s157 = sphi 0, %s156
      %s173 = sphi 0, %s157
      %s181 = sphi 0, %s183
      %s184 = sphi 0, %s181
      %s185 = sphi 0, %s184
      %s201 = sphi 0, %s185
    $region4: #{conv_block.4} parent=1 // loop_header_branch
      %15 = sbr.rel (%p13) target = $region8
    $region5: #{conv_block.4} parent=1 // loop_body
      %s17 = ssub.s32 %s12, 1
      %s18 = ssub.s32 %s12, 2
      %s28 = sadd.s32 1, %s21
      %p29 = scmp.ge.s32.totalorder %s28, 3
      %s30 = scalar_select %p29, 0, %s28
      %s31 = sadd.s32 1, %s20
      %s32 = scalar_select %p29, %s31, %s20
      %p33 = scmp.ge.s32.totalorder %s32, 2
      %s34 = scalar_select %p33, 0, %s32
      %s35 = sadd.s32 1, %s19
      %s36 = scalar_select %p33, %s35, %s19
      %p37 = scmp.ge.s32.totalorder %s36, 1
      %s38 = scalar_select %p37, 0, %s36
      %s39 = ssub.s32 %s21, %s30
      %s40 = ssub.s32 %s19, %s38
      %s41 = sor.u32 %s39, %s40
      %p42 = scmp.eq.s32.totalorder %s41, 0
      %s44 = sadd.s32 %s43, 1
      %s45 = scalar_select %p42, %s43, %s44
      %p48 = pneg %p42
      %p49 = scmp.eq.s32.totalorder %s12, 5
      %p50 = por %p48, %p49
      %p51 = scmp.ne.s32.totalorder %s43, %s46
      %p52 = scmp.eq.s32.totalorder %s12, 0
      %p53 = por %p51, %p52
      %p54 = scmp.ne.s32.totalorder %s43, %s46
      %p55 = scmp.eq.s32.totalorder %s17, 5
      %p56 = por %p54, %p55
      %p57 = scmp.ne.s32.totalorder %s46, %s47
      %p58 = scmp.eq.s32.totalorder %s17, 0
      %p59 = por %p57, %p58
      %p60 = scmp.ne.s32.totalorder %s46, %s47
      %p61 = scmp.eq.s32.totalorder %s18, 5
      %p62 = por %p60, %p61
      %p64 = scmp.ne.s32.totalorder %s47, %s63
      %p65 = scmp.eq.s32.totalorder %s18, 0
      %p66 = por %p64, %p65
      %s67 = ssub.s32 %s21, %s30
      %s68 = ssub.s32 %s20, %s34
      %s69 = sor.u32 %s67, %s68
      %p70 = scmp.eq.s32.totalorder %s69, 0
      %s72 = sadd.s32 %s71, 1
      %s73 = scalar_select %p70, %s71, %s72
      %p76 = pneg %p70
      %p77 = scmp.eq.s32.totalorder %s12, 5
      %p78 = por %p76, %p77
      %p79 = scmp.ne.s32.totalorder %s71, %s74
      %p80 = scmp.eq.s32.totalorder %s12, 0
      %p81 = por %p79, %p80
      %p82 = scmp.ne.s32.totalorder %s71, %s74
      %p83 = scmp.eq.s32.totalorder %s17, 5
      %p84 = por %p82, %p83
      %p85 = scmp.ne.s32.totalorder %s74, %s75
      %p86 = scmp.eq.s32.totalorder %s17, 0
      %p87 = por %p85, %p86
      %p88 = scmp.ne.s32.totalorder %s74, %s75
      %p89 = scmp.eq.s32.totalorder %s18, 5
      %p90 = por %p88, %p89
      %p92 = scmp.ne.s32.totalorder %s75, %s91
      %p93 = scmp.eq.s32.totalorder %s18, 0
      %p94 = por %p92, %p93
      %s95 = ssub.s32 %s20, %s34
      %p96 = scmp.eq.s32.totalorder %s95, 0
      %s98 = sadd.s32 %s97, 1
      %s99 = scalar_select %p96, %s97, %s98
      %p102 = pneg %p96
      %p103 = scmp.eq.s32.totalorder %s12, 5
      %p104 = por %p102, %p103
      %p105 = scmp.ne.s32.totalorder %s97, %s100
      %p106 = scmp.eq.s32.totalorder %s12, 0
      %p107 = por %p105, %p106
      %p108 = scmp.ne.s32.totalorder %s97, %s100
      %p109 = scmp.eq.s32.totalorder %s17, 5
      %p110 = por %p108, %p109
      %p111 = scmp.ne.s32.totalorder %s100, %s101
      %p112 = scmp.eq.s32.totalorder %s17, 0
      %p113 = por %p111, %p112
      %p114 = scmp.ne.s32.totalorder %s100, %s101
      %p115 = scmp.eq.s32.totalorder %s18, 5
      %p116 = por %p114, %p115
      %p118 = scmp.ne.s32.totalorder %s101, %s117
      %p119 = scmp.eq.s32.totalorder %s18, 0
      %p120 = por %p118, %p119
      %s121 = ssub.s32 %s19, %s38
      %s122 = ssub.s32 %s20, %s34
      %s123 = sor.u32 %s121, %s122
      %p124 = scmp.eq.s32.totalorder %s123, 0
      %s126 = sadd.s32 %s125, 1
      %s127 = scalar_select %p124, %s125, %s126
      %p130 = pneg %p124
      %p131 = scmp.eq.s32.totalorder %s12, 5
      %p132 = por %p130, %p131
      %p133 = scmp.ne.s32.totalorder %s125, %s128
      %p134 = scmp.eq.s32.totalorder %s12, 0
      %p135 = por %p133, %p134
      %p136 = scmp.ne.s32.totalorder %s125, %s128
      %p137 = scmp.eq.s32.totalorder %s17, 5
      %p138 = por %p136, %p137
      %p139 = scmp.ne.s32.totalorder %s128, %s129
      %p140 = scmp.eq.s32.totalorder %s17, 0
      %p141 = por %p139, %p140
      %p142 = scmp.ne.s32.totalorder %s128, %s129
      %p143 = scmp.eq.s32.totalorder %s18, 5
      %p144 = por %p142, %p143
      %p146 = scmp.ne.s32.totalorder %s129, %s145
      %p147 = scmp.eq.s32.totalorder %s18, 0
      %p148 = por %p146, %p147
      %s149 = ssub.s32 %s19, %s38
      %s150 = ssub.s32 %s20, %s34
      %s151 = sor.u32 %s149, %s150
      %p152 = scmp.eq.s32.totalorder %s151, 0
      %s154 = sadd.s32 %s153, 1
      %s155 = scalar_select %p152, %s153, %s154
      %p158 = pneg %p152
      %p159 = scmp.eq.s32.totalorder %s12, 5
      %p160 = por %p158, %p159
      %p161 = scmp.ne.s32.totalorder %s153, %s156
      %p162 = scmp.eq.s32.totalorder %s12, 0
      %p163 = por %p161, %p162
      %p164 = scmp.ne.s32.totalorder %s153, %s156
      %p165 = scmp.eq.s32.totalorder %s17, 5
      %p166 = por %p164, %p165
      %p167 = scmp.ne.s32.totalorder %s156, %s157
      %p168 = scmp.eq.s32.totalorder %s17, 0
      %p169 = por %p167, %p168
      %p170 = scmp.ne.s32.totalorder %s156, %s157
      %p171 = scmp.eq.s32.totalorder %s18, 5
      %p172 = por %p170, %p171
      %p174 = scmp.ne.s32.totalorder %s157, %s173
      %p175 = scmp.eq.s32.totalorder %s18, 0
      %p176 = por %p174, %p175
      %s177 = ssub.s32 %s19, %s38
      %s178 = ssub.s32 %s20, %s34
      %s179 = sor.u32 %s177, %s178
      %p180 = scmp.eq.s32.totalorder %s179, 0
      %s182 = sadd.s32 %s181, 1
      %s183 = scalar_select %p180, %s181, %s182
      %p186 = pneg %p180
      %p187 = scmp.eq.s32.totalorder %s12, 5
      %p188 = por %p186, %p187
      %p189 = scmp.ne.s32.totalorder %s181, %s184
      %p190 = scmp.eq.s32.totalorder %s12, 0
      %p191 = por %p189, %p190
      %p192 = scmp.ne.s32.totalorder %s181, %s184
      %p193 = scmp.eq.s32.totalorder %s17, 5
      %p194 = por %p192, %p193
      %p195 = scmp.ne.s32.totalorder %s184, %s185
      %p196 = scmp.eq.s32.totalorder %s17, 0
      %p197 = por %p195, %p196
      %p198 = scmp.ne.s32.totalorder %s184, %s185
      %p199 = scmp.eq.s32.totalorder %s18, 5
      %p200 = por %p198, %p199
      %p202 = scmp.ne.s32.totalorder %s185, %s201
      %p203 = scmp.eq.s32.totalorder %s18, 0
      %p204 = por %p202, %p203
      %p205 = scmp.le.s32.totalorder 1, %s12
      %p206 = scmp.lt.s32.totalorder %s12, 7
      %p207 = pnand %p205, %p206
      %p208 = pneg %p207
      // Predicated region
      $region9: #{conv_block.4} parent=5 // pred_check
        _
      $region10: #{conv_block.4} parent=5 // pred_check_branch
        %210 = sbr.rel (%p207) target = $region12
      $region11: #{conv_block.4} parent=5 // pred_region
        %s211 = ssub.s32 %s12, 1
      $region12: #{conv_block.4} parent=5 // pred_fallthru
        _
      %p212 = scmp.lt.s32.totalorder %s12, 6
      // Predicated region
      $region13: #{conv_block.4} parent=5 // pred_check
        %p213 = pneg %p212
      $region14: #{conv_block.4} parent=5 // pred_check_branch
        %215 = sbr.rel (%p213) target = $region16
      $region15: #{conv_block.4} parent=5 // pred_region
        // Predicated region
        $region17: #{conv_block.4} parent=15 // pred_check
          %p216 = pneg %p53
        $region18: #{conv_block.4} parent=15 // pred_check_branch
          %218 = sbr.rel (%p216) target = $region20
        $region19: #{conv_block.4} parent=15 // pred_region
          %s219 = smul.u32 2, %s19
          %p220 = scmp.lt.s32.totalorder %s21, 2
          %s221 = scalar_select %p220, %s21, 2
          %p222 = scmp.lt.s32.totalorder %s219, 1
          %s223 = scalar_select %p222, %s219, 1
          %s224 = smul.addr %s223, 4
          %s225 = smul.addr %s221, 8
          %s226 = sadd.s32 %s224, %s225
          %s227 = smul.addr %s226, 4
          %s228 = scalar_lea.vmem %s0, %s227
          %s229 = smul.u32 2, %s19
        $region20: #{conv_block.4} parent=15 // pred_fallthru
          _
        // Predicated region
        $region21: #{conv_block.4} parent=15 // pred_check
          %p230 = pneg %p81
        $region22: #{conv_block.4} parent=15 // pred_check_branch
          %232 = sbr.rel (%p230) target = $region24
        $region23: #{conv_block.4} parent=15 // pred_region
          %s233 = sand.u32 %s71, 1
          %s234 = sand.u32 %s71, 1
          %s235 = smul.addr %s234, 400
          %s236 = scalar_lea.vmem [#allocation3], %s235
          %s237 = smul.u32 2, %s20
          %s238 = smul.addr %s21, 200
          %s239 = sadd.s32 %s237, %s238
          %s240 = smul.addr %s239, 4
          %s241 = scalar_lea.vmem %s1, %s240
          // Predicated region
          $region25: #{conv_block.4} parent=23 // pred_check
            _
          $region26: #{conv_block.4} parent=23 // pred_check_branch
            %243 = sbr.rel (0) target = $region28
          $region27: #{conv_block.4} parent=23 // pred_region
            // Predicated region
            $region29: #{conv_block.4} parent=27 // pred_check
              _
            $region30: #{conv_block.4} parent=27 // pred_check_branch
              %245 = sbr.rel (0) target = $region32
            $region31: #{conv_block.4} parent=27 // pred_region
              // Predicated region
              $region44: #{conv_block.4} parent=31 // pred_check
                _
              $region45: #{conv_block.4} parent=31 // pred_check_branch
                %359 = sbr.rel (0) target = $region47
              $region46: #{conv_block.4} parent=31 // pred_region
                loop: start=0, step=1, limit=1
                $region48: #{conv_block.4} parent=46 // loop_pre_header
                  _
                $region49: #{conv_block.4} parent=46 // loop_header
                  %s361 = sphi 0, %s365
                  %p362 = scmp.ge.s32.totalorder %s361, 1
                  %s366 = sphi %s241, %s241
                  %s367 = sphi %s236, %s236
                $region50: #{conv_block.4} parent=46 // loop_header_branch
                  %364 = sbr.rel (%p362) target = $region54
                $region51: #{conv_block.4} parent=46 // loop_body
                  %v368 = vld [vmem:[%s366] sm:$0xff]
                  %369 = vst [vmem:[%s367] sm:$0xff] %v368
                  %v370 = vld [vmem:[%s366 + $0x10] sm:$0xff]
                  %371 = vst [vmem:[%s367 + $0x8] sm:$0xff] %v370
                  %v372 = vld [vmem:[%s366 + $0x20] sm:$0xff]
                  %373 = vst [vmem:[%s367 + $0x10] sm:$0xff] %v372
                  %v374 = vld [vmem:[%s366 + $0x30] sm:$0xff]
                  %375 = vst [vmem:[%s367 + $0x18] sm:$0xff] %v374
                  %v376 = vld [vmem:[%s366 + $0x40] sm:$0xff]
                  %377 = vst [vmem:[%s367 + $0x20] sm:$0xff] %v376
                  %v378 = vld [vmem:[%s366 + $0x50] sm:$0xff]
                  %379 = vst [vmem:[%s367 + $0x28] sm:$0xff] %v378
                  %v380 = vld [vmem:[%s366 + $0x60] sm:$0xff]
                  %381 = vst [vmem:[%s367 + $0x30] sm:$0xff] %v380
                  %v382 = vld [vmem:[%s366 + $0x70] sm:$0xff]
                  %383 = vst [vmem:[%s367 + $0x38] sm:$0xff] %v382
                  %v384 = vld [vmem:[%s366 + $0x80] sm:$0xff]
                  %385 = vst [vmem:[%s367 + $0x40] sm:$0xff] %v384
                  %v386 = vld [vmem:[%s366 + $0x90] sm:$0xff]
                  %387 = vst [vmem:[%s367 + $0x48] sm:$0xff] %v386
                  %v388 = vld [vmem:[%s366 + $0xa0] sm:$0xff]
                  %389 = vst [vmem:[%s367 + $0x50] sm:$0xff] %v388
                  %v390 = vld [vmem:[%s366 + $0xb0] sm:$0xff]
                  %391 = vst [vmem:[%s367 + $0x58] sm:$0xff] %v390
                  %v392 = vld [vmem:[%s366 + $0xc0] sm:$0xff]
                  %393 = vst [vmem:[%s367 + $0x60] sm:$0xff] %v392
                  %v394 = vld [vmem:[%s366 + $0xd0] sm:$0xff]
                  %395 = vst [vmem:[%s367 + $0x68] sm:$0xff] %v394
                  %v396 = vld [vmem:[%s366 + $0xe0] sm:$0xff]
                  %397 = vst [vmem:[%s367 + $0x70] sm:$0xff] %v396
                  %v398 = vld [vmem:[%s366 + $0xf0] sm:$0xff]
                  %399 = vst [vmem:[%s367 + $0x78] sm:$0xff] %v398
                  %v400 = vld [vmem:[%s366 + $0x100] sm:$0xff]
                  %401 = vst [vmem:[%s367 + $0x80] sm:$0xff] %v400
                  %v402 = vld [vmem:[%s366 + $0x110] sm:$0xff]
                  %403 = vst [vmem:[%s367 + $0x88] sm:$0xff] %v402
                  %v404 = vld [vmem:[%s366 + $0x120] sm:$0xff]
                  %405 = vst [vmem:[%s367 + $0x90] sm:$0xff] %v404
                  %v406 = vld [vmem:[%s366 + $0x130] sm:$0xff]
                  %407 = vst [vmem:[%s367 + $0x98] sm:$0xff] %v406
                  %v408 = vld [vmem:[%s366 + $0x140] sm:$0xff]
                  %409 = vst [vmem:[%s367 + $0xa0] sm:$0xff] %v408
                  %v410 = vld [vmem:[%s366 + $0x150] sm:$0xff]
                  %411 = vst [vmem:[%s367 + $0xa8] sm:$0xff] %v410
                  %v412 = vld [vmem:[%s366 + $0x160] sm:$0xff]
                  %413 = vst [vmem:[%s367 + $0xb0] sm:$0xff] %v412
                  %v414 = vld [vmem:[%s366 + $0x170] sm:$0xff]
                  %415 = vst [vmem:[%s367 + $0xb8] sm:$0xff] %v414
                  %v416 = vld [vmem:[%s366 + $0x180] sm:$0xff]
                  %417 = vst [vmem:[%s367 + $0xc0] sm:$0xff] %v416
                  %v418 = vld [vmem:[%s366 + $0x190] sm:$0xff]
                  %419 = vst [vmem:[%s367 + $0xc8] sm:$0xff] %v418
                  %v420 = vld [vmem:[%s366 + $0x1a0] sm:$0xff]
                  %421 = vst [vmem:[%s367 + $0xd0] sm:$0xff] %v420
                  %v422 = vld [vmem:[%s366 + $0x1b0] sm:$0xff]
                  %423 = vst [vmem:[%s367 + $0xd8] sm:$0xff] %v422
                  %v424 = vld [vmem:[%s366 + $0x1c0] sm:$0xff]
                  %425 = vst [vmem:[%s367 + $0xe0] sm:$0xff] %v424
                  %v426 = vld [vmem:[%s366 + $0x1d0] sm:$0xff]
                  %427 = vst [vmem:[%s367 + $0xe8] sm:$0xff] %v426
                  %v428 = vld [vmem:[%s366 + $0x1e0] sm:$0xff]
                  %429 = vst [vmem:[%s367 + $0xf0] sm:$0xff] %v428
                  %v430 = vld [vmem:[%s366 + $0x1f0] sm:$0xff]
                  %431 = vst [vmem:[%s367 + $0xf8] sm:$0xff] %v430
                  %v432 = vld [vmem:[%s366 + $0x200] sm:$0xff]
                  %433 = vst [vmem:[%s367 + $0x100] sm:$0xff] %v432
                  %v434 = vld [vmem:[%s366 + $0x210] sm:$0xff]
                  %435 = vst [vmem:[%s367 + $0x108] sm:$0xff] %v434
                  %v436 = vld [vmem:[%s366 + $0x220] sm:$0xff]
                  %437 = vst [vmem:[%s367 + $0x110] sm:$0xff] %v436
                  %v438 = vld [vmem:[%s366 + $0x230] sm:$0xff]
                  %439 = vst [vmem:[%s367 + $0x118] sm:$0xff] %v438
                  %v440 = vld [vmem:[%s366 + $0x240] sm:$0xff]
                  %441 = vst [vmem:[%s367 + $0x120] sm:$0xff] %v440
                  %v442 = vld [vmem:[%s366 + $0x250] sm:$0xff]
                  %443 = vst [vmem:[%s367 + $0x128] sm:$0xff] %v442
                  %v444 = vld [vmem:[%s366 + $0x260] sm:$0xff]
                  %445 = vst [vmem:[%s367 + $0x130] sm:$0xff] %v444
                  %v446 = vld [vmem:[%s366 + $0x270] sm:$0xff]
                  %447 = vst [vmem:[%s367 + $0x138] sm:$0xff] %v446
                  %v448 = vld [vmem:[%s366 + $0x280] sm:$0xff]
                  %449 = vst [vmem:[%s367 + $0x140] sm:$0xff] %v448
                  %v450 = vld [vmem:[%s366 + $0x290] sm:$0xff]
                  %451 = vst [vmem:[%s367 + $0x148] sm:$0xff] %v450
                  %v452 = vld [vmem:[%s366 + $0x2a0] sm:$0xff]
                  %453 = vst [vmem:[%s367 + $0x150] sm:$0xff] %v452
                  %v454 = vld [vmem:[%s366 + $0x2b0] sm:$0xff]
                  %455 = vst [vmem:[%s367 + $0x158] sm:$0xff] %v454
                  %v456 = vld [vmem:[%s366 + $0x2c0] sm:$0xff]
                  %457 = vst [vmem:[%s367 + $0x160] sm:$0xff] %v456
                  %v458 = vld [vmem:[%s366 + $0x2d0] sm:$0xff]
                  %459 = vst [vmem:[%s367 + $0x168] sm:$0xff] %v458
                  %v460 = vld [vmem:[%s366 + $0x2e0] sm:$0xff]
                  %461 = vst [vmem:[%s367 + $0x170] sm:$0xff] %v460
                  %v462 = vld [vmem:[%s366 + $0x2f0] sm:$0xff]
                  %463 = vst [vmem:[%s367 + $0x178] sm:$0xff] %v462
                  %v464 = vld [vmem:[%s366 + $0x300] sm:$0xff]
                  %465 = vst [vmem:[%s367 + $0x180] sm:$0xff] %v464
                  %v466 = vld [vmem:[%s366 + $0x310] sm:$0xff]
                  %467 = vst [vmem:[%s367 + $0x188] sm:$0xff] %v466
                $region52: #{conv_block.4} parent=46 // loop_footer
                  %s365 = sadd.s32 1, %s361
                $region53: #{conv_block.4} parent=46 // loop_footer_branch
                  %360 = sbr.rel target = $region49
                $region54: #{conv_block.4} parent=46 // loop_exit
                  _
              $region47: #{conv_block.4} parent=31 // pred_fallthru
                _
              // Predicated region
              $region55: #{conv_block.4} parent=31 // pred_check
                _
              $region56: #{conv_block.4} parent=31 // pred_check_branch
                %469 = sbr.rel target = $region58
              $region57: #{conv_block.4} parent=31 // pred_region
                _
              $region58: #{conv_block.4} parent=31 // pred_fallthru
                _
            $region32: #{conv_block.4} parent=27 // pred_fallthru
              _
            // Predicated region
            $region33: #{conv_block.4} parent=27 // pred_check
              _
            $region34: #{conv_block.4} parent=27 // pred_check_branch
              %247 = sbr.rel target = $region36
            $region35: #{conv_block.4} parent=27 // pred_region
              %s249 = ssub.s32 256, 1
              loop: start=0, step=1, limit=1
              $region37: #{conv_block.4} parent=35 // loop_pre_header
                _
              $region38: #{conv_block.4} parent=35 // loop_header
                %s251 = sphi 0, %s255
                %p252 = scmp.ge.s32.totalorder %s251, 1
                %s256 = sphi %s241, %s241
                %s257 = sphi %s236, %s236
              $region39: #{conv_block.4} parent=35 // loop_header_branch
                %254 = sbr.rel (%p252) target = $region43
              $region40: #{conv_block.4} parent=35 // loop_body
                %v258 = vld [vmem:[%s256] sm:%s249]
                %259 = vst [vmem:[%s257] sm:%s249] %v258
                %v260 = vld [vmem:[%s256 + $0x10] sm:%s249]
                %261 = vst [vmem:[%s257 + $0x8] sm:%s249] %v260
                %v262 = vld [vmem:[%s256 + $0x20] sm:%s249]
                %263 = vst [vmem:[%s257 + $0x10] sm:%s249] %v262
                %v264 = vld [vmem:[%s256 + $0x30] sm:%s249]
                %265 = vst [vmem:[%s257 + $0x18] sm:%s249] %v264
                %v266 = vld [vmem:[%s256 + $0x40] sm:%s249]
                %267 = vst [vmem:[%s257 + $0x20] sm:%s249] %v266
                %v268 = vld [vmem:[%s256 + $0x50] sm:%s249]
                %269 = vst [vmem:[%s257 + $0x28] sm:%s249] %v268
                %v270 = vld [vmem:[%s256 + $0x60] sm:%s249]
                %271 = vst [vmem:[%s257 + $0x30] sm:%s249] %v270
                %v272 = vld [vmem:[%s256 + $0x70] sm:%s249]
                %273 = vst [vmem:[%s257 + $0x38] sm:%s249] %v272
                %v274 = vld [vmem:[%s256 + $0x80] sm:%s249]
                %275 = vst [vmem:[%s257 + $0x40] sm:%s249] %v274
                %v276 = vld [vmem:[%s256 + $0x90] sm:%s249]
                %277 = vst [vmem:[%s257 + $0x48] sm:%s249] %v276
                %v278 = vld [vmem:[%s256 + $0xa0] sm:%s249]
                %279 = vst [vmem:[%s257 + $0x50] sm:%s249] %v278
                %v280 = vld [vmem:[%s256 + $0xb0] sm:%s249]
                %281 = vst [vmem:[%s257 + $0x58] sm:%s249] %v280
                %v282 = vld [vmem:[%s256 + $0xc0] sm:%s249]
                %283 = vst [vmem:[%s257 + $0x60] sm:%s249] %v282
                %v284 = vld [vmem:[%s256 + $0xd0] sm:%s249]
                %285 = vst [vmem:[%s257 + $0x68] sm:%s249] %v284
                %v286 = vld [vmem:[%s256 + $0xe0] sm:%s249]
                %287 = vst [vmem:[%s257 + $0x70] sm:%s249] %v286
                %v288 = vld [vmem:[%s256 + $0xf0] sm:%s249]
                %289 = vst [vmem:[%s257 + $0x78] sm:%s249] %v288
                %v290 = vld [vmem:[%s256 + $0x100] sm:%s249]
                %291 = vst [vmem:[%s257 + $0x80] sm:%s249] %v290
                %v292 = vld [vmem:[%s256 + $0x110] sm:%s249]
                %293 = vst [vmem:[%s257 + $0x88] sm:%s249] %v292
                %v294 = vld [vmem:[%s256 + $0x120] sm:%s249]
                %295 = vst [vmem:[%s257 + $0x90] sm:%s249] %v294
                %v296 = vld [vmem:[%s256 + $0x130] sm:%s249]
                %297 = vst [vmem:[%s257 + $0x98] sm:%s249] %v296
                %v298 = vld [vmem:[%s256 + $0x140] sm:%s249]
                %299 = vst [vmem:[%s257 + $0xa0] sm:%s249] %v298
                %v300 = vld [vmem:[%s256 + $0x150] sm:%s249]
                %301 = vst [vmem:[%s257 + $0xa8] sm:%s249] %v300
                %v302 = vld [vmem:[%s256 + $0x160] sm:%s249]
                %303 = vst [vmem:[%s257 + $0xb0] sm:%s249] %v302
                %v304 = vld [vmem:[%s256 + $0x170] sm:%s249]
                %305 = vst [vmem:[%s257 + $0xb8] sm:%s249] %v304
                %v306 = vld [vmem:[%s256 + $0x180] sm:%s249]
                %307 = vst [vmem:[%s257 + $0xc0] sm:%s249] %v306
                %v308 = vld [vmem:[%s256 + $0x190] sm:%s249]
                %309 = vst [vmem:[%s257 + $0xc8] sm:%s249] %v308
                %v310 = vld [vmem:[%s256 + $0x1a0] sm:%s249]
                %311 = vst [vmem:[%s257 + $0xd0] sm:%s249] %v310
                %v312 = vld [vmem:[%s256 + $0x1b0] sm:%s249]
                %313 = vst [vmem:[%s257 + $0xd8] sm:%s249] %v312
                %v314 = vld [vmem:[%s256 + $0x1c0] sm:%s249]
                %315 = vst [vmem:[%s257 + $0xe0] sm:%s249] %v314
                %v316 = vld [vmem:[%s256 + $0x1d0] sm:%s249]
                %317 = vst [vmem:[%s257 + $0xe8] sm:%s249] %v316
                %v318 = vld [vmem:[%s256 + $0x1e0] sm:%s249]
                %319 = vst [vmem:[%s257 + $0xf0] sm:%s249] %v318
                %v320 = vld [vmem:[%s256 + $0x1f0] sm:%s249]
                %321 = vst [vmem:[%s257 + $0xf8] sm:%s249] %v320
                %v322 = vld [vmem:[%s256 + $0x200] sm:%s249]
                %323 = vst [vmem:[%s257 + $0x100] sm:%s249] %v322
                %v324 = vld [vmem:[%s256 + $0x210] sm:%s249]
                %325 = vst [vmem:[%s257 + $0x108] sm:%s249] %v324
                %v326 = vld [vmem:[%s256 + $0x220] sm:%s249]
                %327 = vst [vmem:[%s257 + $0x110] sm:%s249] %v326
                %v328 = vld [vmem:[%s256 + $0x230] sm:%s249]
                %329 = vst [vmem:[%s257 + $0x118] sm:%s249] %v328
                %v330 = vld [vmem:[%s256 + $0x240] sm:%s249]
                %331 = vst [vmem:[%s257 + $0x120] sm:%s249] %v330
                %v332 = vld [vmem:[%s256 + $0x250] sm:%s249]
                %333 = vst [vmem:[%s257 + $0x128] sm:%s249] %v332
                %v334 = vld [vmem:[%s256 + $0x260] sm:%s249]
                %335 = vst [vmem:[%s257 + $0x130] sm:%s249] %v334
                %v336 = vld [vmem:[%s256 + $0x270] sm:%s249]
                %337 = vst [vmem:[%s257 + $0x138] sm:%s249] %v336
                %v338 = vld [vmem:[%s256 + $0x280] sm:%s249]
                %339 = vst [vmem:[%s257 + $0x140] sm:%s249] %v338
                %v340 = vld [vmem:[%s256 + $0x290] sm:%s249]
                %341 = vst [vmem:[%s257 + $0x148] sm:%s249] %v340
                %v342 = vld [vmem:[%s256 + $0x2a0] sm:%s249]
                %343 = vst [vmem:[%s257 + $0x150] sm:%s249] %v342
                %v344 = vld [vmem:[%s256 + $0x2b0] sm:%s249]
                %345 = vst [vmem:[%s257 + $0x158] sm:%s249] %v344
                %v346 = vld [vmem:[%s256 + $0x2c0] sm:%s249]
                %347 = vst [vmem:[%s257 + $0x160] sm:%s249] %v346
                %v348 = vld [vmem:[%s256 + $0x2d0] sm:%s249]
                %349 = vst [vmem:[%s257 + $0x168] sm:%s249] %v348
                %v350 = vld [vmem:[%s256 + $0x2e0] sm:%s249]
                %351 = vst [vmem:[%s257 + $0x170] sm:%s249] %v350
                %v352 = vld [vmem:[%s256 + $0x2f0] sm:%s249]
                %353 = vst [vmem:[%s257 + $0x178] sm:%s249] %v352
                %v354 = vld [vmem:[%s256 + $0x300] sm:%s249]
                %355 = vst [vmem:[%s257 + $0x180] sm:%s249] %v354
                %v356 = vld [vmem:[%s256 + $0x310] sm:%s249]
                %357 = vst [vmem:[%s257 + $0x188] sm:%s249] %v356
              $region41: #{conv_block.4} parent=35 // loop_footer
                %s255 = sadd.s32 1, %s251
              $region42: #{conv_block.4} parent=35 // loop_footer_branch
                %250 = sbr.rel target = $region38
              $region43: #{conv_block.4} parent=35 // loop_exit
                _
            $region36: #{conv_block.4} parent=27 // pred_fallthru
              _
          $region28: #{conv_block.4} parent=23 // pred_fallthru
            _
          %470 = vnop
        $region24: #{conv_block.4} parent=15 // pred_fallthru
          _
        // Predicated region
        $region59: #{conv_block.4} parent=15 // pred_check
          %p471 = pneg %p107
        $region60: #{conv_block.4} parent=15 // pred_check_branch
          %473 = sbr.rel (%p471) target = $region62
        $region61: #{conv_block.4} parent=15 // pred_region
          %s474 = smul.u32 2, %s20
          %p475 = scmp.lt.s32.totalorder %s474, 3
          %s476 = scalar_select %p475, %s474, 3
          %s477 = scalar_lea.vmem %s2, %s476
          %s478 = smul.u32 2, %s20
        $region62: #{conv_block.4} parent=15 // pred_fallthru
          _
      $region16: #{conv_block.4} parent=5 // pred_fallthru
        _
      %p479 = scmp.le.s32.totalorder 1, %s12
      %p480 = scmp.lt.s32.totalorder %s12, 7
      %p481 = pnand %p479, %p480
      %p482 = pneg %p481
      // Predicated region
      $region63: #{conv_block.4} parent=5 // pred_check
        _
      $region64: #{conv_block.4} parent=5 // pred_check_branch
        %484 = sbr.rel (%p481) target = $region66
      $region65: #{conv_block.4} parent=5 // pred_region
        %s485 = ssub.s32 %s12, 1
        %s486 = sand.u32 %s74, 1
        %s487 = sand.u32 %s74, 1
        %s488 = smul.addr %s487, 400
        %s489 = scalar_lea.vmem [#allocation3], %s488
        // Predicated region
        $region67: #{conv_block.4} parent=65 // pred_check
          %p490 = pneg %p87
        $region68: #{conv_block.4} parent=65 // pred_check_branch
          %492 = sbr.rel (%p490) target = $region70
        $region69: #{conv_block.4} parent=65 // pred_region
          _
        $region70: #{conv_block.4} parent=65 // pred_fallthru
          _
        %s493 = smul.u32 2, %s22
        %p494 = scmp.lt.s32.totalorder %s24, 2
        %s495 = scalar_select %p494, %s24, 2
        %p496 = scmp.lt.s32.totalorder %s493, 1
        %s497 = scalar_select %p496, %s493, 1
        %s498 = smul.addr %s497, 4
        %s499 = smul.addr %s495, 8
        %s500 = sadd.s32 %s498, %s499
        %s501 = smul.addr %s500, 4
        %s502 = scalar_lea.vmem %s0, %s501
        %p503 = pneg %p59
        %p504 = pneg %p56
        %s505 = sand.u32 %s74, 1
        %s506 = sand.u32 %s74, 1
        %s507 = smul.addr %s506, 400
        %s508 = scalar_lea.vmem [#allocation3], %s507
        %p509 = pneg %p87
        %p510 = pneg %p84
        %s511 = smul.u32 2, %s23
        %p512 = scmp.lt.s32.totalorder %s511, 3
        %s513 = scalar_select %p512, %s511, 3
        %s514 = scalar_lea.vmem %s2, %s513
        %p515 = pneg %p113
        %p516 = pneg %p110
        %p517 = pneg %p141
        %p518 = pneg %p138
        %s519 = sand.u32 %s128, 1
        %s520 = sand.u32 %s128, 1
        %s521 = smul.addr %s520, 16
        %s522 = scalar_lea.vmem [#allocation4], %s521
        %p523 = pneg %p169
        %p524 = pneg %p166
        %s525 = smul.u32 2, %s23
        %p526 = scmp.lt.s32.totalorder %s22, 0
        %s527 = scalar_select %p526, %s22, 0
        %p528 = scmp.lt.s32.totalorder %s525, 3
        %s529 = scalar_select %p528, %s525, 3
        %s530 = smul.addr %s527, 4
        %s531 = sadd.s32 %s529, %s530
        %s532 = scalar_lea.vmem %s4, %s531
        %p533 = pneg %p197
        %p534 = pneg %p194
        %s535 = smul.u32 2, %s23
        %p536 = scmp.lt.s32.totalorder %s22, 0
        %s537 = scalar_select %p536, %s22, 0
        %p538 = scmp.lt.s32.totalorder %s535, 3
        %s539 = scalar_select %p538, %s535, 3
        %s540 = smul.addr %s537, 4
        %s541 = sadd.s32 %s539, %s540
        %s542 = scalar_lea.vmem %s5, %s541
        %s543 = smul.u32 2, %s22
        %p544 = scmp.lt.s32.totalorder %s24, 2
        %s545 = scalar_select %p544, %s24, 2
        %p546 = scmp.lt.s32.totalorder %s543, 1
        %s547 = scalar_select %p546, %s543, 1
        %s548 = smul.addr %s547, 4
        %s549 = smul.addr %s545, 8
        %s550 = sadd.s32 %s548, %s549
        %s551 = smul.addr %s550, 4
        %s552 = scalar_lea.vmem %s0, %s551
        %s553 = smul.u32 2, %s22
        %s554 = smul.u32 2, %s23
        %s555 = smul.u32 2, %s23
        %p556 = scmp.lt.s32.totalorder %s555, 3
        %s557 = scalar_select %p556, %s555, 3
        %s558 = scalar_lea.vmem %s2, %s557
        %s559 = smul.u32 2, %s23
        %s560 = smul.u32 2, %s22
        %s561 = smul.u32 2, %s23
        %s562 = smul.u32 2, %s23
        %p563 = scmp.lt.s32.totalorder %s22, 0
        %s564 = scalar_select %p563, %s22, 0
        %p565 = scmp.lt.s32.totalorder %s562, 3
        %s566 = scalar_select %p565, %s562, 3
        %s567 = smul.addr %s564, 4
        %s568 = sadd.s32 %s566, %s567
        %s569 = scalar_lea.vmem %s4, %s568
        %s570 = smul.u32 2, %s23
        %s571 = smul.u32 2, %s23
        %p572 = scmp.lt.s32.totalorder %s22, 0
        %s573 = scalar_select %p572, %s22, 0
        %p574 = scmp.lt.s32.totalorder %s571, 3
        %s575 = scalar_select %p574, %s571, 3
        %s576 = smul.addr %s573, 4
        %s577 = sadd.s32 %s575, %s576
        %s578 = scalar_lea.vmem %s5, %s577
        %s579 = smul.u32 2, %s23
        %p581 = scmp.eq.s32.totalorder %s24, 0
        // Predicated region
        $region71: #{conv_block.4} parent=65 // pred_check
          %p582 = pneg %p581
        $region72: #{conv_block.4} parent=65 // pred_check_branch
          %584 = sbr.rel (%p582) target = $region74
        $region73: #{conv_block.4} parent=65 // pred_region
          %585 = vst [vmem:[#allocation2] sm:$0xff] 0.0
          %586 = vst [vmem:[#allocation2 + $0x8] sm:$0xff] 0.0
          %587 = vst [vmem:[#allocation2 + $0x10] sm:$0xff] 0.0
          %588 = vst [vmem:[#allocation2 + $0x18] sm:$0xff] 0.0
        $region74: #{conv_block.4} parent=65 // pred_fallthru
          _
        %v589 = vld [vmem:[#allocation2] sm:$0xff]
        %v590 = vld [vmem:[#allocation2 + $0x8] sm:$0xff]
        %v591 = vld [vmem:[#allocation2 + $0x10] sm:$0xff]
        %v592 = vld [vmem:[#allocation2 + $0x18] sm:$0xff]
        %v593 = vld [vmem:[%s552] sm:$0xff]
        %v594 = vld [vmem:[%s552 + $0x8] sm:$0xff]
        %v595 = vld [vmem:[%s552 + $0x10] sm:$0xff]
        %v596 = vld [vmem:[%s552 + $0x18] sm:$0xff]
        %v597 = vld [vmem:[%s489] sm:$0xff]
        %v598 = vld [vmem:[%s489 + $0x8] sm:$0xff]
        %v599 = vld [vmem:[%s489 + $0x10] sm:$0xff]
        %v600 = vld [vmem:[%s489 + $0x18] sm:$0xff]
        %v601 = vld [vmem:[%s489 + $0x20] sm:$0xff]
        %v602 = vld [vmem:[%s489 + $0x28] sm:$0xff]
        %v603 = vld [vmem:[%s489 + $0x30] sm:$0xff]
        %v604 = vld [vmem:[%s489 + $0x38] sm:$0xff]
        %v605 = vld [vmem:[%s489 + $0x40] sm:$0xff]
        %v606 = vld [vmem:[%s489 + $0x48] sm:$0xff]
        %v607 = vld [vmem:[%s489 + $0x50] sm:$0xff]
        %v608 = vld [vmem:[%s489 + $0x58] sm:$0xff]
        %v609 = vld [vmem:[%s489 + $0x60] sm:$0xff]
        %v610 = vld [vmem:[%s489 + $0x68] sm:$0xff]
        %v611 = vld [vmem:[%s489 + $0x70] sm:$0xff]
        %v612 = vld [vmem:[%s489 + $0x78] sm:$0xff]
        %v613 = vld [vmem:[%s489 + $0x80] sm:$0xff]
        %v614 = vld [vmem:[%s489 + $0x88] sm:$0xff]
        %v615 = vld [vmem:[%s489 + $0x90] sm:$0xff]
        %v616 = vld [vmem:[%s489 + $0x98] sm:$0xff]
        %v617 = vld [vmem:[%s489 + $0xa0] sm:$0xff]
        %v618 = vld [vmem:[%s489 + $0xa8] sm:$0xff]
        %v619 = vld [vmem:[%s489 + $0xb0] sm:$0xff]
        %v620 = vld [vmem:[%s489 + $0xb8] sm:$0xff]
        %v621 = vld [vmem:[%s489 + $0xc0] sm:$0xff]
        %v622 = vld [vmem:[%s489 + $0xc8] sm:$0xff]
        %v623 = vld [vmem:[%s489 + $0xd0] sm:$0xff]
        %v624 = vld [vmem:[%s489 + $0xd8] sm:$0xff]
        %v625 = vld [vmem:[%s489 + $0xe0] sm:$0xff]
        %v626 = vld [vmem:[%s489 + $0xe8] sm:$0xff]
        %v627 = vld [vmem:[%s489 + $0xf0] sm:$0xff]
        %v628 = vld [vmem:[%s489 + $0xf8] sm:$0xff]
        %v629 = vld [vmem:[%s489 + $0x100] sm:$0xff]
        %v630 = vld [vmem:[%s489 + $0x108] sm:$0xff]
        %v631 = vld [vmem:[%s489 + $0x110] sm:$0xff]
        %v632 = vld [vmem:[%s489 + $0x118] sm:$0xff]
        %v633 = vld [vmem:[%s489 + $0x120] sm:$0xff]
        %v634 = vld [vmem:[%s489 + $0x128] sm:$0xff]
        %v635 = vld [vmem:[%s489 + $0x130] sm:$0xff]
        %v636 = vld [vmem:[%s489 + $0x138] sm:$0xff]
        %v637 = vld [vmem:[%s489 + $0x140] sm:$0xff]
        %v638 = vld [vmem:[%s489 + $0x148] sm:$0xff]
        %v639 = vld [vmem:[%s489 + $0x150] sm:$0xff]
        %v640 = vld [vmem:[%s489 + $0x158] sm:$0xff]
        %v641 = vld [vmem:[%s489 + $0x160] sm:$0xff]
        %v642 = vld [vmem:[%s489 + $0x168] sm:$0xff]
        %v643 = vld [vmem:[%s489 + $0x170] sm:$0xff]
        %v644 = vld [vmem:[%s489 + $0x178] sm:$0xff]
        %v645 = vld [vmem:[%s489 + $0x180] sm:$0xff]
        %v646 = vld [vmem:[%s489 + $0x188] sm:$0xff]
        %v651 = vunpack.c.l.b16 %v593
        %v652 = vunpack.c.h.b16 %v593
        %v653 = vunpack.c.l.b16 %v594
        %v654 = vunpack.c.h.b16 %v594
        %v655 = vunpack.c.l.b16 %v595
        %v656 = vunpack.c.h.b16 %v595
        %v657 = vunpack.c.l.b16 %v596
        %v658 = vunpack.c.h.b16 %v596
        %v659 = vpack.c.b16 %v655, %v651
        %v660 = vpack.c.b16 %v656, %v652
        %v661 = vpack.c.b16 %v657, %v653
        %v662 = vpack.c.b16 %v658, %v654
        %v716 = vunpack.c.l.b16 %v597
        %v717 = vunpack.c.h.b16 %v597
        %v718 = vunpack.c.l.b16 %v598
        %v719 = vunpack.c.h.b16 %v598
        %v720 = vunpack.c.l.b16 %v599
        %v721 = vunpack.c.h.b16 %v599
        %v722 = vunpack.c.l.b16 %v600
        %v723 = vunpack.c.h.b16 %v600
        %v724 = vunpack.c.l.b16 %v601
        %v725 = vunpack.c.h.b16 %v601
        %v726 = vunpack.c.l.b16 %v602
        %v727 = vunpack.c.h.b16 %v602
        %v728 = vunpack.c.l.b16 %v603
        %v729 = vunpack.c.h.b16 %v603
        %v730 = vunpack.c.l.b16 %v604
        %v731 = vunpack.c.h.b16 %v604
        %v732 = vunpack.c.l.b16 %v605
        %v733 = vunpack.c.h.b16 %v605
        %v734 = vunpack.c.l.b16 %v606
        %v735 = vunpack.c.h.b16 %v606
        %v736 = vunpack.c.l.b16 %v607
        %v737 = vunpack.c.h.b16 %v607
        %v738 = vunpack.c.l.b16 %v608
        %v739 = vunpack.c.h.b16 %v608
        %v740 = vunpack.c.l.b16 %v609
        %v741 = vunpack.c.h.b16 %v609
        %v742 = vunpack.c.l.b16 %v610
        %v743 = vunpack.c.h.b16 %v610
        %v744 = vunpack.c.l.b16 %v611
        %v745 = vunpack.c.h.b16 %v611
        %v746 = vunpack.c.l.b16 %v612
        %v747 = vunpack.c.h.b16 %v612
        %v748 = vunpack.c.l.b16 %v613
        %v749 = vunpack.c.h.b16 %v613
        %v750 = vunpack.c.l.b16 %v614
        %v751 = vunpack.c.h.b16 %v614
        %v752 = vunpack.c.l.b16 %v615
        %v753 = vunpack.c.h.b16 %v615
        %v754 = vunpack.c.l.b16 %v616
        %v755 = vunpack.c.h.b16 %v616
        %v756 = vunpack.c.l.b16 %v617
        %v757 = vunpack.c.h.b16 %v617
        %v758 = vunpack.c.l.b16 %v618
        %v759 = vunpack.c.h.b16 %v618
        %v760 = vunpack.c.l.b16 %v619
        %v761 = vunpack.c.h.b16 %v619
        %v762 = vunpack.c.l.b16 %v620
        %v763 = vunpack.c.h.b16 %v620
        %v764 = vunpack.c.l.b16 %v621
        %v765 = vunpack.c.h.b16 %v621
        %v766 = vunpack.c.l.b16 %v622
        %v767 = vunpack.c.h.b16 %v622
        %v768 = vunpack.c.l.b16 %v623
        %v769 = vunpack.c.h.b16 %v623
        %v770 = vunpack.c.l.b16 %v624
        %v771 = vunpack.c.h.b16 %v624
        %v772 = vunpack.c.l.b16 %v625
        %v773 = vunpack.c.h.b16 %v625
        %v774 = vunpack.c.l.b16 %v626
        %v775 = vunpack.c.h.b16 %v626
        %v776 = vunpack.c.l.b16 %v627
        %v777 = vunpack.c.h.b16 %v627
        %v778 = vunpack.c.l.b16 %v628
        %v779 = vunpack.c.h.b16 %v628
        %v780 = vunpack.c.l.b16 %v629
        %v781 = vunpack.c.h.b16 %v629
        %v782 = vunpack.c.l.b16 %v630
        %v783 = vunpack.c.h.b16 %v630
        %v784 = vunpack.c.l.b16 %v631
        %v785 = vunpack.c.h.b16 %v631
        %v786 = vunpack.c.l.b16 %v632
        %v787 = vunpack.c.h.b16 %v632
        %v788 = vunpack.c.l.b16 %v633
        %v789 = vunpack.c.h.b16 %v633
        %v790 = vunpack.c.l.b16 %v634
        %v791 = vunpack.c.h.b16 %v634
        %v792 = vunpack.c.l.b16 %v635
        %v793 = vunpack.c.h.b16 %v635
        %v794 = vunpack.c.l.b16 %v636
        %v795 = vunpack.c.h.b16 %v636
        %v796 = vunpack.c.l.b16 %v637
        %v797 = vunpack.c.h.b16 %v637
        %v798 = vunpack.c.l.b16 %v638
        %v799 = vunpack.c.h.b16 %v638
        %v800 = vunpack.c.l.b16 %v639
        %v801 = vunpack.c.h.b16 %v639
        %v802 = vunpack.c.l.b16 %v640
        %v803 = vunpack.c.h.b16 %v640
        %v804 = vunpack.c.l.b16 %v641
        %v805 = vunpack.c.h.b16 %v641
        %v806 = vunpack.c.l.b16 %v642
        %v807 = vunpack.c.h.b16 %v642
        %v808 = vunpack.c.l.b16 %v643
        %v809 = vunpack.c.h.b16 %v643
        %v810 = vunpack.c.l.b16 %v644
        %v811 = vunpack.c.h.b16 %v644
        %v812 = vunpack.c.l.b16 %v645
        %v813 = vunpack.c.h.b16 %v645
        %v814 = vunpack.c.l.b16 %v646
        %v815 = vunpack.c.h.b16 %v646
        %v816 = vpack.c.b16 %v718, %v716
        %v817 = vpack.c.b16 %v719, %v717
        %v818 = vpack.c.b16 %v722, %v720
        %v819 = vpack.c.b16 %v723, %v721
        %v820 = vpack.c.b16 %v726, %v724
        %v821 = vpack.c.b16 %v727, %v725
        %v822 = vpack.c.b16 %v730, %v728
        %v823 = vpack.c.b16 %v731, %v729
        %v824 = vpack.c.b16 %v734, %v732
        %v825 = vpack.c.b16 %v735, %v733
        %v826 = vpack.c.b16 %v738, %v736
        %v827 = vpack.c.b16 %v739, %v737
        %v828 = vpack.c.b16 %v742, %v740
        %v829 = vpack.c.b16 %v743, %v741
        %v830 = vpack.c.b16 %v746, %v744
        %v831 = vpack.c.b16 %v747, %v745
        %v832 = vpack.c.b16 %v750, %v748
        %v833 = vpack.c.b16 %v751, %v749
        %v834 = vpack.c.b16 %v754, %v752
        %v835 = vpack.c.b16 %v755, %v753
        %v836 = vpack.c.b16 %v758, %v756
        %v837 = vpack.c.b16 %v759, %v757
        %v838 = vpack.c.b16 %v762, %v760
        %v839 = vpack.c.b16 %v763, %v761
        %v840 = vpack.c.b16 %v766, %v764
        %v841 = vpack.c.b16 %v767, %v765
        %v842 = vpack.c.b16 %v770, %v768
        %v843 = vpack.c.b16 %v771, %v769
        %v844 = vpack.c.b16 %v774, %v772
        %v845 = vpack.c.b16 %v775, %v773
        %v846 = vpack.c.b16 %v778, %v776
        %v847 = vpack.c.b16 %v779, %v777
        %v848 = vpack.c.b16 %v782, %v780
        %v849 = vpack.c.b16 %v783, %v781
        %v850 = vpack.c.b16 %v786, %v784
        %v851 = vpack.c.b16 %v787, %v785
        %v852 = vpack.c.b16 %v790, %v788
        %v853 = vpack.c.b16 %v791, %v789
        %v854 = vpack.c.b16 %v794, %v792
        %v855 = vpack.c.b16 %v795, %v793
        %v856 = vpack.c.b16 %v798, %v796
        %v857 = vpack.c.b16 %v799, %v797
        %v858 = vpack.c.b16 %v802, %v800
        %v859 = vpack.c.b16 %v803, %v801
        %v860 = vpack.c.b16 %v806, %v804
        %v861 = vpack.c.b16 %v807, %v805
        %v862 = vpack.c.b16 %v810, %v808
        %v863 = vpack.c.b16 %v811, %v809
        %v864 = vpack.c.b16 %v814, %v812
        %v865 = vpack.c.b16 %v815, %v813
        %vm916 = vcmask 130048
        %v918 = vsel %vm916, %v662, 0
        %920 = vmatprep.subr.bf16.mxu0 %v831
        %921 = vmatpush1.bf16.msra.mxu0 %v830
        %922 = vmatprep.subr.bf16.mxu0 %v829
        %923 = vmatpush1.bf16.msra.mxu0 %v828
        %924 = vmatprep.subr.bf16.mxu0 %v827
        %925 = vmatpush1.bf16.msra.mxu0 %v826
        %926 = vmatprep.subr.bf16.mxu0 %v825
        %927 = vmatpush1.bf16.msra.mxu0 %v824
        %928 = vmatprep.subr.bf16.mxu0 %v823
        %929 = vmatpush1.bf16.msra.mxu0 %v822
        %930 = vmatprep.subr.bf16.mxu0 %v821
        %931 = vmatpush1.bf16.msra.mxu0 %v820
        %932 = vmatprep.subr.bf16.mxu0 %v819
        %933 = vmatpush1.bf16.msra.mxu0 %v818
        %934 = vmatprep.subr.bf16.mxu0 %v817
        %935 = vmatpush1.bf16.msra.mxu0 %v816
        %936 = vmatprep.subr.bf16.mxu0 %v847
        %937 = vmatpush2.bf16.msra.mxu0 %v846
        %938 = vmatprep.subr.bf16.mxu0 %v845
        %939 = vmatpush2.bf16.msra.mxu0 %v844
        %940 = vmatprep.subr.bf16.mxu0 %v843
        %941 = vmatpush2.bf16.msra.mxu0 %v842
        %942 = vmatprep.subr.bf16.mxu0 %v841
        %943 = vmatpush2.bf16.msra.mxu0 %v840
        %944 = vmatprep.subr.bf16.mxu0 %v839
        %945 = vmatpush2.bf16.msra.mxu0 %v838
        %946 = vmatprep.subr.bf16.mxu0 %v837
        %947 = vmatpush2.bf16.msra.mxu0 %v836
        %948 = vmatprep.subr.bf16.mxu0 %v835
        %949 = vmatpush2.bf16.msra.mxu0 %v834
        %950 = vmatprep.subr.bf16.mxu0 %v833
        %951 = vmatpush2.bf16.msra.mxu0 %v832
        %952 = vmatprep.mubr.bf16.mxu0 %v660
        %953 = vmatmul.mubr.bf16.gmra.mxu0 %v659
        %v954 = vpop.f32.mrf.mxu0
        %v955 = vadd.f32 0.0, %v954
        %v956 = vpop.f32.mrf.mxu0
        %v957 = vadd.f32 0.0, %v956
        %v958 = vpop.f32.mrf.mxu0
        %v959 = vadd.f32 0.0, %v958
        %v960 = vpop.f32.mrf.mxu0
        %v961 = vadd.f32 0.0, %v960
        %962 = vdwg.mxu0
        %963 = vmatprep.subr.bf16.mxu0 %v863
        %964 = vmatpush1.bf16.msra.mxu0 %v862
        %965 = vmatprep.subr.bf16.mxu0 %v861
        %966 = vmatpush1.bf16.msra.mxu0 %v860
        %967 = vmatprep.subr.bf16.mxu0 %v859
        %968 = vmatpush1.bf16.msra.mxu0 %v858
        %969 = vmatprep.subr.bf16.mxu0 %v857
        %970 = vmatpush1.bf16.msra.mxu0 %v856
        %971 = vmatprep.subr.bf16.mxu0 %v855
        %972 = vmatpush1.bf16.msra.mxu0 %v854
        %973 = vmatprep.subr.bf16.mxu0 %v853
        %974 = vmatpush1.bf16.msra.mxu0 %v852
        %975 = vmatprep.subr.bf16.mxu0 %v851
        %976 = vmatpush1.bf16.msra.mxu0 %v850
        %977 = vmatprep.subr.bf16.mxu0 %v849
        %978 = vmatpush1.bf16.msra.mxu0 %v848
        %979 = vmatprep.subr.bf16.mxu0 0
        %980 = vmatpush2.bf16.msra.mxu0 0
        %981 = vmatprep.subr.bf16.mxu0 0
        %982 = vmatpush2.bf16.msra.mxu0 0
        %983 = vmatprep.subr.bf16.mxu0 0
        %984 = vmatpush2.bf16.msra.mxu0 0
        %985 = vmatprep.subr.bf16.mxu0 0
        %986 = vmatpush2.bf16.msra.mxu0 0
        %987 = vmatprep.subr.bf16.mxu0 0
        %988 = vmatpush2.bf16.msra.mxu0 0
        %989 = vmatprep.subr.bf16.mxu0 0
        %990 = vmatpush2.bf16.msra.mxu0 0
        %991 = vmatprep.subr.bf16.mxu0 0
        %992 = vmatpush2.bf16.msra.mxu0 0
        %993 = vmatprep.subr.bf16.mxu0 %v865
        %994 = vmatpush2.bf16.msra.mxu0 %v864
        %995 = vmatprep.mubr.bf16.mxu0 %v918
        %996 = vmatmul.mubr.bf16.gmra.mxu0 %v661
        %v997 = vpop.f32.mrf.mxu0
        %v998 = vadd.f32 %v955, %v997
        %v999 = vpop.f32.mrf.mxu0
        %v1000 = vadd.f32 %v957, %v999
        %v1001 = vpop.f32.mrf.mxu0
        %v1002 = vadd.f32 %v959, %v1001
        %v1003 = vpop.f32.mrf.mxu0
        %v1004 = vadd.f32 %v961, %v1003
        %1005 = vdwg.mxu0
        %v1006 = vadd.f32 %v589, %v998
        %v1007 = vadd.f32 %v590, %v1000
        %v1008 = vadd.f32 %v591, %v1002
        %v1009 = vadd.f32 %v592, %v1004
        %1010 = vst [vmem:[#allocation2] sm:$0xff] %v1006
        %1011 = vst [vmem:[#allocation2 + $0x8] sm:$0xff] %v1007
        %1012 = vst [vmem:[#allocation2 + $0x10] sm:$0xff] %v1008
        %1013 = vst [vmem:[#allocation2 + $0x18] sm:$0xff] %v1009
        %p1014 = scmp.eq.s32.totalorder %s24, 2
        // Predicated region
        $region75: #{conv_block.4} parent=65 // pred_check
          %p1015 = pneg %p1014
        $region76: #{conv_block.4} parent=65 // pred_check_branch
          %1017 = sbr.rel (%p1015) target = $region78
        $region77: #{conv_block.4} parent=65 // pred_region
          %v1018 = vld [vmem:[#allocation2] sm:$0xff]
          %v1019 = vld [vmem:[#allocation2 + $0x8] sm:$0xff]
          %v1020 = vld [vmem:[#allocation2 + $0x10] sm:$0xff]
          %v1021 = vld [vmem:[#allocation2 + $0x18] sm:$0xff]
          %v1022 = vadd.f32 %v1018, %v1020
          %v1023 = vrot.slane %v1022, 4
          %v1024 = vadd.f32 %v1022, %v1023
          %v1025 = vrot.slane %v1024, 2
          %v1026 = vadd.f32 %v1024, %v1025
          %v1027 = vrot.slane %v1026, 1
          %v1028 = vadd.f32 %v1026, %v1027
          %v1029 = vadd.f32 %v1019, %v1021
          %v1030 = vrot.slane %v1029, 4
          %v1031 = vadd.f32 %v1029, %v1030
          %v1032 = vrot.slane %v1031, 2
          %v1033 = vadd.f32 %v1031, %v1032
          %v1034 = vrot.slane %v1033, 1
          %v1035 = vadd.f32 %v1033, %v1034
          %v1038 = vcombine.low %v1028, %v1035
          %v1040 = vunpack.c.l.s4 1966171168
          %v1041 = vunpack.c.0.s8 %v1040
          %v1042 = vlaneseq
          %v1043 = vshrl.u32 %v1042, 7
          %v1044 = vsub.s32 %v1041, %v1043
          %v1045 = vrot.slane %v1038, %v1044
          %v1047 = vunpack.c.l.s4 1966171168
          %v1048 = vunpack.c.0.s8 %v1047
          %v1049 = vlaneseq
          %v1050 = vshrl.u32 %v1049, 7
          %v1051 = vsub.s32 %v1048, %v1050
          %v1052 = vrot.slane %v1045, %v1051
          %v1054 = vlaneseq
          %vm1055 = vcmp.ge.s32.totalorder %v1054, 0
          %vm1056 = vcmp.lt.s32.totalorder %v1054, 256
          %vm1057 = vmand %vm1055, %vm1056
          %1058 = vst.msk [vmem:[%s569] sm:$0x3] %vm1057, %v1052
          %v1059 = vmul.f32 %v1018, %v1018
          %v1060 = vmul.f32 %v1019, %v1019
          %v1061 = vmul.f32 %v1020, %v1020
          %v1062 = vmul.f32 %v1021, %v1021
          %v1063 = vadd.f32 %v1059, %v1061
          %v1064 = vrot.slane %v1063, 4
          %v1065 = vadd.f32 %v1063, %v1064
          %v1066 = vrot.slane %v1065, 2
          %v1067 = vadd.f32 %v1065, %v1066
          %v1068 = vrot.slane %v1067, 1
          %v1069 = vadd.f32 %v1067, %v1068
          %v1070 = vadd.f32 %v1060, %v1062
          %v1071 = vrot.slane %v1070, 4
          %v1072 = vadd.f32 %v1070, %v1071
          %v1073 = vrot.slane %v1072, 2
          %v1074 = vadd.f32 %v1072, %v1073
          %v1075 = vrot.slane %v1074, 1
          %v1076 = vadd.f32 %v1074, %v1075
          %v1079 = vcombine.low %v1069, %v1076
          %v1081 = vunpack.c.l.s4 1966171168
          %v1082 = vunpack.c.0.s8 %v1081
          %v1083 = vlaneseq
          %v1084 = vshrl.u32 %v1083, 7
          %v1085 = vsub.s32 %v1082, %v1084
          %v1086 = vrot.slane %v1079, %v1085
          %v1088 = vunpack.c.l.s4 1966171168
          %v1089 = vunpack.c.0.s8 %v1088
          %v1090 = vlaneseq
          %v1091 = vshrl.u32 %v1090, 7
          %v1092 = vsub.s32 %v1089, %v1091
          %v1093 = vrot.slane %v1086, %v1092
          %1095 = vst.msk [vmem:[%s578] sm:$0x3] %vm1057, %v1093
          %v1096 = vld [vmem:[%s558] sm:$0x3]
          %v1098 = vlaneseq
          %v1099 = vshrl.u32 %v1098, 7
          %v1100 = vsub.s32 0, %v1099
          %v1101 = vrot.slane %v1096, %v1100
          %v1102 = vlaneseq
          %v1103 = vshrl.u32 %v1102, 7
          %v1104 = vsub.s32 1, %v1103
          %v1105 = vrot.slane %v1096, %v1104
          %v1108 = vadd.f32 %v1018, %v1101
          %v1109 = vadd.f32 %v1019, %v1105
          %v1110 = vadd.f32 %v1020, %v1101
          %v1111 = vadd.f32 %v1021, %v1105
          %v1112 = vpack.c.bf16 %v1110, %v1108
          %v1113 = vpack.c.bf16 %v1111, %v1109
          %v1116 = vunpack.c.l.b16 %v1112
          %v1117 = vunpack.c.l.b16 %v1113
          %v1118 = vunpack.c.h.b16 %v1112
          %v1119 = vunpack.c.h.b16 %v1113
          %v1120 = vpack.c.b16 %v1117, %v1116
          %v1121 = vpack.c.b16 %v1119, %v1118
          %1124 = vst [vmem:[%s522] sm:$0xff] %v1120
          %1125 = vst [vmem:[%s522 + $0x8] sm:$0xff] %v1121
        $region78: #{conv_block.4} parent=65 // pred_fallthru
          _
        %s1126 = sand.u32 %s128, 1
        %s1127 = sand.u32 %s128, 1
        %s1128 = smul.addr %s1127, 16
        %s1129 = scalar_lea.vmem [#allocation4], %s1128
        %s1130 = smul.u32 2, %s23
        %p1131 = scmp.lt.s32.totalorder %s22, 0
        %s1132 = scalar_select %p1131, %s22, 0
        %p1133 = scmp.lt.s32.totalorder %s1130, 3
        %s1134 = scalar_select %p1133, %s1130, 3
        %s1135 = smul.addr %s1132, 4
        %s1136 = sadd.s32 %s1134, %s1135
        %s1137 = scalar_lea.vmem %s4, %s1136
        %s1138 = smul.u32 2, %s23
        %p1139 = scmp.lt.s32.totalorder %s22, 0
        %s1140 = scalar_select %p1139, %s22, 0
        %p1141 = scmp.lt.s32.totalorder %s1138, 3
        %s1142 = scalar_select %p1141, %s1138, 3
        %s1143 = smul.addr %s1140, 4
        %s1144 = sadd.s32 %s1142, %s1143
        %s1145 = scalar_lea.vmem %s5, %s1144
        // Predicated region
        $region79: #{conv_block.4} parent=65 // pred_check
          %p1146 = pneg %p138
        $region80: #{conv_block.4} parent=65 // pred_check_branch
          %1148 = sbr.rel (%p1146) target = $region82
        $region81: #{conv_block.4} parent=65 // pred_region
          %s1149 = smul.u32 2, %s22
          %s1150 = smul.u32 2, %s23
          %s1151 = smul.addr %s1149, 4
          %s1152 = sadd.s32 %s1150, %s1151
          %s1153 = smul.addr %s1152, 4
          %s1154 = scalar_lea.vmem %s3, %s1153
          // Predicated region
          $region83: #{conv_block.4} parent=81 // pred_check
            _
          $region84: #{conv_block.4} parent=81 // pred_check_branch
            %1156 = sbr.rel (0) target = $region86
          $region85: #{conv_block.4} parent=81 // pred_region
            // Predicated region
            $region87: #{conv_block.4} parent=85 // pred_check
              _
            $region88: #{conv_block.4} parent=85 // pred_check_branch
              %1158 = sbr.rel (0) target = $region90
            $region89: #{conv_block.4} parent=85 // pred_region
              // Predicated region
              $region102: #{conv_block.4} parent=89 // pred_check
                _
              $region103: #{conv_block.4} parent=89 // pred_check_branch
                %1176 = sbr.rel (0) target = $region105
              $region104: #{conv_block.4} parent=89 // pred_region
                loop: start=0, step=1, limit=1
                $region106: #{conv_block.4} parent=104 // loop_pre_header
                  _
                $region107: #{conv_block.4} parent=104 // loop_header
                  %s1178 = sphi 0, %s1182
                  %p1179 = scmp.ge.s32.totalorder %s1178, 1
                  %s1183 = sphi %s1129, %s1129
                  %s1184 = sphi %s1154, %s1154
                $region108: #{conv_block.4} parent=104 // loop_header_branch
                  %1181 = sbr.rel (%p1179) target = $region112
                $region109: #{conv_block.4} parent=104 // loop_body
                  %v1185 = vld [vmem:[%s1183] sm:$0xff]
                  %1186 = vst [vmem:[%s1184] sm:$0xff] %v1185
                  %v1187 = vld [vmem:[%s1183 + $0x8] sm:$0xff]
                  %1188 = vst [vmem:[%s1184 + $0x10] sm:$0xff] %v1187
                $region110: #{conv_block.4} parent=104 // loop_footer
                  %s1182 = sadd.s32 1, %s1178
                $region111: #{conv_block.4} parent=104 // loop_footer_branch
                  %1177 = sbr.rel target = $region107
                $region112: #{conv_block.4} parent=104 // loop_exit
                  _
              $region105: #{conv_block.4} parent=89 // pred_fallthru
                _
              // Predicated region
              $region113: #{conv_block.4} parent=89 // pred_check
                _
              $region114: #{conv_block.4} parent=89 // pred_check_branch
                %1190 = sbr.rel target = $region116
              $region115: #{conv_block.4} parent=89 // pred_region
                _
              $region116: #{conv_block.4} parent=89 // pred_fallthru
                _
            $region90: #{conv_block.4} parent=85 // pred_fallthru
              _
            // Predicated region
            $region91: #{conv_block.4} parent=85 // pred_check
              _
            $region92: #{conv_block.4} parent=85 // pred_check_branch
              %1160 = sbr.rel target = $region94
            $region93: #{conv_block.4} parent=85 // pred_region
              %s1162 = ssub.s32 256, 1
              loop: start=0, step=1, limit=1
              $region95: #{conv_block.4} parent=93 // loop_pre_header
                _
              $region96: #{conv_block.4} parent=93 // loop_header
                %s1164 = sphi 0, %s1168
                %p1165 = scmp.ge.s32.totalorder %s1164, 1
                %s1169 = sphi %s1129, %s1129
                %s1170 = sphi %s1154, %s1154
              $region97: #{conv_block.4} parent=93 // loop_header_branch
                %1167 = sbr.rel (%p1165) target = $region101
              $region98: #{conv_block.4} parent=93 // loop_body
                %v1171 = vld [vmem:[%s1169] sm:%s1162]
                %1172 = vst [vmem:[%s1170] sm:%s1162] %v1171
                %v1173 = vld [vmem:[%s1169 + $0x8] sm:%s1162]
                %1174 = vst [vmem:[%s1170 + $0x10] sm:%s1162] %v1173
              $region99: #{conv_block.4} parent=93 // loop_footer
                %s1168 = sadd.s32 1, %s1164
              $region100: #{conv_block.4} parent=93 // loop_footer_branch
                %1163 = sbr.rel target = $region96
              $region101: #{conv_block.4} parent=93 // loop_exit
                _
            $region94: #{conv_block.4} parent=85 // pred_fallthru
              _
          $region86: #{conv_block.4} parent=81 // pred_fallthru
            _
          %1191 = vnop
        $region82: #{conv_block.4} parent=65 // pred_fallthru
          _
        // Predicated region
        $region117: #{conv_block.4} parent=65 // pred_check
          %p1192 = pneg %p166
        $region118: #{conv_block.4} parent=65 // pred_check_branch
          %1194 = sbr.rel (%p1192) target = $region120
        $region119: #{conv_block.4} parent=65 // pred_region
          %s1195 = smul.u32 2, %s23
        $region120: #{conv_block.4} parent=65 // pred_fallthru
          _
        // Predicated region
        $region121: #{conv_block.4} parent=65 // pred_check
          %p1196 = pneg %p194
        $region122: #{conv_block.4} parent=65 // pred_check_branch
          %1198 = sbr.rel (%p1196) target = $region124
        $region123: #{conv_block.4} parent=65 // pred_region
          %s1199 = smul.u32 2, %s23
        $region124: #{conv_block.4} parent=65 // pred_fallthru
          _
      $region66: #{conv_block.4} parent=5 // pred_fallthru
        _
      %p1200 = scmp.le.s32.totalorder 2, %s12
      // Predicated region
      $region125: #{conv_block.4} parent=5 // pred_check
        %p1201 = pneg %p1200
      $region126: #{conv_block.4} parent=5 // pred_check_branch
        %1203 = sbr.rel (%p1201) target = $region128
      $region127: #{conv_block.4} parent=5 // pred_region
        %s1204 = ssub.s32 %s12, 2
        // Predicated region
        $region129: #{conv_block.4} parent=127 // pred_check
          %p1205 = pneg %p144
        $region130: #{conv_block.4} parent=127 // pred_check_branch
          %1207 = sbr.rel (%p1205) target = $region132
        $region131: #{conv_block.4} parent=127 // pred_region
          %s1208 = sand.u32 %s129, 1
          %s1209 = sand.u32 %s129, 1
          %s1210 = smul.addr %s1209, 16
          %s1211 = scalar_lea.vmem [#allocation4], %s1210
        $region132: #{conv_block.4} parent=127 // pred_fallthru
          _
        // Predicated region
        $region133: #{conv_block.4} parent=127 // pred_check
          %p1212 = pneg %p172
        $region134: #{conv_block.4} parent=127 // pred_check_branch
          %1214 = sbr.rel (%p1212) target = $region136
        $region135: #{conv_block.4} parent=127 // pred_region
          %s1215 = smul.u32 2, %s26
          %p1216 = scmp.lt.s32.totalorder %s25, 0
          %s1217 = scalar_select %p1216, %s25, 0
          %p1218 = scmp.lt.s32.totalorder %s1215, 3
          %s1219 = scalar_select %p1218, %s1215, 3
          %s1220 = smul.addr %s1217, 4
          %s1221 = sadd.s32 %s1219, %s1220
          %s1222 = scalar_lea.vmem %s4, %s1221
        $region136: #{conv_block.4} parent=127 // pred_fallthru
          _
        // Predicated region
        $region137: #{conv_block.4} parent=127 // pred_check
          %p1223 = pneg %p200
        $region138: #{conv_block.4} parent=127 // pred_check_branch
          %1225 = sbr.rel (%p1223) target = $region140
        $region139: #{conv_block.4} parent=127 // pred_region
          %s1226 = smul.u32 2, %s26
          %p1227 = scmp.lt.s32.totalorder %s25, 0
          %s1228 = scalar_select %p1227, %s25, 0
          %p1229 = scmp.lt.s32.totalorder %s1226, 3
          %s1230 = scalar_select %p1229, %s1226, 3
          %s1231 = smul.addr %s1228, 4
          %s1232 = sadd.s32 %s1230, %s1231
          %s1233 = scalar_lea.vmem %s5, %s1232
        $region140: #{conv_block.4} parent=127 // pred_fallthru
          _
      $region128: #{conv_block.4} parent=5 // pred_fallthru
        _
    $region6: #{conv_block.4} parent=1 // loop_footer
      %s16 = sadd.s32 1, %s12
    $region7: #{conv_block.4} parent=1 // loop_footer_branch
      %11 = sbr.rel target = $region3
    $region8: #{conv_block.4} parent=1 // loop_exit
      _

// kernel: conv_block.5
$region0: #{conv_block.5}
  #allocation0 [shape = 'u32[]', space=smem, size = 0x4, offset = 0x4, fixed_abs, tag = 'smem constant byte address 0x4 - core index']
  #allocation1 [shape = 'u32[144,128]{1,0:T(1,128)}', space=vmem, size = 0x12000, scoped, tag = 'internal scratch']
  %s0 = inlined_call_operand.vmem [shape: bf16[16,512], index: 0, kind: input, shape index: {}]
  %s1 = inlined_call_operand.vmem [shape: f32[1,512], index: 1, kind: input, shape index: {}]
  %s2 = inlined_call_operand.vmem [shape: f32[1,512], index: 2, kind: input, shape index: {}]
  %s3 = inlined_call_operand.vmem [shape: bf16[16,512], index: 3, kind: output, shape index: {}]
  %s4 = sld [smem:[#allocation0]]
  $region117: #{conv_block.5} parent=0
    _
  %s6 = ssub.s32 1, %s4
  %s7 = scalar_select 0, %s6, %s4
  $region1: #{conv_block.5} parent=0
    #allocation2 [shape = 'u8[16384]{0}', space=vmem, size = 0x4000, scoped, tag = 'input window, operand 0']
    #allocation3 [shape = 'u8[16384]{0}', space=vmem, size = 0x4000, scoped, tag = 'output window, operand 0']
    loop: start=0, step=1, limit=4
    $region2: #{conv_block.5} parent=1 // loop_pre_header
      _
    $region3: #{conv_block.5} parent=1 // loop_header
      %s9 = sphi 0, %s13
      %p10 = scmp.ge.s32.totalorder %s9, 4
      %s16 = sphi 0, %s28
      %s17 = sphi 0, %s24
      %s18 = sphi 0, %s16
      %s19 = sphi 0, %s17
      %s20 = sphi 0, %s18
      %s21 = sphi 0, %s19
      %s33 = sphi 0, %s35
      %s36 = sphi 0, %s33
      %s37 = sphi 0, %s36
      %s53 = sphi 0, %s37
      %s59 = sphi 0, %s61
      %s62 = sphi 0, %s59
      %s63 = sphi 0, %s62
      %s79 = sphi 0, %s63
      %s85 = sphi 0, %s87
      %s88 = sphi 0, %s85
      %s89 = sphi 0, %s88
      %s105 = sphi 0, %s89
      %s113 = sphi 0, %s115
      %s116 = sphi 0, %s113
      %s117 = sphi 0, %s116
      %s133 = sphi 0, %s117
    $region4: #{conv_block.5} parent=1 // loop_header_branch
      %12 = sbr.rel (%p10) target = $region8
    $region5: #{conv_block.5} parent=1 // loop_body
      %s14 = ssub.s32 %s9, 1
      %s15 = ssub.s32 %s9, 2
      %s22 = sadd.s32 1, %s17
      %p23 = scmp.ge.s32.totalorder %s22, 2
      %s24 = scalar_select %p23, 0, %s22
      %s25 = sadd.s32 1, %s16
      %s26 = scalar_select %p23, %s25, %s16
      %p27 = scmp.ge.s32.totalorder %s26, 1
      %s28 = scalar_select %p27, 0, %s26
      %s29 = ssub.s32 %s16, %s28
      %s30 = ssub.s32 %s17, %s24
      %s31 = sor.u32 %s29, %s30
      %p32 = scmp.eq.s32.totalorder %s31, 0
      %s34 = sadd.s32 %s33, 1
      %s35 = scalar_select %p32, %s33, %s34
      %p38 = pneg %p32
      %p39 = scmp.eq.s32.totalorder %s9, 1
      %p40 = por %p38, %p39
      %p41 = scmp.ne.s32.totalorder %s33, %s36
      %p42 = scmp.eq.s32.totalorder %s9, 0
      %p43 = por %p41, %p42
      %p44 = scmp.ne.s32.totalorder %s33, %s36
      %p45 = scmp.eq.s32.totalorder %s14, 1
      %p46 = por %p44, %p45
      %p47 = scmp.ne.s32.totalorder %s36, %s37
      %p48 = scmp.eq.s32.totalorder %s14, 0
      %p49 = por %p47, %p48
      %p50 = scmp.ne.s32.totalorder %s36, %s37
      %p51 = scmp.eq.s32.totalorder %s15, 1
      %p52 = por %p50, %p51
      %p54 = scmp.ne.s32.totalorder %s37, %s53
      %p55 = scmp.eq.s32.totalorder %s15, 0
      %p56 = por %p54, %p55
      %s57 = ssub.s32 %s17, %s24
      %p58 = scmp.eq.s32.totalorder %s57, 0
      %s60 = sadd.s32 %s59, 1
      %s61 = scalar_select %p58, %s59, %s60
      %p64 = pneg %p58
      %p65 = scmp.eq.s32.totalorder %s9, 1
      %p66 = por %p64, %p65
      %p67 = scmp.ne.s32.totalorder %s59, %s62
      %p68 = scmp.eq.s32.totalorder %s9, 0
      %p69 = por %p67, %p68
      %p70 = scmp.ne.s32.totalorder %s59, %s62
      %p71 = scmp.eq.s32.totalorder %s14, 1
      %p72 = por %p70, %p71
      %p73 = scmp.ne.s32.totalorder %s62, %s63
      %p74 = scmp.eq.s32.totalorder %s14, 0
      %p75 = por %p73, %p74
      %p76 = scmp.ne.s32.totalorder %s62, %s63
      %p77 = scmp.eq.s32.totalorder %s15, 1
      %p78 = por %p76, %p77
      %p80 = scmp.ne.s32.totalorder %s63, %s79
      %p81 = scmp.eq.s32.totalorder %s15, 0
      %p82 = por %p80, %p81
      %s83 = ssub.s32 %s17, %s24
      %p84 = scmp.eq.s32.totalorder %s83, 0
      %s86 = sadd.s32 %s85, 1
      %s87 = scalar_select %p84, %s85, %s86
      %p90 = pneg %p84
      %p91 = scmp.eq.s32.totalorder %s9, 1
      %p92 = por %p90, %p91
      %p93 = scmp.ne.s32.totalorder %s85, %s88
      %p94 = scmp.eq.s32.totalorder %s9, 0
      %p95 = por %p93, %p94
      %p96 = scmp.ne.s32.totalorder %s85, %s88
      %p97 = scmp.eq.s32.totalorder %s14, 1
      %p98 = por %p96, %p97
      %p99 = scmp.ne.s32.totalorder %s88, %s89
      %p100 = scmp.eq.s32.totalorder %s14, 0
      %p101 = por %p99, %p100
      %p102 = scmp.ne.s32.totalorder %s88, %s89
      %p103 = scmp.eq.s32.totalorder %s15, 1
      %p104 = por %p102, %p103
      %p106 = scmp.ne.s32.totalorder %s89, %s105
      %p107 = scmp.eq.s32.totalorder %s15, 0
      %p108 = por %p106, %p107
      %s109 = ssub.s32 %s16, %s28
      %s110 = ssub.s32 %s17, %s24
      %s111 = sor.u32 %s109, %s110
      %p112 = scmp.eq.s32.totalorder %s111, 0
      %s114 = sadd.s32 %s113, 1
      %s115 = scalar_select %p112, %s113, %s114
      %p118 = pneg %p112
      %p119 = scmp.eq.s32.totalorder %s9, 1
      %p120 = por %p118, %p119
      %p121 = scmp.ne.s32.totalorder %s113, %s116
      %p122 = scmp.eq.s32.totalorder %s9, 0
      %p123 = por %p121, %p122
      %p124 = scmp.ne.s32.totalorder %s113, %s116
      %p125 = scmp.eq.s32.totalorder %s14, 1
      %p126 = por %p124, %p125
      %p127 = scmp.ne.s32.totalorder %s116, %s117
      %p128 = scmp.eq.s32.totalorder %s14, 0
      %p129 = por %p127, %p128
      %p130 = scmp.ne.s32.totalorder %s116, %s117
      %p131 = scmp.eq.s32.totalorder %s15, 1
      %p132 = por %p130, %p131
      %p134 = scmp.ne.s32.totalorder %s117, %s133
      %p135 = scmp.eq.s32.totalorder %s15, 0
      %p136 = por %p134, %p135
      %p137 = scmp.le.s32.totalorder 1, %s9
      %p138 = scmp.lt.s32.totalorder %s9, 3
      %p139 = pnand %p137, %p138
      %p140 = pneg %p139
      // Predicated region
      $region9: #{conv_block.5} parent=5 // pred_check
        _
      $region10: #{conv_block.5} parent=5 // pred_check_branch
        %142 = sbr.rel (%p139) target = $region12
      $region11: #{conv_block.5} parent=5 // pred_region
        %s143 = ssub.s32 %s9, 1
      $region12: #{conv_block.5} parent=5 // pred_fallthru
        _
      %p144 = scmp.lt.s32.totalorder %s9, 2
      // Predicated region
      $region13: #{conv_block.5} parent=5 // pred_check
        %p145 = pneg %p144
      $region14: #{conv_block.5} parent=5 // pred_check_branch
        %147 = sbr.rel (%p145) target = $region16
      $region15: #{conv_block.5} parent=5 // pred_region
        // Predicated region
        $region17: #{conv_block.5} parent=15 // pred_check
          %p148 = pneg %p43
        $region18: #{conv_block.5} parent=15 // pred_check_branch
          %150 = sbr.rel (%p148) target = $region20
        $region19: #{conv_block.5} parent=15 // pred_region
          %s151 = sand.u32 %s33, 1
          %s152 = sand.u32 %s33, 1
          %s153 = smul.addr %s152, 16
          %s154 = scalar_lea.vmem [#allocation2], %s153
          %s155 = smul.u32 2, %s16
          %s156 = smul.u32 2, %s17
          %s157 = smul.addr %s155, 4
          %s158 = sadd.s32 %s156, %s157
          %s159 = smul.addr %s158, 4
          %s160 = scalar_lea.vmem %s0, %s159
          // Predicated region
          $region21: #{conv_block.5} parent=19 // pred_check
            _
          $region22: #{conv_block.5} parent=19 // pred_check_branch
            %162 = sbr.rel (0) target = $region24
          $region23: #{conv_block.5} parent=19 // pred_region
            // Predicated region
            $region25: #{conv_block.5} parent=23 // pred_check
              _
            $region26: #{conv_block.5} parent=23 // pred_check_branch
              %164 = sbr.rel (0) target = $region28
            $region27: #{conv_block.5} parent=23 // pred_region
              // Predicated region
              $region40: #{conv_block.5} parent=27 // pred_check
                _
              $region41: #{conv_block.5} parent=27 // pred_check_branch
                %182 = sbr.rel (0) target = $region43
              $region42: #{conv_block.5} parent=27 // pred_region
                loop: start=0, step=1, limit=1
                $region44: #{conv_block.5} parent=42 // loop_pre_header
                  _
                $region45: #{conv_block.5} parent=42 // loop_header
                  %s184 = sphi 0, %s188
                  %p185 = scmp.ge.s32.totalorder %s184, 1
                  %s189 = sphi %s160, %s160
                  %s190 = sphi %s154, %s154
                $region46: #{conv_block.5} parent=42 // loop_header_branch
                  %187 = sbr.rel (%p185) target = $region50
                $region47: #{conv_block.5} parent=42 // loop_body
                  %v191 = vld [vmem:[%s189] sm:$0xff]
                  %192 = vst [vmem:[%s190] sm:$0xff] %v191
                  %v193 = vld [vmem:[%s189 + $0x10] sm:$0xff]
                  %194 = vst [vmem:[%s190 + $0x8] sm:$0xff] %v193
                $region48: #{conv_block.5} parent=42 // loop_footer
                  %s188 = sadd.s32 1, %s184
                $region49: #{conv_block.5} parent=42 // loop_footer_branch
                  %183 = sbr.rel target = $region45
                $region50: #{conv_block.5} parent=42 // loop_exit
                  _
              $region43: #{conv_block.5} parent=27 // pred_fallthru
                _
              // Predicated region
              $region51: #{conv_block.5} parent=27 // pred_check
                _
              $region52: #{conv_block.5} parent=27 // pred_check_branch
                %196 = sbr.rel target = $region54
              $region53: #{conv_block.5} parent=27 // pred_region
                _
              $region54: #{conv_block.5} parent=27 // pred_fallthru
                _
            $region28: #{conv_block.5} parent=23 // pred_fallthru
              _
            // Predicated region
            $region29: #{conv_block.5} parent=23 // pred_check
              _
            $region30: #{conv_block.5} parent=23 // pred_check_branch
              %166 = sbr.rel target = $region32
            $region31: #{conv_block.5} parent=23 // pred_region
              %s168 = ssub.s32 256, 1
              loop: start=0, step=1, limit=1
              $region33: #{conv_block.5} parent=31 // loop_pre_header
                _
              $region34: #{conv_block.5} parent=31 // loop_header
                %s170 = sphi 0, %s174
                %p171 = scmp.ge.s32.totalorder %s170, 1
                %s175 = sphi %s160, %s160
                %s176 = sphi %s154, %s154
              $region35: #{conv_block.5} parent=31 // loop_header_branch
                %173 = sbr.rel (%p171) target = $region39
              $region36: #{conv_block.5} parent=31 // loop_body
                %v177 = vld [vmem:[%s175] sm:%s168]
                %178 = vst [vmem:[%s176] sm:%s168] %v177
                %v179 = vld [vmem:[%s175 + $0x10] sm:%s168]
                %180 = vst [vmem:[%s176 + $0x8] sm:%s168] %v179
              $region37: #{conv_block.5} parent=31 // loop_footer
                %s174 = sadd.s32 1, %s170
              $region38: #{conv_block.5} parent=31 // loop_footer_branch
                %169 = sbr.rel target = $region34
              $region39: #{conv_block.5} parent=31 // loop_exit
                _
            $region32: #{conv_block.5} parent=23 // pred_fallthru
              _
          $region24: #{conv_block.5} parent=19 // pred_fallthru
            _
          %197 = vnop
        $region20: #{conv_block.5} parent=15 // pred_fallthru
          _
        // Predicated region
        $region55: #{conv_block.5} parent=15 // pred_check
          %p198 = pneg %p69
        $region56: #{conv_block.5} parent=15 // pred_check_branch
          %200 = sbr.rel (%p198) target = $region58
        $region57: #{conv_block.5} parent=15 // pred_region
          %s201 = smul.u32 2, %s17
          %p202 = scmp.lt.s32.totalorder %s201, 3
          %s203 = scalar_select %p202, %s201, 3
          %s204 = scalar_lea.vmem %s1, %s203
          %s205 = smul.u32 2, %s17
        $region58: #{conv_block.5} parent=15 // pred_fallthru
          _
        // Predicated region
        $region59: #{conv_block.5} parent=15 // pred_check
          %p206 = pneg %p95
        $region60: #{conv_block.5} parent=15 // pred_check_branch
          %208 = sbr.rel (%p206) target = $region62
        $region61: #{conv_block.5} parent=15 // pred_region
          %s209 = smul.u32 2, %s17
          %p210 = scmp.lt.s32.totalorder %s209, 3
          %s211 = scalar_select %p210, %s209, 3
          %s212 = scalar_lea.vmem %s2, %s211
          %s213 = smul.u32 2, %s17
        $region62: #{conv_block.5} parent=15 // pred_fallthru
          _
      $region16: #{conv_block.5} parent=5 // pred_fallthru
        _
      %p214 = scmp.le.s32.totalorder 1, %s9
      %p215 = scmp.lt.s32.totalorder %s9, 3
      %p216 = pnand %p214, %p215
      %p217 = pneg %p216
      // Predicated region
      $region63: #{conv_block.5} parent=5 // pred_check
        _
      $region64: #{conv_block.5} parent=5 // pred_check_branch
        %219 = sbr.rel (%p216) target = $region66
      $region65: #{conv_block.5} parent=5 // pred_region
        %s220 = ssub.s32 %s9, 1
        %s221 = sand.u32 %s36, 1
        %s222 = sand.u32 %s36, 1
        %s223 = smul.addr %s222, 16
        %s224 = scalar_lea.vmem [#allocation2], %s223
        // Predicated region
        $region67: #{conv_block.5} parent=65 // pred_check
          %p225 = pneg %p49
        $region68: #{conv_block.5} parent=65 // pred_check_branch
          %227 = sbr.rel (%p225) target = $region70
        $region69: #{conv_block.5} parent=65 // pred_region
          _
        $region70: #{conv_block.5} parent=65 // pred_fallthru
          _
        %s228 = sand.u32 %s36, 1
        %s229 = sand.u32 %s36, 1
        %s230 = smul.addr %s229, 16
        %s231 = scalar_lea.vmem [#allocation2], %s230
        %p232 = pneg %p49
        %p233 = pneg %p46
        %s234 = smul.u32 2, %s19
        %p235 = scmp.lt.s32.totalorder %s234, 3
        %s236 = scalar_select %p235, %s234, 3
        %s237 = scalar_lea.vmem %s1, %s236
        %p238 = pneg %p75
        %p239 = pneg %p72
        %s240 = smul.u32 2, %s19
        %p241 = scmp.lt.s32.totalorder %s240, 3
        %s242 = scalar_select %p241, %s240, 3
        %s243 = scalar_lea.vmem %s2, %s242
        %p244 = pneg %p101
        %p245 = pneg %p98
        %p246 = pneg %p129
        %p247 = pneg %p126
        %s248 = sand.u32 %s116, 1
        %s249 = sand.u32 %s116, 1
        %s250 = smul.addr %s249, 16
        %s251 = scalar_lea.vmem [#allocation3], %s250
        %s252 = smul.u32 2, %s18
        %s253 = smul.u32 2, %s19
        %s254 = smul.u32 2, %s19
        %p255 = scmp.lt.s32.totalorder %s254, 3
        %s256 = scalar_select %p255, %s254, 3
        %s257 = scalar_lea.vmem %s1, %s256
        %s258 = smul.u32 2, %s19
        %s259 = smul.u32 2, %s19
        %p260 = scmp.lt.s32.totalorder %s259, 3
        %s261 = scalar_select %p260, %s259, 3
        %s262 = scalar_lea.vmem %s2, %s261
        %s263 = smul.u32 2, %s19
        %s264 = smul.u32 2, %s18
        %s265 = smul.u32 2, %s19
        %v266 = vld [vmem:[%s224] sm:$0xff]
        %v267 = vld [vmem:[%s224 + $0x8] sm:$0xff]
        %v268 = vunpack.c.l.bf16 %v266
        %v269 = vunpack.c.h.bf16 %v266
        %v270 = vunpack.c.l.bf16 %v267
        %v271 = vunpack.c.h.bf16 %v267
        %v272 = vld [vmem:[%s257] sm:$0x3]
        %v274 = vlaneseq
        %v275 = vshrl.u32 %v274, 7
        %v276 = vsub.s32 0, %v275
        %v277 = vrot.slane %v272, %v276
        %v278 = vlaneseq
        %v279 = vshrl.u32 %v278, 7
        %v280 = vsub.s32 1, %v279
        %v281 = vrot.slane %v272, %v280
        %v284 = vmul.f32 %v268, %v277
        %v285 = vmul.f32 %v269, %v281
        %v286 = vmul.f32 %v270, %v277
        %v287 = vmul.f32 %v271, %v281
        %v288 = vld [vmem:[%s262] sm:$0x3]
        %v290 = vlaneseq
        %v291 = vshrl.u32 %v290, 7
        %v292 = vsub.s32 0, %v291
        %v293 = vrot.slane %v288, %v292
        %v294 = vlaneseq
        %v295 = vshrl.u32 %v294, 7
        %v296 = vsub.s32 1, %v295
        %v297 = vrot.slane %v288, %v296
        %v300 = vadd.f32 %v284, %v293
        %v301 = vadd.f32 %v285, %v297
        %v302 = vadd.f32 %v286, %v293
        %v303 = vadd.f32 %v287, %v297
        %v304 = vmax.f32 %v300, 0.0
        %v305 = vmax.f32 %v301, 0.0
        %v306 = vmax.f32 %v302, 0.0
        %v307 = vmax.f32 %v303, 0.0
        %v308 = vpack.c.bf16 %v306, %v304
        %v309 = vpack.c.bf16 %v307, %v305
        %v312 = vunpack.c.l.b16 %v308
        %v313 = vunpack.c.l.b16 %v309
        %v314 = vunpack.c.h.b16 %v308
        %v315 = vunpack.c.h.b16 %v309
        %v316 = vpack.c.b16 %v313, %v312
        %v317 = vpack.c.b16 %v315, %v314
        %320 = vst [vmem:[%s251] sm:$0xff] %v316
        %321 = vst [vmem:[%s251 + $0x8] sm:$0xff] %v317
        %s322 = sand.u32 %s116, 1
        %s323 = sand.u32 %s116, 1
        %s324 = smul.addr %s323, 16
        %s325 = scalar_lea.vmem [#allocation3], %s324
        // Predicated region
        $region71: #{conv_block.5} parent=65 // pred_check
          %p326 = pneg %p126
        $region72: #{conv_block.5} parent=65 // pred_check_branch
          %328 = sbr.rel (%p326) target = $region74
        $region73: #{conv_block.5} parent=65 // pred_region
          %s329 = smul.u32 2, %s18
          %s330 = smul.u32 2, %s19
          %s331 = smul.addr %s329, 4
          %s332 = sadd.s32 %s330, %s331
          %s333 = smul.addr %s332, 4
          %s334 = scalar_lea.vmem %s3, %s333
          // Predicated region
          $region75: #{conv_block.5} parent=73 // pred_check
            _
          $region76: #{conv_block.5} parent=73 // pred_check_branch
            %336 = sbr.rel (0) target = $region78
          $region77: #{conv_block.5} parent=73 // pred_region
            // Predicated region
            $region79: #{conv_block.5} parent=77 // pred_check
              _
            $region80: #{conv_block.5} parent=77 // pred_check_branch
              %338 = sbr.rel (0) target = $region82
            $region81: #{conv_block.5} parent=77 // pred_region
              // Predicated region
              $region94: #{conv_block.5} parent=81 // pred_check
                _
              $region95: #{conv_block.5} parent=81 // pred_check_branch
                %356 = sbr.rel (0) target = $region97
              $region96: #{conv_block.5} parent=81 // pred_region
                loop: start=0, step=1, limit=1
                $region98: #{conv_block.5} parent=96 // loop_pre_header
                  _
                $region99: #{conv_block.5} parent=96 // loop_header
                  %s358 = sphi 0, %s362
                  %p359 = scmp.ge.s32.totalorder %s358, 1
                  %s363 = sphi %s325, %s325
                  %s364 = sphi %s334, %s334
                $region100: #{conv_block.5} parent=96 // loop_header_branch
                  %361 = sbr.rel (%p359) target = $region104
                $region101: #{conv_block.5} parent=96 // loop_body
                  %v365 = vld [vmem:[%s363] sm:$0xff]
                  %366 = vst [vmem:[%s364] sm:$0xff] %v365
                  %v367 = vld [vmem:[%s363 + $0x8] sm:$0xff]
                  %368 = vst [vmem:[%s364 + $0x10] sm:$0xff] %v367
                $region102: #{conv_block.5} parent=96 // loop_footer
                  %s362 = sadd.s32 1, %s358
                $region103: #{conv_block.5} parent=96 // loop_footer_branch
                  %357 = sbr.rel target = $region99
                $region104: #{conv_block.5} parent=96 // loop_exit
                  _
              $region97: #{conv_block.5} parent=81 // pred_fallthru
                _
              // Predicated region
              $region105: #{conv_block.5} parent=81 // pred_check
                _
              $region106: #{conv_block.5} parent=81 // pred_check_branch
                %370 = sbr.rel target = $region108
              $region107: #{conv_block.5} parent=81 // pred_region
                _
              $region108: #{conv_block.5} parent=81 // pred_fallthru
                _
            $region82: #{conv_block.5} parent=77 // pred_fallthru
              _
            // Predicated region
            $region83: #{conv_block.5} parent=77 // pred_check
              _
            $region84: #{conv_block.5} parent=77 // pred_check_branch
              %340 = sbr.rel target = $region86
            $region85: #{conv_block.5} parent=77 // pred_region
              %s342 = ssub.s32 256, 1
              loop: start=0, step=1, limit=1
              $region87: #{conv_block.5} parent=85 // loop_pre_header
                _
              $region88: #{conv_block.5} parent=85 // loop_header
                %s344 = sphi 0, %s348
                %p345 = scmp.ge.s32.totalorder %s344, 1
                %s349 = sphi %s325, %s325
                %s350 = sphi %s334, %s334
              $region89: #{conv_block.5} parent=85 // loop_header_branch
                %347 = sbr.rel (%p345) target = $region93
              $region90: #{conv_block.5} parent=85 // loop_body
                %v351 = vld [vmem:[%s349] sm:%s342]
                %352 = vst [vmem:[%s350] sm:%s342] %v351
                %v353 = vld [vmem:[%s349 + $0x8] sm:%s342]
                %354 = vst [vmem:[%s350 + $0x10] sm:%s342] %v353
              $region91: #{conv_block.5} parent=85 // loop_footer
                %s348 = sadd.s32 1, %s344
              $region92: #{conv_block.5} parent=85 // loop_footer_branch
                %343 = sbr.rel target = $region88
              $region93: #{conv_block.5} parent=85 // loop_exit
                _
            $region86: #{conv_block.5} parent=77 // pred_fallthru
              _
          $region78: #{conv_block.5} parent=73 // pred_fallthru
            _
          %371 = vnop
        $region74: #{conv_block.5} parent=65 // pred_fallthru
          _
      $region66: #{conv_block.5} parent=5 // pred_fallthru
        _
      %p372 = scmp.le.s32.totalorder 2, %s9
      // Predicated region
      $region109: #{conv_block.5} parent=5 // pred_check
        %p373 = pneg %p372
      $region110: #{conv_block.5} parent=5 // pred_check_branch
        %375 = sbr.rel (%p373) target = $region112
      $region111: #{conv_block.5} parent=5 // pred_region
        %s376 = ssub.s32 %s9, 2
        // Predicated region
        $region113: #{conv_block.5} parent=111 // pred_check
          %p377 = pneg %p132
        $region114: #{conv_block.5} parent=111 // pred_check_branch
          %379 = sbr.rel (%p377) target = $region116
        $region115: #{conv_block.5} parent=111 // pred_region
          %s380 = sand.u32 %s117, 1
          %s381 = sand.u32 %s117, 1
          %s382 = smul.addr %s381, 16
          %s383 = scalar_lea.vmem [#allocation3], %s382
        $region116: #{conv_block.5} parent=111 // pred_fallthru
          _
      $region112: #{conv_block.5} parent=5 // pred_fallthru
        _
    $region6: #{conv_block.5} parent=1 // loop_footer
      %s13 = sadd.s32 1, %s9
    $region7: #{conv_block.5} parent=1 // loop_footer_branch
      %8 = sbr.rel target = $region3
    $region8: #{conv_block.5} parent=1 // loop_exit
      _

// kernel: conv_block.6
$region0: #{conv_block.6}
  #allocation0 [shape = 'u32[]', space=smem, size = 0x4, offset = 0x4, fixed_abs, tag = 'smem constant byte address 0x4 - core index']
  #allocation1 [shape = 'u32[144,128]{1,0:T(1,128)}', space=vmem, size = 0x12000, scoped, tag = 'internal scratch']
  #allocation2 [shape = 'f32[16,256]{1,0:T(8,128)}', space=vmem, size = 0x4000, scoped, tag = 'scratch operand']
  %s0 = inlined_call_operand.vmem [shape: bf16[3,16,800], index: 0, kind: input, shape index: {}]
  %s1 = inlined_call_operand.vmem [shape: bf16[3,800,512], index: 1, kind: input, shape index: {}]
  %s2 = inlined_call_operand.vmem [shape: f32[1,512], index: 2, kind: input, shape index: {}]
  %s3 = inlined_call_operand.vmem [shape: bf16[16,512], index: 3, kind: output, shape index: {0}]
  %s4 = inlined_call_operand.vmem [shape: f32[1,1,512], index: 4, kind: output, shape index: {1}]
  %s5 = inlined_call_operand.vmem [shape: f32[1,1,512], index: 5, kind: output, shape index: {2}]
  %6 = xla_tuple %s3, %s4, %s5
  %s7 = sld [smem:[#allocation0]]
  $region141: #{conv_block.6} parent=0
    _
  %s9 = ssub.s32 1, %s7
  %s10 = scalar_select 0, %s9, %s7
  $region1: #{conv_block.6} parent=0
    #allocation3 [shape = 'u8[819200]{0}', space=vmem, size = 0xc8000, scoped, tag = 'input window, operand 1']
    #allocation4 [shape = 'u8[16384]{0}', space=vmem, size = 0x4000, scoped, tag = 'output window, operand 0']
    loop: start=0, step=1, limit=8
    $region2: #{conv_block.6} parent=1 // loop_pre_header
      _
    $region3: #{conv_block.6} parent=1 // loop_header
      %s12 = sphi 0, %s16
      %p13 = scmp.ge.s32.totalorder %s12, 8
      %s19 = sphi 0, %s38
      %s20 = sphi 0, %s34
      %s21 = sphi 0, %s30
      %s22 = sphi 0, %s19
      %s23 = sphi 0, %s20
      %s24 = sphi 0, %s21
      %s25 = sphi 0, %s22
      %s26 = sphi 0, %s23
      %s27 = sphi 0, %s24
      %s43 = sphi 0, %s45
      %s46 = sphi 0, %s43
      %s47 = sphi 0, %s46
      %s63 = sphi 0, %s47
      %s71 = sphi 0, %s73
      %s74 = sphi 0, %s71
      %s75 = sphi 0, %s74
      %s91 = sphi 0, %s75
      %s97 = sphi 0, %s99
      %s100 = sphi 0, %s97
      %s101 = sphi 0, %s100
      %s117 = sphi 0, %s101
      %s125 = sphi 0, %s127
      %s128 = sphi 0, %s125
      %s129 = sphi 0, %s128
      %s145 = sphi 0, %s129
      %s153 = sphi 0, %s155
      %s156 = sphi 0, %s153
      %s157 = sphi 0, %s156
      %s173 = sphi 0, %s157
      %s181 = sphi 0, %s183
      %s184 = sphi 0, %s181
      %s185 = sphi 0, %s184
      %s201 = sphi 0, %s185
    $region4: #{conv_block.6} parent=1 // loop_header_branch
      %15 = sbr.rel (%p13) target = $region8
    $region5: #{conv_block.6} parent=1 // loop_body
      %s17 = ssub.s32 %s12, 1
      %s18 = ssub.s32 %s12, 2
      %s28 = sadd.s32 1, %s21
      %p29 = scmp.ge.s32.totalorder %s28, 3
      %s30 = scalar_select %p29, 0, %s28
      %s31 = sadd.s32 1, %s20
      %s32 = scalar_select %p29, %s31, %s20
      %p33 = scmp.ge.s32.totalorder %s32, 2
      %s34 = scalar_select %p33, 0, %s32
      %s35 = sadd.s32 1, %s19
      %s36 = scalar_select %p33, %s35, %s19
      %p37 = scmp.ge.s32.totalorder %s36, 1
      %s38 = scalar_select %p37, 0, %s36
      %s39 = ssub.s32 %s21, %s30
      %s40 = ssub.s32 %s19, %s38
      %s41 = sor.u32 %s39, %s40
      %p42 = scmp.eq.s32.totalorder %s41, 0
      %s44 = sadd.s32 %s43, 1
      %s45 = scalar_select %p42, %s43, %s44
      %p48 = pneg %p42
      %p49 = scmp.eq.s32.totalorder %s12, 5
      %p50 = por %p48, %p49
      %p51 = scmp.ne.s32.totalorder %s43, %s46
      %p52 = scmp.eq.s32.totalorder %s12, 0
      %p53 = por %p51, %p52
      %p54 = scmp.ne.s32.totalorder %s43, %s46
      %p55 = scmp.eq.s32.totalorder %s17, 5
      %p56 = por %p54, %p55
      %p57 = scmp.ne.s32.totalorder %s46, %s47
      %p58 = scmp.eq.s32.totalorder %s17, 0
      %p59 = por %p57, %p58
      %p60 = scmp.ne.s32.totalorder %s46, %s47
      %p61 = scmp.eq.s32.totalorder %s18, 5
      %p62 = por %p60, %p61
      %p64 = scmp.ne.s32.totalorder %s47, %s63
      %p65 = scmp.eq.s32.totalorder %s18, 0
      %p66 = por %p64, %p65
      %s67 = ssub.s32 %s21, %s30
      %s68 = ssub.s32 %s20, %s34
      %s69 = sor.u32 %s67, %s68
      %p70 = scmp.eq.s32.totalorder %s69, 0
      %s72 = sadd.s32 %s71, 1
      %s73 = scalar_select %p70, %s71, %s72
      %p76 = pneg %p70
      %p77 = scmp.eq.s32.totalorder %s12, 5
      %p78 = por %p76, %p77
      %p79 = scmp.ne.s32.totalorder %s71, %s74
      %p80 = scmp.eq.s32.totalorder %s12, 0
      %p81 = por %p79, %p80
      %p82 = scmp.ne.s32.totalorder %s71, %s74
      %p83 = scmp.eq.s32.totalorder %s17, 5
      %p84 = por %p82, %p83
      %p85 = scmp.ne.s32.totalorder %s74, %s75
      %p86 = scmp.eq.s32.totalorder %s17, 0
      %p87 = por %p85, %p86
      %p88 = scmp.ne.s32.totalorder %s74, %s75
      %p89 = scmp.eq.s32.totalorder %s18, 5
      %p90 = por %p88, %p89
      %p92 = scmp.ne.s32.totalorder %s75, %s91
      %p93 = scmp.eq.s32.totalorder %s18, 0
      %p94 = por %p92, %p93
      %s95 = ssub.s32 %s20, %s34
      %p96 = scmp.eq.s32.totalorder %s95, 0
      %s98 = sadd.s32 %s97, 1
      %s99 = scalar_select %p96, %s97, %s98
      %p102 = pneg %p96
      %p103 = scmp.eq.s32.totalorder %s12, 5
      %p104 = por %p102, %p103
      %p105 = scmp.ne.s32.totalorder %s97, %s100
      %p106 = scmp.eq.s32.totalorder %s12, 0
      %p107 = por %p105, %p106
      %p108 = scmp.ne.s32.totalorder %s97, %s100
      %p109 = scmp.eq.s32.totalorder %s17, 5
      %p110 = por %p108, %p109
      %p111 = scmp.ne.s32.totalorder %s100, %s101
      %p112 = scmp.eq.s32.totalorder %s17, 0
      %p113 = por %p111, %p112
      %p114 = scmp.ne.s32.totalorder %s100, %s101
      %p115 = scmp.eq.s32.totalorder %s18, 5
      %p116 = por %p114, %p115
      %p118 = scmp.ne.s32.totalorder %s101, %s117
      %p119 = scmp.eq.s32.totalorder %s18, 0
      %p120 = por %p118, %p119
      %s121 = ssub.s32 %s19, %s38
      %s122 = ssub.s32 %s20, %s34
      %s123 = sor.u32 %s121, %s122
      %p124 = scmp.eq.s32.totalorder %s123, 0
      %s126 = sadd.s32 %s125, 1
      %s127 = scalar_select %p124, %s125, %s126
      %p130 = pneg %p124
      %p131 = scmp.eq.s32.totalorder %s12, 5
      %p132 = por %p130, %p131
      %p133 = scmp.ne.s32.totalorder %s125, %s128
      %p134 = scmp.eq.s32.totalorder %s12, 0
      %p135 = por %p133, %p134
      %p136 = scmp.ne.s32.totalorder %s125, %s128
      %p137 = scmp.eq.s32.totalorder %s17, 5
      %p138 = por %p136, %p137
      %p139 = scmp.ne.s32.totalorder %s128, %s129
      %p140 = scmp.eq.s32.totalorder %s17, 0
      %p141 = por %p139, %p140
      %p142 = scmp.ne.s32.totalorder %s128, %s129
      %p143 = scmp.eq.s32.totalorder %s18, 5
      %p144 = por %p142, %p143
      %p146 = scmp.ne.s32.totalorder %s129, %s145
      %p147 = scmp.eq.s32.totalorder %s18, 0
      %p148 = por %p146, %p147
      %s149 = ssub.s32 %s19, %s38
      %s150 = ssub.s32 %s20, %s34
      %s151 = sor.u32 %s149, %s150
      %p152 = scmp.eq.s32.totalorder %s151, 0
      %s154 = sadd.s32 %s153, 1
      %s155 = scalar_select %p152, %s153, %s154
      %p158 = pneg %p152
      %p159 = scmp.eq.s32.totalorder %s12, 5
      %p160 = por %p158, %p159
      %p161 = scmp.ne.s32.totalorder %s153, %s156
      %p162 = scmp.eq.s32.totalorder %s12, 0
      %p163 = por %p161, %p162
      %p164 = scmp.ne.s32.totalorder %s153, %s156
      %p165 = scmp.eq.s32.totalorder %s17, 5
      %p166 = por %p164, %p165
      %p167 = scmp.ne.s32.totalorder %s156, %s157
      %p168 = scmp.eq.s32.totalorder %s17, 0
      %p169 = por %p167, %p168
      %p170 = scmp.ne.s32.totalorder %s156, %s157
      %p171 = scmp.eq.s32.totalorder %s18, 5
      %p172 = por %p170, %p171
      %p174 = scmp.ne.s32.totalorder %s157, %s173
      %p175 = scmp.eq.s32.totalorder %s18, 0
      %p176 = por %p174, %p175
      %s177 = ssub.s32 %s19, %s38
      %s178 = ssub.s32 %s20, %s34
      %s179 = sor.u32 %s177, %s178
      %p180 = scmp.eq.s32.totalorder %s179, 0
      %s182 = sadd.s32 %s181, 1
      %s183 = scalar_select %p180, %s181, %s182
      %p186 = pneg %p180
      %p187 = scmp.eq.s32.totalorder %s12, 5
      %p188 = por %p186, %p187
      %p189 = scmp.ne.s32.totalorder %s181, %s184
      %p190 = scmp.eq.s32.totalorder %s12, 0
      %p191 = por %p189, %p190
      %p192 = scmp.ne.s32.totalorder %s181, %s184
      %p193 = scmp.eq.s32.totalorder %s17, 5
      %p194 = por %p192, %p193
      %p195 = scmp.ne.s32.totalorder %s184, %s185
      %p196 = scmp.eq.s32.totalorder %s17, 0
      %p197 = por %p195, %p196
      %p198 = scmp.ne.s32.totalorder %s184, %s185
      %p199 = scmp.eq.s32.totalorder %s18, 5
      %p200 = por %p198, %p199
      %p202 = scmp.ne.s32.totalorder %s185, %s201
      %p203 = scmp.eq.s32.totalorder %s18, 0
      %p204 = por %p202, %p203
      %p205 = scmp.le.s32.totalorder 1, %s12
      %p206 = scmp.lt.s32.totalorder %s12, 7
      %p207 = pnand %p205, %p206
      %p208 = pneg %p207
      // Predicated region
      $region9: #{conv_block.6} parent=5 // pred_check
        _
      $region10: #{conv_block.6} parent=5 // pred_check_branch
        %210 = sbr.rel (%p207) target = $region12
      $region11: #{conv_block.6} parent=5 // pred_region
        %s211 = ssub.s32 %s12, 1
      $region12: #{conv_block.6} parent=5 // pred_fallthru
        _
      %p212 = scmp.lt.s32.totalorder %s12, 6
      // Predicated region
      $region13: #{conv_block.6} parent=5 // pred_check
        %p213 = pneg %p212
      $region14: #{conv_block.6} parent=5 // pred_check_branch
        %215 = sbr.rel (%p213) target = $region16
      $region15: #{conv_block.6} parent=5 // pred_region
        // Predicated region
        $region17: #{conv_block.6} parent=15 // pred_check
          %p216 = pneg %p53
        $region18: #{conv_block.6} parent=15 // pred_check_branch
          %218 = sbr.rel (%p216) target = $region20
        $region19: #{conv_block.6} parent=15 // pred_region
          %s219 = smul.u32 2, %s19
          %p220 = scmp.lt.s32.totalorder %s21, 2
          %s221 = scalar_select %p220, %s21, 2
          %p222 = scmp.lt.s32.totalorder %s219, 1
          %s223 = scalar_select %p222, %s219, 1
          %s224 = smul.addr %s223, 7
          %s225 = smul.addr %s221, 14
          %s226 = sadd.s32 %s224, %s225
          %s227 = smul.addr %s226, 4
          %s228 = scalar_lea.vmem %s0, %s227
          %s229 = smul.u32 2, %s19
        $region20: #{conv_block.6} parent=15 // pred_fallthru
          _
        // Predicated region
        $region21: #{conv_block.6} parent=15 // pred_check
          %p230 = pneg %p81
        $region22: #{conv_block.6} parent=15 // pred_check_branch
          %232 = sbr.rel (%p230) target = $region24
        $region23: #{conv_block.6} parent=15 // pred_region
          %s233 = sand.u32 %s71, 1
          %s234 = sand.u32 %s71, 1
          %s235 = smul.addr %s234, 800
          %s236 = scalar_lea.vmem [#allocation3], %s235
          %s237 = smul.u32 2, %s20
          %s238 = smul.addr %s21, 400
          %s239 = sadd.s32 %s237, %s238
          %s240 = smul.addr %s239, 4
          %s241 = scalar_lea.vmem %s1, %s240
          // Predicated region
          $region25: #{conv_block.6} parent=23 // pred_check
            _
          $region26: #{conv_block.6} parent=23 // pred_check_branch
            %243 = sbr.rel (0) target = $region28
          $region27: #{conv_block.6} parent=23 // pred_region
            // Predicated region
            $region29: #{conv_block.6} parent=27 // pred_check
              _
            $region30: #{conv_block.6} parent=27 // pred_check_branch
              %245 = sbr.rel (0) target = $region32
            $region31: #{conv_block.6} parent=27 // pred_region
              // Predicated region
              $region44: #{conv_block.6} parent=31 // pred_check
                _
              $region45: #{conv_block.6} parent=31 // pred_check_branch
                %459 = sbr.rel (0) target = $region47
              $region46: #{conv_block.6} parent=31 // pred_region
                loop: start=0, step=1, limit=1
                $region48: #{conv_block.6} parent=46 // loop_pre_header
                  _
                $region49: #{conv_block.6} parent=46 // loop_header
                  %s461 = sphi 0, %s465
                  %p462 = scmp.ge.s32.totalorder %s461, 1
                  %s466 = sphi %s241, %s241
                  %s467 = sphi %s236, %s236
                $region50: #{conv_block.6} parent=46 // loop_header_branch
                  %464 = sbr.rel (%p462) target = $region54
                $region51: #{conv_block.6} parent=46 // loop_body
                  %v468 = vld [vmem:[%s466] sm:$0xff]
                  %469 = vst [vmem:[%s467] sm:$0xff] %v468
                  %v470 = vld [vmem:[%s466 + $0x10] sm:$0xff]
                  %471 = vst [vmem:[%s467 + $0x8] sm:$0xff] %v470
                  %v472 = vld [vmem:[%s466 + $0x20] sm:$0xff]
                  %473 = vst [vmem:[%s467 + $0x10] sm:$0xff] %v472
                  %v474 = vld [vmem:[%s466 + $0x30] sm:$0xff]
                  %475 = vst [vmem:[%s467 + $0x18] sm:$0xff] %v474
                  %v476 = vld [vmem:[%s466 + $0x40] sm:$0xff]
                  %477 = vst [vmem:[%s467 + $0x20] sm:$0xff] %v476
                  %v478 = vld [vmem:[%s466 + $0x50] sm:$0xff]
                  %479 = vst [vmem:[%s467 + $0x28] sm:$0xff] %v478
                  %v480 = vld [vmem:[%s466 + $0x60] sm:$0xff]
                  %481 = vst [vmem:[%s467 + $0x30] sm:$0xff] %v480
                  %v482 = vld [vmem:[%s466 + $0x70] sm:$0xff]
                  %483 = vst [vmem:[%s467 + $0x38] sm:$0xff] %v482
                  %v484 = vld [vmem:[%s466 + $0x80] sm:$0xff]
                  %485 = vst [vmem:[%s467 + $0x40] sm:$0xff] %v484
                  %v486 = vld [vmem:[%s466 + $0x90] sm:$0xff]
                  %487 = vst [vmem:[%s467 + $0x48] sm:$0xff] %v486
                  %v488 = vld [vmem:[%s466 + $0xa0] sm:$0xff]
                  %489 = vst [vmem:[%s467 + $0x50] sm:$0xff] %v488
                  %v490 = vld [vmem:[%s466 + $0xb0] sm:$0xff]
                  %491 = vst [vmem:[%s467 + $0x58] sm:$0xff] %v490
                  %v492 = vld [vmem:[%s466 + $0xc0] sm:$0xff]
                  %493 = vst [vmem:[%s467 + $0x60] sm:$0xff] %v492
                  %v494 = vld [vmem:[%s466 + $0xd0] sm:$0xff]
                  %495 = vst [vmem:[%s467 + $0x68] sm:$0xff] %v494
                  %v496 = vld [vmem:[%s466 + $0xe0] sm:$0xff]
                  %497 = vst [vmem:[%s467 + $0x70] sm:$0xff] %v496
                  %v498 = vld [vmem:[%s466 + $0xf0] sm:$0xff]
                  %499 = vst [vmem:[%s467 + $0x78] sm:$0xff] %v498
                  %v500 = vld [vmem:[%s466 + $0x100] sm:$0xff]
                  %501 = vst [vmem:[%s467 + $0x80] sm:$0xff] %v500
                  %v502 = vld [vmem:[%s466 + $0x110] sm:$0xff]
                  %503 = vst [vmem:[%s467 + $0x88] sm:$0xff] %v502
                  %v504 = vld [vmem:[%s466 + $0x120] sm:$0xff]
                  %505 = vst [vmem:[%s467 + $0x90] sm:$0xff] %v504
                  %v506 = vld [vmem:[%s466 + $0x130] sm:$0xff]
                  %507 = vst [vmem:[%s467 + $0x98] sm:$0xff] %v506
                  %v508 = vld [vmem:[%s466 + $0x140] sm:$0xff]
                  %509 = vst [vmem:[%s467 + $0xa0] sm:$0xff] %v508
                  %v510 = vld [vmem:[%s466 + $0x150] sm:$0xff]
                  %511 = vst [vmem:[%s467 + $0xa8] sm:$0xff] %v510
                  %v512 = vld [vmem:[%s466 + $0x160] sm:$0xff]
                  %513 = vst [vmem:[%s467 + $0xb0] sm:$0xff] %v512
                  %v514 = vld [vmem:[%s466 + $0x170] sm:$0xff]
                  %515 = vst [vmem:[%s467 + $0xb8] sm:$0xff] %v514
                  %v516 = vld [vmem:[%s466 + $0x180] sm:$0xff]
                  %517 = vst [vmem:[%s467 + $0xc0] sm:$0xff] %v516
                  %v518 = vld [vmem:[%s466 + $0x190] sm:$0xff]
                  %519 = vst [vmem:[%s467 + $0xc8] sm:$0xff] %v518
                  %v520 = vld [vmem:[%s466 + $0x1a0] sm:$0xff]
                  %521 = vst [vmem:[%s467 + $0xd0] sm:$0xff] %v520
                  %v522 = vld [vmem:[%s466 + $0x1b0] sm:$0xff]
                  %523 = vst [vmem:[%s467 + $0xd8] sm:$0xff] %v522
                  %v524 = vld [vmem:[%s466 + $0x1c0] sm:$0xff]
                  %525 = vst [vmem:[%s467 + $0xe0] sm:$0xff] %v524
                  %v526 = vld [vmem:[%s466 + $0x1d0] sm:$0xff]
                  %527 = vst [vmem:[%s467 + $0xe8] sm:$0xff] %v526
                  %v528 = vld [vmem:[%s466 + $0x1e0] sm:$0xff]
                  %529 = vst [vmem:[%s467 + $0xf0] sm:$0xff] %v528
                  %v530 = vld [vmem:[%s466 + $0x1f0] sm:$0xff]
                  %531 = vst [vmem:[%s467 + $0xf8] sm:$0xff] %v530
                  %v532 = vld [vmem:[%s466 + $0x200] sm:$0xff]
                  %533 = vst [vmem:[%s467 + $0x100] sm:$0xff] %v532
                  %v534 = vld [vmem:[%s466 + $0x210] sm:$0xff]
                  %535 = vst [vmem:[%s467 + $0x108] sm:$0xff] %v534
                  %v536 = vld [vmem:[%s466 + $0x220] sm:$0xff]
                  %537 = vst [vmem:[%s467 + $0x110] sm:$0xff] %v536
                  %v538 = vld [vmem:[%s466 + $0x230] sm:$0xff]
                  %539 = vst [vmem:[%s467 + $0x118] sm:$0xff] %v538
                  %v540 = vld [vmem:[%s466 + $0x240] sm:$0xff]
                  %541 = vst [vmem:[%s467 + $0x120] sm:$0xff] %v540
                  %v542 = vld [vmem:[%s466 + $0x250] sm:$0xff]
                  %543 = vst [vmem:[%s467 + $0x128] sm:$0xff] %v542
                  %v544 = vld [vmem:[%s466 + $0x260] sm:$0xff]
                  %545 = vst [vmem:[%s467 + $0x130] sm:$0xff] %v544
                  %v546 = vld [vmem:[%s466 + $0x270] sm:$0xff]
                  %547 = vst [vmem:[%s467 + $0x138] sm:$0xff] %v546
                  %v548 = vld [vmem:[%s466 + $0x280] sm:$0xff]
                  %549 = vst [vmem:[%s467 + $0x140] sm:$0xff] %v548
                  %v550 = vld [vmem:[%s466 + $0x290] sm:$0xff]
                  %551 = vst [vmem:[%s467 + $0x148] sm:$0xff] %v550
                  %v552 = vld [vmem:[%s466 + $0x2a0] sm:$0xff]
                  %553 = vst [vmem:[%s467 + $0x150] sm:$0xff] %v552
                  %v554 = vld [vmem:[%s466 + $0x2b0] sm:$0xff]
                  %555 = vst [vmem:[%s467 + $0x158] sm:$0xff] %v554
                  %v556 = vld [vmem:[%s466 + $0x2c0] sm:$0xff]
                  %557 = vst [vmem:[%s467 + $0x160] sm:$0xff] %v556
                  %v558 = vld [vmem:[%s466 + $0x2d0] sm:$0xff]
                  %559 = vst [vmem:[%s467 + $0x168] sm:$0xff] %v558
                  %v560 = vld [vmem:[%s466 + $0x2e0] sm:$0xff]
                  %561 = vst [vmem:[%s467 + $0x170] sm:$0xff] %v560
                  %v562 = vld [vmem:[%s466 + $0x2f0] sm:$0xff]
                  %563 = vst [vmem:[%s467 + $0x178] sm:$0xff] %v562
                  %v564 = vld [vmem:[%s466 + $0x300] sm:$0xff]
                  %565 = vst [vmem:[%s467 + $0x180] sm:$0xff] %v564
                  %v566 = vld [vmem:[%s466 + $0x310] sm:$0xff]
                  %567 = vst [vmem:[%s467 + $0x188] sm:$0xff] %v566
                  %v568 = vld [vmem:[%s466 + $0x320] sm:$0xff]
                  %569 = vst [vmem:[%s467 + $0x190] sm:$0xff] %v568
                  %v570 = vld [vmem:[%s466 + $0x330] sm:$0xff]
                  %571 = vst [vmem:[%s467 + $0x198] sm:$0xff] %v570
                  %v572 = vld [vmem:[%s466 + $0x340] sm:$0xff]
                  %573 = vst [vmem:[%s467 + $0x1a0] sm:$0xff] %v572
                  %v574 = vld [vmem:[%s466 + $0x350] sm:$0xff]
                  %575 = vst [vmem:[%s467 + $0x1a8] sm:$0xff] %v574
                  %v576 = vld [vmem:[%s466 + $0x360] sm:$0xff]
                  %577 = vst [vmem:[%s467 + $0x1b0] sm:$0xff] %v576
                  %v578 = vld [vmem:[%s466 + $0x370] sm:$0xff]
                  %579 = vst [vmem:[%s467 + $0x1b8] sm:$0xff] %v578
                  %v580 = vld [vmem:[%s466 + $0x380] sm:$0xff]
                  %581 = vst [vmem:[%s467 + $0x1c0] sm:$0xff] %v580
                  %v582 = vld [vmem:[%s466 + $0x390] sm:$0xff]
                  %583 = vst [vmem:[%s467 + $0x1c8] sm:$0xff] %v582
                  %v584 = vld [vmem:[%s466 + $0x3a0] sm:$0xff]
                  %585 = vst [vmem:[%s467 + $0x1d0] sm:$0xff] %v584
                  %v586 = vld [vmem:[%s466 + $0x3b0] sm:$0xff]
                  %587 = vst [vmem:[%s467 + $0x1d8] sm:$0xff] %v586
                  %v588 = vld [vmem:[%s466 + $0x3c0] sm:$0xff]
                  %589 = vst [vmem:[%s467 + $0x1e0] sm:$0xff] %v588
                  %v590 = vld [vmem:[%s466 + $0x3d0] sm:$0xff]
                  %591 = vst [vmem:[%s467 + $0x1e8] sm:$0xff] %v590
                  %v592 = vld [vmem:[%s466 + $0x3e0] sm:$0xff]
                  %593 = vst [vmem:[%s467 + $0x1f0] sm:$0xff] %v592
                  %v594 = vld [vmem:[%s466 + $0x3f0] sm:$0xff]
                  %595 = vst [vmem:[%s467 + $0x1f8] sm:$0xff] %v594
                  %v596 = vld [vmem:[%s466 + $0x400] sm:$0xff]
                  %597 = vst [vmem:[%s467 + $0x200] sm:$0xff] %v596
                  %v598 = vld [vmem:[%s466 + $0x410] sm:$0xff]
                  %599 = vst [vmem:[%s467 + $0x208] sm:$0xff] %v598
                  %v600 = vld [vmem:[%s466 + $0x420] sm:$0xff]
                  %601 = vst [vmem:[%s467 + $0x210] sm:$0xff] %v600
                  %v602 = vld [vmem:[%s466 + $0x430] sm:$0xff]
                  %603 = vst [vmem:[%s467 + $0x218] sm:$0xff] %v602
                  %v604 = vld [vmem:[%s466 + $0x440] sm:$0xff]
                  %605 = vst [vmem:[%s467 + $0x220] sm:$0xff] %v604
                  %v606 = vld [vmem:[%s466 + $0x450] sm:$0xff]
                  %607 = vst [vmem:[%s467 + $0x228] sm:$0xff] %v606
                  %v608 = vld [vmem:[%s466 + $0x460] sm:$0xff]
                  %609 = vst [vmem:[%s467 + $0x230] sm:$0xff] %v608
                  %v610 = vld [vmem:[%s466 + $0x470] sm:$0xff]
                  %611 = vst [vmem:[%s467 + $0x238] sm:$0xff] %v610
                  %v612 = vld [vmem:[%s466 + $0x480] sm:$0xff]
                  %613 = vst [vmem:[%s467 + $0x240] sm:$0xff] %v612
                  %v614 = vld [vmem:[%s466 + $0x490] sm:$0xff]
                  %615 = vst [vmem:[%s467 + $0x248] sm:$0xff] %v614
                  %v616 = vld [vmem:[%s466 + $0x4a0] sm:$0xff]
                  %617 = vst [vmem:[%s467 + $0x250] sm:$0xff] %v616
                  %v618 = vld [vmem:[%s466 + $0x4b0] sm:$0xff]
                  %619 = vst [vmem:[%s467 + $0x258] sm:$0xff] %v618
                  %v620 = vld [vmem:[%s466 + $0x4c0] sm:$0xff]
                  %621 = vst [vmem:[%s467 + $0x260] sm:$0xff] %v620
                  %v622 = vld [vmem:[%s466 + $0x4d0] sm:$0xff]
                  %623 = vst [vmem:[%s467 + $0x268] sm:$0xff] %v622
                  %v624 = vld [vmem:[%s466 + $0x4e0] sm:$0xff]
                  %625 = vst [vmem:[%s467 + $0x270] sm:$0xff] %v624
                  %v626 = vld [vmem:[%s466 + $0x4f0] sm:$0xff]
                  %627 = vst [vmem:[%s467 + $0x278] sm:$0xff] %v626
                  %v628 = vld [vmem:[%s466 + $0x500] sm:$0xff]
                  %629 = vst [vmem:[%s467 + $0x280] sm:$0xff] %v628
                  %v630 = vld [vmem:[%s466 + $0x510] sm:$0xff]
                  %631 = vst [vmem:[%s467 + $0x288] sm:$0xff] %v630
                  %v632 = vld [vmem:[%s466 + $0x520] sm:$0xff]
                  %633 = vst [vmem:[%s467 + $0x290] sm:$0xff] %v632
                  %v634 = vld [vmem:[%s466 + $0x530] sm:$0xff]
                  %635 = vst [vmem:[%s467 + $0x298] sm:$0xff] %v634
                  %v636 = vld [vmem:[%s466 + $0x540] sm:$0xff]
                  %637 = vst [vmem:[%s467 + $0x2a0] sm:$0xff] %v636
                  %v638 = vld [vmem:[%s466 + $0x550] sm:$0xff]
                  %639 = vst [vmem:[%s467 + $0x2a8] sm:$0xff] %v638
                  %v640 = vld [vmem:[%s466 + $0x560] sm:$0xff]
                  %641 = vst [vmem:[%s467 + $0x2b0] sm:$0xff] %v640
                  %v642 = vld [vmem:[%s466 + $0x570] sm:$0xff]
                  %643 = vst [vmem:[%s467 + $0x2b8] sm:$0xff] %v642
                  %v644 = vld [vmem:[%s466 + $0x580] sm:$0xff]
                  %645 = vst [vmem:[%s467 + $0x2c0] sm:$0xff] %v644
                  %v646 = vld [vmem:[%s466 + $0x590] sm:$0xff]
                  %647 = vst [vmem:[%s467 + $0x2c8] sm:$0xff] %v646
                  %v648 = vld [vmem:[%s466 + $0x5a0] sm:$0xff]
                  %649 = vst [vmem:[%s467 + $0x2d0] sm:$0xff] %v648
                  %v650 = vld [vmem:[%s466 + $0x5b0] sm:$0xff]
                  %651 = vst [vmem:[%s467 + $0x2d8] sm:$0xff] %v650
                  %v652 = vld [vmem:[%s466 + $0x5c0] sm:$0xff]
                  %653 = vst [vmem:[%s467 + $0x2e0] sm:$0xff] %v652
                  %v654 = vld [vmem:[%s466 + $0x5d0] sm:$0xff]
                  %655 = vst [vmem:[%s467 + $0x2e8] sm:$0xff] %v654
                  %v656 = vld [vmem:[%s466 + $0x5e0] sm:$0xff]
                  %657 = vst [vmem:[%s467 + $0x2f0] sm:$0xff] %v656
                  %v658 = vld [vmem:[%s466 + $0x5f0] sm:$0xff]
                  %659 = vst [vmem:[%s467 + $0x2f8] sm:$0xff] %v658
                  %v660 = vld [vmem:[%s466 + $0x600] sm:$0xff]
                  %661 = vst [vmem:[%s467 + $0x300] sm:$0xff] %v660
                  %v662 = vld [vmem:[%s466 + $0x610] sm:$0xff]
                  %663 = vst [vmem:[%s467 + $0x308] sm:$0xff] %v662
                  %v664 = vld [vmem:[%s466 + $0x620] sm:$0xff]
                  %665 = vst [vmem:[%s467 + $0x310] sm:$0xff] %v664
                  %v666 = vld [vmem:[%s466 + $0x630] sm:$0xff]
                  %667 = vst [vmem:[%s467 + $0x318] sm:$0xff] %v666
                $region52: #{conv_block.6} parent=46 // loop_footer
                  %s465 = sadd.s32 1, %s461
                $region53: #{conv_block.6} parent=46 // loop_footer_branch
                  %460 = sbr.rel target = $region49
                $region54: #{conv_block.6} parent=46 // loop_exit
                  _
              $region47: #{conv_block.6} parent=31 // pred_fallthru
                _
              // Predicated region
              $region55: #{conv_block.6} parent=31 // pred_check
                _
              $region56: #{conv_block.6} parent=31 // pred_check_branch
                %669 = sbr.rel target = $region58
              $region57: #{conv_block.6} parent=31 // pred_region
                _
              $region58: #{conv_block.6} parent=31 // pred_fallthru
                _
            $region32: #{conv_block.6} parent=27 // pred_fallthru
              _
            // Predicated region
            $region33: #{conv_block.6} parent=27 // pred_check
              _
            $region34: #{conv_block.6} parent=27 // pred_check_branch
              %247 = sbr.rel target = $region36
            $region35: #{conv_block.6} parent=27 // pred_region
              %s249 = ssub.s32 256, 1
              loop: start=0, step=1, limit=1
              $region37: #{conv_block.6} parent=35 // loop_pre_header
                _
              $region38: #{conv_block.6} parent=35 // loop_header
                %s251 = sphi 0, %s255
                %p252 = scmp.ge.s32.totalorder %s251, 1
                %s256 = sphi %s241, %s241
                %s257 = sphi %s236, %s236
              $region39: #{conv_block.6} parent=35 // loop_header_branch
                %254 = sbr.rel (%p252) target = $region43
              $region40: #{conv_block.6} parent=35 // loop_body
                %v258 = vld [vmem:[%s256] sm:%s249]
                %259 = vst [vmem:[%s257] sm:%s249] %v258
                %v260 = vld [vmem:[%s256 + $0x10] sm:%s249]
                %261 = vst [vmem:[%s257 + $0x8] sm:%s249] %v260
                %v262 = vld [vmem:[%s256 + $0x20] sm:%s249]
                %263 = vst [vmem:[%s257 + $0x10] sm:%s249] %v262
                %v264 = vld [vmem:[%s256 + $0x30] sm:%s249]
                %265 = vst [vmem:[%s257 + $0x18] sm:%s249] %v264
                %v266 = vld [vmem:[%s256 + $0x40] sm:%s249]
                %267 = vst [vmem:[%s257 + $0x20] sm:%s249] %v266
                %v268 = vld [vmem:[%s256 + $0x50] sm:%s249]
                %269 = vst [vmem:[%s257 + $0x28] sm:%s249] %v268
                %v270 = vld [vmem:[%s256 + $0x60] sm:%s249]
                %271 = vst [vmem:[%s257 + $0x30] sm:%s249] %v270
                %v272 = vld [vmem:[%s256 + $0x70] sm:%s249]
                %273 = vst [vmem:[%s257 + $0x38] sm:%s249] %v272
                %v274 = vld [vmem:[%s256 + $0x80] sm:%s249]
                %275 = vst [vmem:[%s257 + $0x40] sm:%s249] %v274
                %v276 = vld [vmem:[%s256 + $0x90] sm:%s249]
                %277 = vst [vmem:[%s257 + $0x48] sm:%s249] %v276
                %v278 = vld [vmem:[%s256 + $0xa0] sm:%s249]
                %279 = vst [vmem:[%s257 + $0x50] sm:%s249] %v278
                %v280 = vld [vmem:[%s256 + $0xb0] sm:%s249]
                %281 = vst [vmem:[%s257 + $0x58] sm:%s249] %v280
                %v282 = vld [vmem:[%s256 + $0xc0] sm:%s249]
                %283 = vst [vmem:[%s257 + $0x60] sm:%s249] %v282
                %v284 = vld [vmem:[%s256 + $0xd0] sm:%s249]
                %285 = vst [vmem:[%s257 + $0x68] sm:%s249] %v284
                %v286 = vld [vmem:[%s256 + $0xe0] sm:%s249]
                %287 = vst [vmem:[%s257 + $0x70] sm:%s249] %v286
                %v288 = vld [vmem:[%s256 + $0xf0] sm:%s249]
                %289 = vst [vmem:[%s257 + $0x78] sm:%s249] %v288
                %v290 = vld [vmem:[%s256 + $0x100] sm:%s249]
                %291 = vst [vmem:[%s257 + $0x80] sm:%s249] %v290
                %v292 = vld [vmem:[%s256 + $0x110] sm:%s249]
                %293 = vst [vmem:[%s257 + $0x88] sm:%s249] %v292
                %v294 = vld [vmem:[%s256 + $0x120] sm:%s249]
                %295 = vst [vmem:[%s257 + $0x90] sm:%s249] %v294
                %v296 = vld [vmem:[%s256 + $0x130] sm:%s249]
                %297 = vst [vmem:[%s257 + $0x98] sm:%s249] %v296
                %v298 = vld [vmem:[%s256 + $0x140] sm:%s249]
                %299 = vst [vmem:[%s257 + $0xa0] sm:%s249] %v298
                %v300 = vld [vmem:[%s256 + $0x150] sm:%s249]
                %301 = vst [vmem:[%s257 + $0xa8] sm:%s249] %v300
                %v302 = vld [vmem:[%s256 + $0x160] sm:%s249]
                %303 = vst [vmem:[%s257 + $0xb0] sm:%s249] %v302
                %v304 = vld [vmem:[%s256 + $0x170] sm:%s249]
                %305 = vst [vmem:[%s257 + $0xb8] sm:%s249] %v304
                %v306 = vld [vmem:[%s256 + $0x180] sm:%s249]
                %307 = vst [vmem:[%s257 + $0xc0] sm:%s249] %v306
                %v308 = vld [vmem:[%s256 + $0x190] sm:%s249]
                %309 = vst [vmem:[%s257 + $0xc8] sm:%s249] %v308
                %v310 = vld [vmem:[%s256 + $0x1a0] sm:%s249]
                %311 = vst [vmem:[%s257 + $0xd0] sm:%s249] %v310
                %v312 = vld [vmem:[%s256 + $0x1b0] sm:%s249]
                %313 = vst [vmem:[%s257 + $0xd8] sm:%s249] %v312
                %v314 = vld [vmem:[%s256 + $0x1c0] sm:%s249]
                %315 = vst [vmem:[%s257 + $0xe0] sm:%s249] %v314
                %v316 = vld [vmem:[%s256 + $0x1d0] sm:%s249]
                %317 = vst [vmem:[%s257 + $0xe8] sm:%s249] %v316
                %v318 = vld [vmem:[%s256 + $0x1e0] sm:%s249]
                %319 = vst [vmem:[%s257 + $0xf0] sm:%s249] %v318
                %v320 = vld [vmem:[%s256 + $0x1f0] sm:%s249]
                %321 = vst [vmem:[%s257 + $0xf8] sm:%s249] %v320
                %v322 = vld [vmem:[%s256 + $0x200] sm:%s249]
                %323 = vst [vmem:[%s257 + $0x100] sm:%s249] %v322
                %v324 = vld [vmem:[%s256 + $0x210] sm:%s249]
                %325 = vst [vmem:[%s257 + $0x108] sm:%s249] %v324
                %v326 = vld [vmem:[%s256 + $0x220] sm:%s249]
                %327 = vst [vmem:[%s257 + $0x110] sm:%s249] %v326
                %v328 = vld [vmem:[%s256 + $0x230] sm:%s249]
                %329 = vst [vmem:[%s257 + $0x118] sm:%s249] %v328
                %v330 = vld [vmem:[%s256 + $0x240] sm:%s249]
                %331 = vst [vmem:[%s257 + $0x120] sm:%s249] %v330
                %v332 = vld [vmem:[%s256 + $0x250] sm:%s249]
                %333 = vst [vmem:[%s257 + $0x128] sm:%s249] %v332
                %v334 = vld [vmem:[%s256 + $0x260] sm:%s249]
                %335 = vst [vmem:[%s257 + $0x130] sm:%s249] %v334
                %v336 = vld [vmem:[%s256 + $0x270] sm:%s249]
                %337 = vst [vmem:[%s257 + $0x138] sm:%s249] %v336
                %v338 = vld [vmem:[%s256 + $0x280] sm:%s249]
                %339 = vst [vmem:[%s257 + $0x140] sm:%s249] %v338
                %v340 = vld [vmem:[%s256 + $0x290] sm:%s249]
                %341 = vst [vmem:[%s257 + $0x148] sm:%s249] %v340
                %v342 = vld [vmem:[%s256 + $0x2a0] sm:%s249]
                %343 = vst [vmem:[%s257 + $0x150] sm:%s249] %v342
                %v344 = vld [vmem:[%s256 + $0x2b0] sm:%s249]
                %345 = vst [vmem:[%s257 + $0x158] sm:%s249] %v344
                %v346 = vld [vmem:[%s256 + $0x2c0] sm:%s249]
                %347 = vst [vmem:[%s257 + $0x160] sm:%s249] %v346
                %v348 = vld [vmem:[%s256 + $0x2d0] sm:%s249]
                %349 = vst [vmem:[%s257 + $0x168] sm:%s249] %v348
                %v350 = vld [vmem:[%s256 + $0x2e0] sm:%s249]
                %351 = vst [vmem:[%s257 + $0x170] sm:%s249] %v350
                %v352 = vld [vmem:[%s256 + $0x2f0] sm:%s249]
                %353 = vst [vmem:[%s257 + $0x178] sm:%s249] %v352
                %v354 = vld [vmem:[%s256 + $0x300] sm:%s249]
                %355 = vst [vmem:[%s257 + $0x180] sm:%s249] %v354
                %v356 = vld [vmem:[%s256 + $0x310] sm:%s249]
                %357 = vst [vmem:[%s257 + $0x188] sm:%s249] %v356
                %v358 = vld [vmem:[%s256 + $0x320] sm:%s249]
                %359 = vst [vmem:[%s257 + $0x190] sm:%s249] %v358
                %v360 = vld [vmem:[%s256 + $0x330] sm:%s249]
                %361 = vst [vmem:[%s257 + $0x198] sm:%s249] %v360
                %v362 = vld [vmem:[%s256 + $0x340] sm:%s249]
                %363 = vst [vmem:[%s257 + $0x1a0] sm:%s249] %v362
                %v364 = vld [vmem:[%s256 + $0x350] sm:%s249]
                %365 = vst [vmem:[%s257 + $0x1a8] sm:%s249] %v364
                %v366 = vld [vmem:[%s256 + $0x360] sm:%s249]
                %367 = vst [vmem:[%s257 + $0x1b0] sm:%s249] %v366
                %v368 = vld [vmem:[%s256 + $0x370] sm:%s249]
                %369 = vst [vmem:[%s257 + $0x1b8] sm:%s249] %v368
                %v370 = vld [vmem:[%s256 + $0x380] sm:%s249]
                %371 = vst [vmem:[%s257 + $0x1c0] sm:%s249] %v370
                %v372 = vld [vmem:[%s256 + $0x390] sm:%s249]
                %373 = vst [vmem:[%s257 + $0x1c8] sm:%s249] %v372
                %v374 = vld [vmem:[%s256 + $0x3a0] sm:%s249]
                %375 = vst [vmem:[%s257 + $0x1d0] sm:%s249] %v374
                %v376 = vld [vmem:[%s256 + $0x3b0] sm:%s249]
                %377 = vst [vmem:[%s257 + $0x1d8] sm:%s249] %v376
                %v378 = vld [vmem:[%s256 + $0x3c0] sm:%s249]
                %379 = vst [vmem:[%s257 + $0x1e0] sm:%s249] %v378
                %v380 = vld [vmem:[%s256 + $0x3d0] sm:%s249]
                %381 = vst [vmem:[%s257 + $0x1e8] sm:%s249] %v380
                %v382 = vld [vmem:[%s256 + $0x3e0] sm:%s249]
                %383 = vst [vmem:[%s257 + $0x1f0] sm:%s249] %v382
                %v384 = vld [vmem:[%s256 + $0x3f0] sm:%s249]
                %385 = vst [vmem:[%s257 + $0x1f8] sm:%s249] %v384
                %v386 = vld [vmem:[%s256 + $0x400] sm:%s249]
                %387 = vst [vmem:[%s257 + $0x200] sm:%s249] %v386
                %v388 = vld [vmem:[%s256 + $0x410] sm:%s249]
                %389 = vst [vmem:[%s257 + $0x208] sm:%s249] %v388
                %v390 = vld [vmem:[%s256 + $0x420] sm:%s249]
                %391 = vst [vmem:[%s257 + $0x210] sm:%s249] %v390
                %v392 = vld [vmem:[%s256 + $0x430] sm:%s249]
                %393 = vst [vmem:[%s257 + $0x218] sm:%s249] %v392
                %v394 = vld [vmem:[%s256 + $0x440] sm:%s249]
                %395 = vst [vmem:[%s257 + $0x220] sm:%s249] %v394
                %v396 = vld [vmem:[%s256 + $0x450] sm:%s249]
                %397 = vst [vmem:[%s257 + $0x228] sm:%s249] %v396
                %v398 = vld [vmem:[%s256 + $0x460] sm:%s249]
                %399 = vst [vmem:[%s257 + $0x230] sm:%s249] %v398
                %v400 = vld [vmem:[%s256 + $0x470] sm:%s249]
                %401 = vst [vmem:[%s257 + $0x238] sm:%s249] %v400
                %v402 = vld [vmem:[%s256 + $0x480] sm:%s249]
                %403 = vst [vmem:[%s257 + $0x240] sm:%s249] %v402
                %v404 = vld [vmem:[%s256 + $0x490] sm:%s249]
                %405 = vst [vmem:[%s257 + $0x248] sm:%s249] %v404
                %v406 = vld [vmem:[%s256 + $0x4a0] sm:%s249]
                %407 = vst [vmem:[%s257 + $0x250] sm:%s249] %v406
                %v408 = vld [vmem:[%s256 + $0x4b0] sm:%s249]
                %409 = vst [vmem:[%s257 + $0x258] sm:%s249] %v408
                %v410 = vld [vmem:[%s256 + $0x4c0] sm:%s249]
                %411 = vst [vmem:[%s257 + $0x260] sm:%s249] %v410
                %v412 = vld [vmem:[%s256 + $0x4d0] sm:%s249]
                %413 = vst [vmem:[%s257 + $0x268] sm:%s249] %v412
                %v414 = vld [vmem:[%s256 + $0x4e0] sm:%s249]
                %415 = vst [vmem:[%s257 + $0x270] sm:%s249] %v414
                %v416 = vld [vmem:[%s256 + $0x4f0] sm:%s249]
                %417 = vst [vmem:[%s257 + $0x278] sm:%s249] %v416
                %v418 = vld [vmem:[%s256 + $0x500] sm:%s249]
                %419 = vst [vmem:[%s257 + $0x280] sm:%s249] %v418
                %v420 = vld [vmem:[%s256 + $0x510] sm:%s249]
                %421 = vst [vmem:[%s257 + $0x288] sm:%s249] %v420
                %v422 = vld [vmem:[%s256 + $0x520] sm:%s249]
                %423 = vst [vmem:[%s257 + $0x290] sm:%s249] %v422
                %v424 = vld [vmem:[%s256 + $0x530] sm:%s249]
                %425 = vst [vmem:[%s257 + $0x298] sm:%s249] %v424
                %v426 = vld [vmem:[%s256 + $0x540] sm:%s249]
                %427 = vst [vmem:[%s257 + $0x2a0] sm:%s249] %v426
                %v428 = vld [vmem:[%s256 + $0x550] sm:%s249]
                %429 = vst [vmem:[%s257 + $0x2a8] sm:%s249] %v428
                %v430 = vld [vmem:[%s256 + $0x560] sm:%s249]
                %431 = vst [vmem:[%s257 + $0x2b0] sm:%s249] %v430
                %v432 = vld [vmem:[%s256 + $0x570] sm:%s249]
                %433 = vst [vmem:[%s257 + $0x2b8] sm:%s249] %v432
                %v434 = vld [vmem:[%s256 + $0x580] sm:%s249]
                %435 = vst [vmem:[%s257 + $0x2c0] sm:%s249] %v434
                %v436 = vld [vmem:[%s256 + $0x590] sm:%s249]
                %437 = vst [vmem:[%s257 + $0x2c8] sm:%s249] %v436
                %v438 = vld [vmem:[%s256 + $0x5a0] sm:%s249]
                %439 = vst [vmem:[%s257 + $0x2d0] sm:%s249] %v438
                %v440 = vld [vmem:[%s256 + $0x5b0] sm:%s249]
                %441 = vst [vmem:[%s257 + $0x2d8] sm:%s249] %v440
                %v442 = vld [vmem:[%s256 + $0x5c0] sm:%s249]
                %443 = vst [vmem:[%s257 + $0x2e0] sm:%s249] %v442
                %v444 = vld [vmem:[%s256 + $0x5d0] sm:%s249]
                %445 = vst [vmem:[%s257 + $0x2e8] sm:%s249] %v444
                %v446 = vld [vmem:[%s256 + $0x5e0] sm:%s249]
                %447 = vst [vmem:[%s257 + $0x2f0] sm:%s249] %v446
                %v448 = vld [vmem:[%s256 + $0x5f0] sm:%s249]
                %449 = vst [vmem:[%s257 + $0x2f8] sm:%s249] %v448
                %v450 = vld [vmem:[%s256 + $0x600] sm:%s249]
                %451 = vst [vmem:[%s257 + $0x300] sm:%s249] %v450
                %v452 = vld [vmem:[%s256 + $0x610] sm:%s249]
                %453 = vst [vmem:[%s257 + $0x308] sm:%s249] %v452
                %v454 = vld [vmem:[%s256 + $0x620] sm:%s249]
                %455 = vst [vmem:[%s257 + $0x310] sm:%s249] %v454
                %v456 = vld [vmem:[%s256 + $0x630] sm:%s249]
                %457 = vst [vmem:[%s257 + $0x318] sm:%s249] %v456
              $region41: #{conv_block.6} parent=35 // loop_footer
                %s255 = sadd.s32 1, %s251
              $region42: #{conv_block.6} parent=35 // loop_footer_branch
                %250 = sbr.rel target = $region38
              $region43: #{conv_block.6} parent=35 // loop_exit
                _
            $region36: #{conv_block.6} parent=27 // pred_fallthru
              _
          $region28: #{conv_block.6} parent=23 // pred_fallthru
            _
          %670 = vnop
        $region24: #{conv_block.6} parent=15 // pred_fallthru
          _
        // Predicated region
        $region59: #{conv_block.6} parent=15 // pred_check
          %p671 = pneg %p107
        $region60: #{conv_block.6} parent=15 // pred_check_branch
          %673 = sbr.rel (%p671) target = $region62
        $region61: #{conv_block.6} parent=15 // pred_region
          %s674 = smul.u32 2, %s20
          %p675 = scmp.lt.s32.totalorder %s674, 3
          %s676 = scalar_select %p675, %s674, 3
          %s677 = scalar_lea.vmem %s2, %s676
          %s678 = smul.u32 2, %s20
        $region62: #{conv_block.6} parent=15 // pred_fallthru
          _
      $region16: #{conv_block.6} parent=5 // pred_fallthru
        _
      %p679 = scmp.le.s32.totalorder 1, %s12
      %p680 = scmp.lt.s32.totalorder %s12, 7
      %p681 = pnand %p679, %p680
      %p682 = pneg %p681
      // Predicated region
      $region63: #{conv_block.6} parent=5 // pred_check
        _
      $region64: #{conv_block.6} parent=5 // pred_check_branch
        %684 = sbr.rel (%p681) target = $region66
      $region65: #{conv_block.6} parent=5 // pred_region
        %s685 = ssub.s32 %s12, 1
        %s686 = sand.u32 %s74, 1
        %s687 = sand.u32 %s74, 1
        %s688 = smul.addr %s687, 800
        %s689 = scalar_lea.vmem [#allocation3], %s688
        // Predicated region
        $region67: #{conv_block.6} parent=65 // pred_check
          %p690 = pneg %p87
        $region68: #{conv_block.6} parent=65 // pred_check_branch
          %692 = sbr.rel (%p690) target = $region70
        $region69: #{conv_block.6} parent=65 // pred_region
          _
        $region70: #{conv_block.6} parent=65 // pred_fallthru
          _
        %s693 = smul.u32 2, %s22
        %p694 = scmp.lt.s32.totalorder %s24, 2
        %s695 = scalar_select %p694, %s24, 2
        %p696 = scmp.lt.s32.totalorder %s693, 1
        %s697 = scalar_select %p696, %s693, 1
        %s698 = smul.addr %s697, 7
        %s699 = smul.addr %s695, 14
        %s700 = sadd.s32 %s698, %s699
        %s701 = smul.addr %s700, 4
        %s702 = scalar_lea.vmem %s0, %s701
        %p703 = pneg %p59
        %p704 = pneg %p56
        %s705 = sand.u32 %s74, 1
        %s706 = sand.u32 %s74, 1
        %s707 = smul.addr %s706, 800
        %s708 = scalar_lea.vmem [#allocation3], %s707
        %p709 = pneg %p87
        %p710 = pneg %p84
        %s711 = smul.u32 2, %s23
        %p712 = scmp.lt.s32.totalorder %s711, 3
        %s713 = scalar_select %p712, %s711, 3
        %s714 = scalar_lea.vmem %s2, %s713
        %p715 = pneg %p113
        %p716 = pneg %p110
        %p717 = pneg %p141
        %p718 = pneg %p138
        %s719 = sand.u32 %s128, 1
        %s720 = sand.u32 %s128, 1
        %s721 = smul.addr %s720, 16
        %s722 = scalar_lea.vmem [#allocation4], %s721
        %p723 = pneg %p169
        %p724 = pneg %p166
        %s725 = smul.u32 2, %s23
        %p726 = scmp.lt.s32.totalorder %s22, 0
        %s727 = scalar_select %p726, %s22, 0
        %p728 = scmp.lt.s32.totalorder %s725, 3
        %s729 = scalar_select %p728, %s725, 3
        %s730 = smul.addr %s727, 4
        %s731 = sadd.s32 %s729, %s730
        %s732 = scalar_lea.vmem %s4, %s731
        %p733 = pneg %p197
        %p734 = pneg %p194
        %s735 = smul.u32 2, %s23
        %p736 = scmp.lt.s32.totalorder %s22, 0
        %s737 = scalar_select %p736, %s22, 0
        %p738 = scmp.lt.s32.totalorder %s735, 3
        %s739 = scalar_select %p738, %s735, 3
        %s740 = smul.addr %s737, 4
        %s741 = sadd.s32 %s739, %s740
        %s742 = scalar_lea.vmem %s5, %s741
        %s743 = smul.u32 2, %s22
        %p744 = scmp.lt.s32.totalorder %s24, 2
        %s745 = scalar_select %p744, %s24, 2
        %p746 = scmp.lt.s32.totalorder %s743, 1
        %s747 = scalar_select %p746, %s743, 1
        %s748 = smul.addr %s747, 7
        %s749 = smul.addr %s745, 14
        %s750 = sadd.s32 %s748, %s749
        %s751 = smul.addr %s750, 4
        %s752 = scalar_lea.vmem %s0, %s751
        %s753 = smul.u32 2, %s22
        %s754 = smul.u32 2, %s23
        %s755 = smul.u32 2, %s23
        %p756 = scmp.lt.s32.totalorder %s755, 3
        %s757 = scalar_select %p756, %s755, 3
        %s758 = scalar_lea.vmem %s2, %s757
        %s759 = smul.u32 2, %s23
        %s760 = smul.u32 2, %s22
        %s761 = smul.u32 2, %s23
        %s762 = smul.u32 2, %s23
        %p763 = scmp.lt.s32.totalorder %s22, 0
        %s764 = scalar_select %p763, %s22, 0
        %p765 = scmp.lt.s32.totalorder %s762, 3
        %s766 = scalar_select %p765, %s762, 3
        %s767 = smul.addr %s764, 4
        %s768 = sadd.s32 %s766, %s767
        %s769 = scalar_lea.vmem %s4, %s768
        %s770 = smul.u32 2, %s23
        %s771 = smul.u32 2, %s23
        %p772 = scmp.lt.s32.totalorder %s22, 0
        %s773 = scalar_select %p772, %s22, 0
        %p774 = scmp.lt.s32.totalorder %s771, 3
        %s775 = scalar_select %p774, %s771, 3
        %s776 = smul.addr %s773, 4
        %s777 = sadd.s32 %s775, %s776
        %s778 = scalar_lea.vmem %s5, %s777
        %s779 = smul.u32 2, %s23
        %p781 = scmp.eq.s32.totalorder %s24, 0
        // Predicated region
        $region71: #{conv_block.6} parent=65 // pred_check
          %p782 = pneg %p781
        $region72: #{conv_block.6} parent=65 // pred_check_branch
          %784 = sbr.rel (%p782) target = $region74
        $region73: #{conv_block.6} parent=65 // pred_region
          %785 = vst [vmem:[#allocation2] sm:$0xff] 0.0
          %786 = vst [vmem:[#allocation2 + $0x8] sm:$0xff] 0.0
          %787 = vst [vmem:[#allocation2 + $0x10] sm:$0xff] 0.0
          %788 = vst [vmem:[#allocation2 + $0x18] sm:$0xff] 0.0
        $region74: #{conv_block.6} parent=65 // pred_fallthru
          _
        %v789 = vld [vmem:[#allocation2] sm:$0xff]
        %v790 = vld [vmem:[#allocation2 + $0x8] sm:$0xff]
        %v791 = vld [vmem:[#allocation2 + $0x10] sm:$0xff]
        %v792 = vld [vmem:[#allocation2 + $0x18] sm:$0xff]
        %v793 = vld [vmem:[%s752] sm:$0xff]
        %v794 = vld [vmem:[%s752 + $0x8] sm:$0xff]
        %v795 = vld [vmem:[%s752 + $0x10] sm:$0xff]
        %v796 = vld [vmem:[%s752 + $0x18] sm:$0xf]
        %v797 = vld [vmem:[%s752 + $0x1c] sm:$0xff]
        %v798 = vld [vmem:[%s752 + $0x24] sm:$0xff]
        %v799 = vld [vmem:[%s752 + $0x2c] sm:$0xff]
        %v800 = vld [vmem:[%s752 + $0x34] sm:$0xf]
        %v801 = vld [vmem:[%s689] sm:$0xff]
        %v802 = vld [vmem:[%s689 + $0x8] sm:$0xff]
        %v803 = vld [vmem:[%s689 + $0x10] sm:$0xff]
        %v804 = vld [vmem:[%s689 + $0x18] sm:$0xff]
        %v805 = vld [vmem:[%s689 + $0x20] sm:$0xff]
        %v806 = vld [vmem:[%s689 + $0x28] sm:$0xff]
        %v807 = vld [vmem:[%s689 + $0x30] sm:$0xff]
        %v808 = vld [vmem:[%s689 + $0x38] sm:$0xff]
        %v809 = vld [vmem:[%s689 + $0x40] sm:$0xff]
        %v810 = vld [vmem:[%s689 + $0x48] sm:$0xff]
        %v811 = vld [vmem:[%s689 + $0x50] sm:$0xff]
        %v812 = vld [vmem:[%s689 + $0x58] sm:$0xff]
        %v813 = vld [vmem:[%s689 + $0x60] sm:$0xff]
        %v814 = vld [vmem:[%s689 + $0x68] sm:$0xff]
        %v815 = vld [vmem:[%s689 + $0x70] sm:$0xff]
        %v816 = vld [vmem:[%s689 + $0x78] sm:$0xff]
        %v817 = vld [vmem:[%s689 + $0x80] sm:$0xff]
        %v818 = vld [vmem:[%s689 + $0x88] sm:$0xff]
        %v819 = vld [vmem:[%s689 + $0x90] sm:$0xff]
        %v820 = vld [vmem:[%s689 + $0x98] sm:$0xff]
        %v821 = vld [vmem:[%s689 + $0xa0] sm:$0xff]
        %v822 = vld [vmem:[%s689 + $0xa8] sm:$0xff]
        %v823 = vld [vmem:[%s689 + $0xb0] sm:$0xff]
        %v824 = vld [vmem:[%s689 + $0xb8] sm:$0xff]
        %v825 = vld [vmem:[%s689 + $0xc0] sm:$0xff]
        %v826 = vld [vmem:[%s689 + $0xc8] sm:$0xff]
        %v827 = vld [vmem:[%s689 + $0xd0] sm:$0xff]
        %v828 = vld [vmem:[%s689 + $0xd8] sm:$0xff]
        %v829 = vld [vmem:[%s689 + $0xe0] sm:$0xff]
        %v830 = vld [vmem:[%s689 + $0xe8] sm:$0xff]
        %v831 = vld [vmem:[%s689 + $0xf0] sm:$0xff]
        %v832 = vld [vmem:[%s689 + $0xf8] sm:$0xff]
        %v833 = vld [vmem:[%s689 + $0x100] sm:$0xff]
        %v834 = vld [vmem:[%s689 + $0x108] sm:$0xff]
        %v835 = vld [vmem:[%s689 + $0x110] sm:$0xff]
        %v836 = vld [vmem:[%s689 + $0x118] sm:$0xff]
        %v837 = vld [vmem:[%s689 + $0x120] sm:$0xff]
        %v838 = vld [vmem:[%s689 + $0x128] sm:$0xff]
        %v839 = vld [vmem:[%s689 + $0x130] sm:$0xff]
        %v840 = vld [vmem:[%s689 + $0x138] sm:$0xff]
        %v841 = vld [vmem:[%s689 + $0x140] sm:$0xff]
        %v842 = vld [vmem:[%s689 + $0x148] sm:$0xff]
        %v843 = vld [vmem:[%s689 + $0x150] sm:$0xff]
        %v844 = vld [vmem:[%s689 + $0x158] sm:$0xff]
        %v845 = vld [vmem:[%s689 + $0x160] sm:$0xff]
        %v846 = vld [vmem:[%s689 + $0x168] sm:$0xff]
        %v847 = vld [vmem:[%s689 + $0x170] sm:$0xff]
        %v848 = vld [vmem:[%s689 + $0x178] sm:$0xff]
        %v849 = vld [vmem:[%s689 + $0x180] sm:$0xff]
        %v850 = vld [vmem:[%s689 + $0x188] sm:$0xff]
        %v851 = vld [vmem:[%s689 + $0x190] sm:$0xff]
        %v852 = vld [vmem:[%s689 + $0x198] sm:$0xff]
        %v853 = vld [vmem:[%s689 + $0x1a0] sm:$0xff]
        %v854 = vld [vmem:[%s689 + $0x1a8] sm:$0xff]
        %v855 = vld [vmem:[%s689 + $0x1b0] sm:$0xff]
        %v856 = vld [vmem:[%s689 + $0x1b8] sm:$0xff]
        %v857 = vld [vmem:[%s689 + $0x1c0] sm:$0xff]
        %v858 = vld [vmem:[%s689 + $0x1c8] sm:$0xff]
        %v859 = vld [vmem:[%s689 + $0x1d0] sm:$0xff]
        %v860 = vld [vmem:[%s689 + $0x1d8] sm:$0xff]
        %v861 = vld [vmem:[%s689 + $0x1e0] sm:$0xff]
        %v862 = vld [vmem:[%s689 + $0x1e8] sm:$0xff]
        %v863 = vld [vmem:[%s689 + $0x1f0] sm:$0xff]
        %v864 = vld [vmem:[%s689 + $0x1f8] sm:$0xff]
        %v865 = vld [vmem:[%s689 + $0x200] sm:$0xff]
        %v866 = vld [vmem:[%s689 + $0x208] sm:$0xff]
        %v867 = vld [vmem:[%s689 + $0x210] sm:$0xff]
        %v868 = vld [vmem:[%s689 + $0x218] sm:$0xff]
        %v869 = vld [vmem:[%s689 + $0x220] sm:$0xff]
        %v870 = vld [vmem:[%s689 + $0x228] sm:$0xff]
        %v871 = vld [vmem:[%s689 + $0x230] sm:$0xff]
        %v872 = vld [vmem:[%s689 + $0x238] sm:$0xff]
        %v873 = vld [vmem:[%s689 + $0x240] sm:$0xff]
        %v874 = vld [vmem:[%s689 + $0x248] sm:$0xff]
        %v875 = vld [vmem:[%s689 + $0x250] sm:$0xff]
        %v876 = vld [vmem:[%s689 + $0x258] sm:$0xff]
        %v877 = vld [vmem:[%s689 + $0x260] sm:$0xff]
        %v878 = vld [vmem:[%s689 + $0x268] sm:$0xff]
        %v879 = vld [vmem:[%s689 + $0x270] sm:$0xff]
        %v880 = vld [vmem:[%s689 + $0x278] sm:$0xff]
        %v881 = vld [vmem:[%s689 + $0x280] sm:$0xff]
        %v882 = vld [vmem:[%s689 + $0x288] sm:$0xff]
        %v883 = vld [vmem:[%s689 + $0x290] sm:$0xff]
        %v884 = vld [vmem:[%s689 + $0x298] sm:$0xff]
        %v885 = vld [vmem:[%s689 + $0x2a0] sm:$0xff]
        %v886 = vld [vmem:[%s689 + $0x2a8] sm:$0xff]
        %v887 = vld [vmem:[%s689 + $0x2b0] sm:$0xff]
        %v888 = vld [vmem:[%s689 + $0x2b8] sm:$0xff]
        %v889 = vld [vmem:[%s689 + $0x2c0] sm:$0xff]
        %v890 = vld [vmem:[%s689 + $0x2c8] sm:$0xff]
        %v891 = vld [vmem:[%s689 + $0x2d0] sm:$0xff]
        %v892 = vld [vmem:[%s689 + $0x2d8] sm:$0xff]
        %v893 = vld [vmem:[%s689 + $0x2e0] sm:$0xff]
        %v894 = vld [vmem:[%s689 + $0x2e8] sm:$0xff]
        %v895 = vld [vmem:[%s689 + $0x2f0] sm:$0xff]
        %v896 = vld [vmem:[%s689 + $0x2f8] sm:$0xff]
        %v897 = vld [vmem:[%s689 + $0x300] sm:$0xff]
        %v898 = vld [vmem:[%s689 + $0x308] sm:$0xff]
        %v899 = vld [vmem:[%s689 + $0x310] sm:$0xff]
        %v900 = vld [vmem:[%s689 + $0x318] sm:$0xff]
        %v909 = vunpack.c.l.b16 %v793
        %v910 = vunpack.c.h.b16 %v793
        %v911 = vunpack.c.l.b16 %v794
        %v912 = vunpack.c.h.b16 %v794
        %v913 = vunpack.c.l.b16 %v795
        %v914 = vunpack.c.h.b16 %v795
        %v915 = vunpack.c.l.b16 %v796
        %v916 = vunpack.c.l.b16 %v797
        %v917 = vunpack.c.h.b16 %v797
        %v918 = vunpack.c.l.b16 %v798
        %v919 = vunpack.c.h.b16 %v798
        %v920 = vunpack.c.l.b16 %v799
        %v921 = vunpack.c.h.b16 %v799
        %v922 = vunpack.c.l.b16 %v800
        %v923 = vpack.c.b16 %v916, %v909
        %v924 = vpack.c.b16 %v917, %v910
        %v925 = vpack.c.b16 %v918, %v911
        %v926 = vpack.c.b16 %v919, %v912
        %v927 = vpack.c.b16 %v920, %v913
        %v928 = vpack.c.b16 %v921, %v914
        %v929 = vpack.c.b16 %v922, %v915
        %v1036 = vunpack.c.l.b16 %v801
        %v1037 = vunpack.c.h.b16 %v801
        %v1038 = vunpack.c.l.b16 %v802
        %v1039 = vunpack.c.h.b16 %v802
        %v1040 = vunpack.c.l.b16 %v803
        %v1041 = vunpack.c.h.b16 %v803
        %v1042 = vunpack.c.l.b16 %v804
        %v1043 = vunpack.c.h.b16 %v804
        %v1044 = vunpack.c.l.b16 %v805
        %v1045 = vunpack.c.h.b16 %v805
        %v1046 = vunpack.c.l.b16 %v806
        %v1047 = vunpack.c.h.b16 %v806
        %v1048 = vunpack.c.l.b16 %v807
        %v1049 = vunpack.c.h.b16 %v807
        %v1050 = vunpack.c.l.b16 %v808
        %v1051 = vunpack.c.h.b16 %v808
        %v1052 = vunpack.c.l.b16 %v809
        %v1053 = vunpack.c.h.b16 %v809
        %v1054 = vunpack.c.l.b16 %v810
        %v1055 = vunpack.c.h.b16 %v810
        %v1056 = vunpack.c.l.b16 %v811
        %v1057 = vunpack.c.h.b16 %v811
        %v1058 = vunpack.c.l.b16 %v812
        %v1059 = vunpack.c.h.b16 %v812
        %v1060 = vunpack.c.l.b16 %v813
        %v1061 = vunpack.c.h.b16 %v813
        %v1062 = vunpack.c.l.b16 %v814
        %v1063 = vunpack.c.h.b16 %v814
        %v1064 = vunpack.c.l.b16 %v815
        %v1065 = vunpack.c.h.b16 %v815
        %v1066 = vunpack.c.l.b16 %v816
        %v1067 = vunpack.c.h.b16 %v816
        %v1068 = vunpack.c.l.b16 %v817
        %v1069 = vunpack.c.h.b16 %v817
        %v1070 = vunpack.c.l.b16 %v818
        %v1071 = vunpack.c.h.b16 %v818
        %v1072 = vunpack.c.l.b16 %v819
        %v1073 = vunpack.c.h.b16 %v819
        %v1074 = vunpack.c.l.b16 %v820
        %v1075 = vunpack.c.h.b16 %v820
        %v1076 = vunpack.c.l.b16 %v821
        %v1077 = vunpack.c.h.b16 %v821
        %v1078 = vunpack.c.l.b16 %v822
        %v1079 = vunpack.c.h.b16 %v822
        %v1080 = vunpack.c.l.b16 %v823
        %v1081 = vunpack.c.h.b16 %v823
        %v1082 = vunpack.c.l.b16 %v824
        %v1083 = vunpack.c.h.b16 %v824
        %v1084 = vunpack.c.l.b16 %v825
        %v1085 = vunpack.c.h.b16 %v825
        %v1086 = vunpack.c.l.b16 %v826
        %v1087 = vunpack.c.h.b16 %v826
        %v1088 = vunpack.c.l.b16 %v827
        %v1089 = vunpack.c.h.b16 %v827
        %v1090 = vunpack.c.l.b16 %v828
        %v1091 = vunpack.c.h.b16 %v828
        %v1092 = vunpack.c.l.b16 %v829
        %v1093 = vunpack.c.h.b16 %v829
        %v1094 = vunpack.c.l.b16 %v830
        %v1095 = vunpack.c.h.b16 %v830
        %v1096 = vunpack.c.l.b16 %v831
        %v1097 = vunpack.c.h.b16 %v831
        %v1098 = vunpack.c.l.b16 %v832
        %v1099 = vunpack.c.h.b16 %v832
        %v1100 = vunpack.c.l.b16 %v833
        %v1101 = vunpack.c.h.b16 %v833
        %v1102 = vunpack.c.l.b16 %v834
        %v1103 = vunpack.c.h.b16 %v834
        %v1104 = vunpack.c.l.b16 %v835
        %v1105 = vunpack.c.h.b16 %v835
        %v1106 = vunpack.c.l.b16 %v836
        %v1107 = vunpack.c.h.b16 %v836
        %v1108 = vunpack.c.l.b16 %v837
        %v1109 = vunpack.c.h.b16 %v837
        %v1110 = vunpack.c.l.b16 %v838
        %v1111 = vunpack.c.h.b16 %v838
        %v1112 = vunpack.c.l.b16 %v839
        %v1113 = vunpack.c.h.b16 %v839
        %v1114 = vunpack.c.l.b16 %v840
        %v1115 = vunpack.c.h.b16 %v840
        %v1116 = vunpack.c.l.b16 %v841
        %v1117 = vunpack.c.h.b16 %v841
        %v1118 = vunpack.c.l.b16 %v842
        %v1119 = vunpack.c.h.b16 %v842
        %v1120 = vunpack.c.l.b16 %v843
        %v1121 = vunpack.c.h.b16 %v843
        %v1122 = vunpack.c.l.b16 %v844
        %v1123 = vunpack.c.h.b16 %v844
        %v1124 = vunpack.c.l.b16 %v845
        %v1125 = vunpack.c.h.b16 %v845
        %v1126 = vunpack.c.l.b16 %v846
        %v1127 = vunpack.c.h.b16 %v846
        %v1128 = vunpack.c.l.b16 %v847
        %v1129 = vunpack.c.h.b16 %v847
        %v1130 = vunpack.c.l.b16 %v848
        %v1131 = vunpack.c.h.b16 %v848
        %v1132 = vunpack.c.l.b16 %v849
        %v1133 = vunpack.c.h.b16 %v849
        %v1134 = vunpack.c.l.b16 %v850
        %v1135 = vunpack.c.h.b16 %v850
        %v1136 = vunpack.c.l.b16 %v851
        %v1137 = vunpack.c.h.b16 %v851
        %v1138 = vunpack.c.l.b16 %v852
        %v1139 = vunpack.c.h.b16 %v852
        %v1140 = vunpack.c.l.b16 %v853
        %v1141 = vunpack.c.h.b16 %v853
        %v1142 = vunpack.c.l.b16 %v854
        %v1143 = vunpack.c.h.b16 %v854
        %v1144 = vunpack.c.l.b16 %v855
        %v1145 = vunpack.c.h.b16 %v855
        %v1146 = vunpack.c.l.b16 %v856
        %v1147 = vunpack.c.h.b16 %v856
        %v1148 = vunpack.c.l.b16 %v857
        %v1149 = vunpack.c.h.b16 %v857
        %v1150 = vunpack.c.l.b16 %v858
        %v1151 = vunpack.c.h.b16 %v858
        %v1152 = vunpack.c.l.b16 %v859
        %v1153 = vunpack.c.h.b16 %v859
        %v1154 = vunpack.c.l.b16 %v860
        %v1155 = vunpack.c.h.b16 %v860
        %v1156 = vunpack.c.l.b16 %v861
        %v1157 = vunpack.c.h.b16 %v861
        %v1158 = vunpack.c.l.b16 %v862
        %v1159 = vunpack.c.h.b16 %v862
        %v1160 = vunpack.c.l.b16 %v863
        %v1161 = vunpack.c.h.b16 %v863
        %v1162 = vunpack.c.l.b16 %v864
        %v1163 = vunpack.c.h.b16 %v864
        %v1164 = vunpack.c.l.b16 %v865
        %v1165 = vunpack.c.h.b16 %v865
        %v1166 = vunpack.c.l.b16 %v866
        %v1167 = vunpack.c.h.b16 %v866
        %v1168 = vunpack.c.l.b16 %v867
        %v1169 = vunpack.c.h.b16 %v867
        %v1170 = vunpack.c.l.b16 %v868
        %v1171 = vunpack.c.h.b16 %v868
        %v1172 = vunpack.c.l.b16 %v869
        %v1173 = vunpack.c.h.b16 %v869
        %v1174 = vunpack.c.l.b16 %v870
        %v1175 = vunpack.c.h.b16 %v870
        %v1176 = vunpack.c.l.b16 %v871
        %v1177 = vunpack.c.h.b16 %v871
        %v1178 = vunpack.c.l.b16 %v872
        %v1179 = vunpack.c.h.b16 %v872
        %v1180 = vunpack.c.l.b16 %v873
        %v1181 = vunpack.c.h.b16 %v873
        %v1182 = vunpack.c.l.b16 %v874
        %v1183 = vunpack.c.h.b16 %v874
        %v1184 = vunpack.c.l.b16 %v875
        %v1185 = vunpack.c.h.b16 %v875
        %v1186 = vunpack.c.l.b16 %v876
        %v1187 = vunpack.c.h.b16 %v876
        %v1188 = vunpack.c.l.b16 %v877
        %v1189 = vunpack.c.h.b16 %v877
        %v1190 = vunpack.c.l.b16 %v878
        %v1191 = vunpack.c.h.b16 %v878
        %v1192 = vunpack.c.l.b16 %v879
        %v1193 = vunpack.c.h.b16 %v879
        %v1194 = vunpack.c.l.b16 %v880
        %v1195 = vunpack.c.h.b16 %v880
        %v1196 = vunpack.c.l.b16 %v881
        %v1197 = vunpack.c.h.b16 %v881
        %v1198 = vunpack.c.l.b16 %v882
        %v1199 = vunpack.c.h.b16 %v882
        %v1200 = vunpack.c.l.b16 %v883
        %v1201 = vunpack.c.h.b16 %v883
        %v1202 = vunpack.c.l.b16 %v884
        %v1203 = vunpack.c.h.b16 %v884
        %v1204 = vunpack.c.l.b16 %v885
        %v1205 = vunpack.c.h.b16 %v885
        %v1206 = vunpack.c.l.b16 %v886
        %v1207 = vunpack.c.h.b16 %v886
        %v1208 = vunpack.c.l.b16 %v887
        %v1209 = vunpack.c.h.b16 %v887
        %v1210 = vunpack.c.l.b16 %v888
        %v1211 = vunpack.c.h.b16 %v888
        %v1212 = vunpack.c.l.b16 %v889
        %v1213 = vunpack.c.h.b16 %v889
        %v1214 = vunpack.c.l.b16 %v890
        %v1215 = vunpack.c.h.b16 %v890
        %v1216 = vunpack.c.l.b16 %v891
        %v1217 = vunpack.c.h.b16 %v891
        %v1218 = vunpack.c.l.b16 %v892
        %v1219 = vunpack.c.h.b16 %v892
        %v1220 = vunpack.c.l.b16 %v893
        %v1221 = vunpack.c.h.b16 %v893
        %v1222 = vunpack.c.l.b16 %v894
        %v1223 = vunpack.c.h.b16 %v894
        %v1224 = vunpack.c.l.b16 %v895
        %v1225 = vunpack.c.h.b16 %v895
        %v1226 = vunpack.c.l.b16 %v896
        %v1227 = vunpack.c.h.b16 %v896
        %v1228 = vunpack.c.l.b16 %v897
        %v1229 = vunpack.c.h.b16 %v897
        %v1230 = vunpack.c.l.b16 %v898
        %v1231 = vunpack.c.h.b16 %v898
        %v1232 = vunpack.c.l.b16 %v899
        %v1233 = vunpack.c.h.b16 %v899
        %v1234 = vunpack.c.l.b16 %v900
        %v1235 = vunpack.c.h.b16 %v900
        %v1236 = vpack.c.b16 %v1038, %v1036
        %v1237 = vpack.c.b16 %v1039, %v1037
        %v1238 = vpack.c.b16 %v1042, %v1040
        %v1239 = vpack.c.b16 %v1043, %v1041
        %v1240 = vpack.c.b16 %v1046, %v1044
        %v1241 = vpack.c.b16 %v1047, %v1045
        %v1242 = vpack.c.b16 %v1050, %v1048
        %v1243 = vpack.c.b16 %v1051, %v1049
        %v1244 = vpack.c.b16 %v1054, %v1052
        %v1245 = vpack.c.b16 %v1055, %v1053
        %v1246 = vpack.c.b16 %v1058, %v1056
        %v1247 = vpack.c.b16 %v1059, %v1057
        %v1248 = vpack.c.b16 %v1062, %v1060
        %v1249 = vpack.c.b16 %v1063, %v1061
        %v1250 = vpack.c.b16 %v1066, %v1064
        %v1251 = vpack.c.b16 %v1067, %v1065
        %v1252 = vpack.c.b16 %v1070, %v1068
        %v1253 = vpack.c.b16 %v1071, %v1069
        %v1254 = vpack.c.b16 %v1074, %v1072
        %v1255 = vpack.c.b16 %v1075, %v1073
        %v1256 = vpack.c.b16 %v1078, %v1076
        %v1257 = vpack.c.b16 %v1079, %v1077
        %v1258 = vpack.c.b16 %v1082, %v1080
        %v1259 = vpack.c.b16 %v1083, %v1081
        %v1260 = vpack.c.b16 %v1086, %v1084
        %v1261 = vpack.c.b16 %v1087, %v1085
        %v1262 = vpack.c.b16 %v1090, %v1088
        %v1263 = vpack.c.b16 %v1091, %v1089
        %v1264 = vpack.c.b16 %v1094, %v1092
        %v1265 = vpack.c.b16 %v1095, %v1093
        %v1266 = vpack.c.b16 %v1098, %v1096
        %v1267 = vpack.c.b16 %v1099, %v1097
        %v1268 = vpack.c.b16 %v1102, %v1100
        %v1269 = vpack.c.b16 %v1103, %v1101
        %v1270 = vpack.c.b16 %v1106, %v1104
        %v1271 = vpack.c.b16 %v1107, %v1105
        %v1272 = vpack.c.b16 %v1110, %v1108
        %v1273 = vpack.c.b16 %v1111, %v1109
        %v1274 = vpack.c.b16 %v1114, %v1112
        %v1275 = vpack.c.b16 %v1115, %v1113
        %v1276 = vpack.c.b16 %v1118, %v1116
        %v1277 = vpack.c.b16 %v1119, %v1117
        %v1278 = vpack.c.b16 %v1122, %v1120
        %v1279 = vpack.c.b16 %v1123, %v1121
        %v1280 = vpack.c.b16 %v1126, %v1124
        %v1281 = vpack.c.b16 %v1127, %v1125
        %v1282 = vpack.c.b16 %v1130, %v1128
        %v1283 = vpack.c.b16 %v1131, %v1129
        %v1284 = vpack.c.b16 %v1134, %v1132
        %v1285 = vpack.c.b16 %v1135, %v1133
        %v1286 = vpack.c.b16 %v1138, %v1136
        %v1287 = vpack.c.b16 %v1139, %v1137
        %v1288 = vpack.c.b16 %v1142, %v1140
        %v1289 = vpack.c.b16 %v1143, %v1141
        %v1290 = vpack.c.b16 %v1146, %v1144
        %v1291 = vpack.c.b16 %v1147, %v1145
        %v1292 = vpack.c.b16 %v1150, %v1148
        %v1293 = vpack.c.b16 %v1151, %v1149
        %v1294 = vpack.c.b16 %v1154, %v1152
        %v1295 = vpack.c.b16 %v1155, %v1153
        %v1296 = vpack.c.b16 %v1158, %v1156
        %v1297 = vpack.c.b16 %v1159, %v1157
        %v1298 = vpack.c.b16 %v1162, %v1160
        %v1299 = vpack.c.b16 %v1163, %v1161
        %v1300 = vpack.c.b16 %v1166, %v1164
        %v1301 = vpack.c.b16 %v1167, %v1165
        %v1302 = vpack.c.b16 %v1170, %v1168
        %v1303 = vpack.c.b16 %v1171, %v1169
        %v1304 = vpack.c.b16 %v1174, %v1172
        %v1305 = vpack.c.b16 %v1175, %v1173
        %v1306 = vpack.c.b16 %v1178, %v1176
        %v1307 = vpack.c.b16 %v1179, %v1177
        %v1308 = vpack.c.b16 %v1182, %v1180
        %v1309 = vpack.c.b16 %v1183, %v1181
        %v1310 = vpack.c.b16 %v1186, %v1184
        %v1311 = vpack.c.b16 %v1187, %v1185
        %v1312 = vpack.c.b16 %v1190, %v1188
        %v1313 = vpack.c.b16 %v1191, %v1189
        %v1314 = vpack.c.b16 %v1194, %v1192
        %v1315 = vpack.c.b16 %v1195, %v1193
        %v1316 = vpack.c.b16 %v1198, %v1196
        %v1317 = vpack.c.b16 %v1199, %v1197
        %v1318 = vpack.c.b16 %v1202, %v1200
        %v1319 = vpack.c.b16 %v1203, %v1201
        %v1320 = vpack.c.b16 %v1206, %v1204
        %v1321 = vpack.c.b16 %v1207, %v1205
        %v1322 = vpack.c.b16 %v1210, %v1208
        %v1323 = vpack.c.b16 %v1211, %v1209
        %v1324 = vpack.c.b16 %v1214, %v1212
        %v1325 = vpack.c.b16 %v1215, %v1213
        %v1326 = vpack.c.b16 %v1218, %v1216
        %v1327 = vpack.c.b16 %v1219, %v1217
        %v1328 = vpack.c.b16 %v1222, %v1220
        %v1329 = vpack.c.b16 %v1223, %v1221
        %v1330 = vpack.c.b16 %v1226, %v1224
        %v1331 = vpack.c.b16 %v1227, %v1225
        %v1332 = vpack.c.b16 %v1230, %v1228
        %v1333 = vpack.c.b16 %v1231, %v1229
        %v1334 = vpack.c.b16 %v1234, %v1232
        %v1335 = vpack.c.b16 %v1235, %v1233
        %vm1436 = vcmask 261120
        %v1438 = vsel %vm1436, %v929, 0
        %1440 = vmatprep.subr.bf16.mxu0 %v1251
        %1441 = vmatpush1.bf16.msra.mxu0 %v1250
        %1442 = vmatprep.subr.bf16.mxu0 %v1249
        %1443 = vmatpush1.bf16.msra.mxu0 %v1248
        %1444 = vmatprep.subr.bf16.mxu0 %v1247
        %1445 = vmatpush1.bf16.msra.mxu0 %v1246
        %1446 = vmatprep.subr.bf16.mxu0 %v1245
        %1447 = vmatpush1.bf16.msra.mxu0 %v1244
        %1448 = vmatprep.subr.bf16.mxu0 %v1243
        %1449 = vmatpush1.bf16.msra.mxu0 %v1242
        %1450 = vmatprep.subr.bf16.mxu0 %v1241
        %1451 = vmatpush1.bf16.msra.mxu0 %v1240
        %1452 = vmatprep.subr.bf16.mxu0 %v1239
        %1453 = vmatpush1.bf16.msra.mxu0 %v1238
        %1454 = vmatprep.subr.bf16.mxu0 %v1237
        %1455 = vmatpush1.bf16.msra.mxu0 %v1236
        %1456 = vmatprep.subr.bf16.mxu0 %v1267
        %1457 = vmatpush2.bf16.msra.mxu0 %v1266
        %1458 = vmatprep.subr.bf16.mxu0 %v1265
        %1459 = vmatpush2.bf16.msra.mxu0 %v1264
        %1460 = vmatprep.subr.bf16.mxu0 %v1263
        %1461 = vmatpush2.bf16.msra.mxu0 %v1262
        %1462 = vmatprep.subr.bf16.mxu0 %v1261
        %1463 = vmatpush2.bf16.msra.mxu0 %v1260
        %1464 = vmatprep.subr.bf16.mxu0 %v1259
        %1465 = vmatpush2.bf16.msra.mxu0 %v1258
        %1466 = vmatprep.subr.bf16.mxu0 %v1257
        %1467 = vmatpush2.bf16.msra.mxu0 %v1256
        %1468 = vmatprep.subr.bf16.mxu0 %v1255
        %1469 = vmatpush2.bf16.msra.mxu0 %v1254
        %1470 = vmatprep.subr.bf16.mxu0 %v1253
        %1471 = vmatpush2.bf16.msra.mxu0 %v1252
        %1472 = vmatprep.mubr.bf16.mxu0 %v924
        %1473 = vmatmul.mubr.bf16.gmra.mxu0 %v923
        %v1474 = vpop.f32.mrf.mxu0
        %v1475 = vadd.f32 0.0, %v1474
        %v1476 = vpop.f32.mrf.mxu0
        %v1477 = vadd.f32 0.0, %v1476
        %v1478 = vpop.f32.mrf.mxu0
        %v1479 = vadd.f32 0.0, %v1478
        %v1480 = vpop.f32.mrf.mxu0
        %v1481 = vadd.f32 0.0, %v1480
        %1482 = vdwg.mxu0
        %1483 = vmatprep.subr.bf16.mxu0 %v1283
        %1484 = vmatpush1.bf16.msra.mxu0 %v1282
        %1485 = vmatprep.subr.bf16.mxu0 %v1281
        %1486 = vmatpush1.bf16.msra.mxu0 %v1280
        %1487 = vmatprep.subr.bf16.mxu0 %v1279
        %1488 = vmatpush1.bf16.msra.mxu0 %v1278
        %1489 = vmatprep.subr.bf16.mxu0 %v1277
        %1490 = vmatpush1.bf16.msra.mxu0 %v1276
        %1491 = vmatprep.subr.bf16.mxu0 %v1275
        %1492 = vmatpush1.bf16.msra.mxu0 %v1274
        %1493 = vmatprep.subr.bf16.mxu0 %v1273
        %1494 = vmatpush1.bf16.msra.mxu0 %v1272
        %1495 = vmatprep.subr.bf16.mxu0 %v1271
        %1496 = vmatpush1.bf16.msra.mxu0 %v1270
        %1497 = vmatprep.subr.bf16.mxu0 %v1269
        %1498 = vmatpush1.bf16.msra.mxu0 %v1268
        %1499 = vmatprep.subr.bf16.mxu0 %v1299
        %1500 = vmatpush2.bf16.msra.mxu0 %v1298
        %1501 = vmatprep.subr.bf16.mxu0 %v1297
        %1502 = vmatpush2.bf16.msra.mxu0 %v1296
        %1503 = vmatprep.subr.bf16.mxu0 %v1295
        %1504 = vmatpush2.bf16.msra.mxu0 %v1294
        %1505 = vmatprep.subr.bf16.mxu0 %v1293
        %1506 = vmatpush2.bf16.msra.mxu0 %v1292
        %1507 = vmatprep.subr.bf16.mxu0 %v1291
        %1508 = vmatpush2.bf16.msra.mxu0 %v1290
        %1509 = vmatprep.subr.bf16.mxu0 %v1289
        %1510 = vmatpush2.bf16.msra.mxu0 %v1288
        %1511 = vmatprep.subr.bf16.mxu0 %v1287
        %1512 = vmatpush2.bf16.msra.mxu0 %v1286
        %1513 = vmatprep.subr.bf16.mxu0 %v1285
        %1514 = vmatpush2.bf16.msra.mxu0 %v1284
        %1515 = vmatprep.mubr.bf16.mxu0 %v926
        %1516 = vmatmul.mubr.bf16.gmra.mxu0 %v925
        %v1517 = vpop.f32.mrf.mxu0
        %v1518 = vadd.f32 %v1475, %v1517
        %v1519 = vpop.f32.mrf.mxu0
        %v1520 = vadd.f32 %v1477, %v1519
        %v1521 = vpop.f32.mrf.mxu0
        %v1522 = vadd.f32 %v1479, %v1521
        %v1523 = vpop.f32.mrf.mxu0
        %v1524 = vadd.f32 %v1481, %v1523
        %1525 = vdwg.mxu0
        %1526 = vmatprep.subr.bf16.mxu0 %v1315
        %1527 = vmatpush1.bf16.msra.mxu0 %v1314
        %1528 = vmatprep.subr.bf16.mxu0 %v1313
        %1529 = vmatpush1.bf16.msra.mxu0 %v1312
        %1530 = vmatprep.subr.bf16.mxu0 %v1311
        %1531 = vmatpush1.bf16.msra.mxu0 %v1310
        %1532 = vmatprep.subr.bf16.mxu0 %v1309
        %1533 = vmatpush1.bf16.msra.mxu0 %v1308
        %1534 = vmatprep.subr.bf16.mxu0 %v1307
        %1535 = vmatpush1.bf16.msra.mxu0 %v1306
        %1536 = vmatprep.subr.bf16.mxu0 %v1305
        %1537 = vmatpush1.bf16.msra.mxu0 %v1304
        %1538 = vmatprep.subr.bf16.mxu0 %v1303
        %1539 = vmatpush1.bf16.msra.mxu0 %v1302
        %1540 = vmatprep.subr.bf16.mxu0 %v1301
        %1541 = vmatpush1.bf16.msra.mxu0 %v1300
        %1542 = vmatprep.subr.bf16.mxu0 %v1331
        %1543 = vmatpush2.bf16.msra.mxu0 %v1330
        %1544 = vmatprep.subr.bf16.mxu0 %v1329
        %1545 = vmatpush2.bf16.msra.mxu0 %v1328
        %1546 = vmatprep.subr.bf16.mxu0 %v1327
        %1547 = vmatpush2.bf16.msra.mxu0 %v1326
        %1548 = vmatprep.subr.bf16.mxu0 %v1325
        %1549 = vmatpush2.bf16.msra.mxu0 %v1324
        %1550 = vmatprep.subr.bf16.mxu0 %v1323
        %1551 = vmatpush2.bf16.msra.mxu0 %v1322
        %1552 = vmatprep.subr.bf16.mxu0 %v1321
        %1553 = vmatpush2.bf16.msra.mxu0 %v1320
        %1554 = vmatprep.subr.bf16.mxu0 %v1319
        %1555 = vmatpush2.bf16.msra.mxu0 %v1318
        %1556 = vmatprep.subr.bf16.mxu0 %v1317
        %1557 = vmatpush2.bf16.msra.mxu0 %v1316
        %1558 = vmatprep.mubr.bf16.mxu0 %v928
        %1559 = vmatmul.mubr.bf16.gmra.mxu0 %v927
        %v1560 = vpop.f32.mrf.mxu0
        %v1561 = vadd.f32 %v1518, %v1560
        %v1562 = vpop.f32.mrf.mxu0
        %v1563 = vadd.f32 %v1520, %v1562
        %v1564 = vpop.f32.mrf.mxu0
        %v1565 = vadd.f32 %v1522, %v1564
        %v1566 = vpop.f32.mrf.mxu0
        %v1567 = vadd.f32 %v1524, %v1566
        %1568 = vdwg.mxu0
        %1569 = vmatprep.subr.bf16.mxu0 0
        %1570 = vmatpush1.bf16.msra.mxu0 0
        %1571 = vmatprep.subr.bf16.mxu0 0
        %1572 = vmatpush1.bf16.msra.mxu0 0
        %1573 = vmatprep.subr.bf16.mxu0 0
        %1574 = vmatpush1.bf16.msra.mxu0 0
        %1575 = vmatprep.subr.bf16.mxu0 0
        %1576 = vmatpush1.bf16.msra.mxu0 0
        %1577 = vmatprep.subr.bf16.mxu0 0
        %1578 = vmatpush1.bf16.msra.mxu0 0
        %1579 = vmatprep.subr.bf16.mxu0 0
        %1580 = vmatpush1.bf16.msra.mxu0 0
        %1581 = vmatprep.subr.bf16.mxu0 %v1335
        %1582 = vmatpush1.bf16.msra.mxu0 %v1334
        %1583 = vmatprep.subr.bf16.mxu0 %v1333
        %1584 = vmatpush1.bf16.msra.mxu0 %v1332
        %1585 = vmatprep.subr.bf16.mxu0 0
        %1586 = vmatpush2.bf16.msra.mxu0 0
        %1587 = vmatprep.subr.bf16.mxu0 0
        %1588 = vmatpush2.bf16.msra.mxu0 0
        %1589 = vmatprep.subr.bf16.mxu0 0
        %1590 = vmatpush2.bf16.msra.mxu0 0
        %1591 = vmatprep.subr.bf16.mxu0 0
        %1592 = vmatpush2.bf16.msra.mxu0 0
        %1593 = vmatprep.subr.bf16.mxu0 0
        %1594 = vmatpush2.bf16.msra.mxu0 0
        %1595 = vmatprep.subr.bf16.mxu0 0
        %1596 = vmatpush2.bf16.msra.mxu0 0
        %1597 = vmatprep.subr.bf16.mxu0 0
        %1598 = vmatpush2.bf16.msra.mxu0 0
        %1599 = vmatprep.subr.bf16.mxu0 0
        %1600 = vmatpush2.bf16.msra.mxu0 0
        %1601 = vmatprep.mubr.bf16.mxu0 0
        %1602 = vmatmul.mubr.bf16.gmra.mxu0 %v1438
        %v1603 = vpop.f32.mrf.mxu0
        %v1604 = vadd.f32 %v1561, %v1603
        %v1605 = vpop.f32.mrf.mxu0
        %v1606 = vadd.f32 %v1563, %v1605
        %v1607 = vpop.f32.mrf.mxu0
        %v1608 = vadd.f32 %v1565, %v1607
        %v1609 = vpop.f32.mrf.mxu0
        %v1610 = vadd.f32 %v1567, %v1609
        %1611 = vdwg.mxu0
        %v1612 = vadd.f32 %v789, %v1604
        %v1613 = vadd.f32 %v790, %v1606
        %v1614 = vadd.f32 %v791, %v1608
        %v1615 = vadd.f32 %v792, %v1610
        %1616 = vst [vmem:[#allocation2] sm:$0xff] %v1612
        %1617 = vst [vmem:[#allocation2 + $0x8] sm:$0xff] %v1613
        %1618 = vst [vmem:[#allocation2 + $0x10] sm:$0xff] %v1614
        %1619 = vst [vmem:[#allocation2 + $0x18] sm:$0xff] %v1615
        %p1620 = scmp.eq.s32.totalorder %s24, 2
        // Predicated region
        $region75: #{conv_block.6} parent=65 // pred_check
          %p1621 = pneg %p1620
        $region76: #{conv_block.6} parent=65 // pred_check_branch
          %1623 = sbr.rel (%p1621) target = $region78
        $region77: #{conv_block.6} parent=65 // pred_region
          %v1624 = vld [vmem:[#allocation2] sm:$0xff]
          %v1625 = vld [vmem:[#allocation2 + $0x8] sm:$0xff]
          %v1626 = vld [vmem:[#allocation2 + $0x10] sm:$0xff]
          %v1627 = vld [vmem:[#allocation2 + $0x18] sm:$0xff]
          %v1628 = vadd.f32 %v1624, %v1626
          %v1629 = vrot.slane %v1628, 4
          %v1630 = vadd.f32 %v1628, %v1629
          %v1631 = vrot.slane %v1630, 2
          %v1632 = vadd.f32 %v1630, %v1631
          %v1633 = vrot.slane %v1632, 1
          %v1634 = vadd.f32 %v1632, %v1633
          %v1635 = vadd.f32 %v1625, %v1627
          %v1636 = vrot.slane %v1635, 4
          %v1637 = vadd.f32 %v1635, %v1636
          %v1638 = vrot.slane %v1637, 2
          %v1639 = vadd.f32 %v1637, %v1638
          %v1640 = vrot.slane %v1639, 1
          %v1641 = vadd.f32 %v1639, %v1640
          %v1644 = vcombine.low %v1634, %v1641
          %v1646 = vunpack.c.l.s4 1966171168
          %v1647 = vunpack.c.0.s8 %v1646
          %v1648 = vlaneseq
          %v1649 = vshrl.u32 %v1648, 7
          %v1650 = vsub.s32 %v1647, %v1649
          %v1651 = vrot.slane %v1644, %v1650
          %v1653 = vunpack.c.l.s4 1966171168
          %v1654 = vunpack.c.0.s8 %v1653
          %v1655 = vlaneseq
          %v1656 = vshrl.u32 %v1655, 7
          %v1657 = vsub.s32 %v1654, %v1656
          %v1658 = vrot.slane %v1651, %v1657
          %v1660 = vlaneseq
          %vm1661 = vcmp.ge.s32.totalorder %v1660, 0
          %vm1662 = vcmp.lt.s32.totalorder %v1660, 256
          %vm1663 = vmand %vm1661, %vm1662
          %1664 = vst.msk [vmem:[%s769] sm:$0x3] %vm1663, %v1658
          %v1665 = vmul.f32 %v1624, %v1624
          %v1666 = vmul.f32 %v1625, %v1625
          %v1667 = vmul.f32 %v1626, %v1626
          %v1668 = vmul.f32 %v1627, %v1627
          %v1669 = vadd.f32 %v1665, %v1667
          %v1670 = vrot.slane %v1669, 4
          %v1671 = vadd.f32 %v1669, %v1670
          %v1672 = vrot.slane %v1671, 2
          %v1673 = vadd.f32 %v1671, %v1672
          %v1674 = vrot.slane %v1673, 1
          %v1675 = vadd.f32 %v1673, %v1674
          %v1676 = vadd.f32 %v1666, %v1668
          %v1677 = vrot.slane %v1676, 4
          %v1678 = vadd.f32 %v1676, %v1677
          %v1679 = vrot.slane %v1678, 2
          %v1680 = vadd.f32 %v1678, %v1679
          %v1681 = vrot.slane %v1680, 1
          %v1682 = vadd.f32 %v1680, %v1681
          %v1685 = vcombine.low %v1675, %v1682
          %v1687 = vunpack.c.l.s4 1966171168
          %v1688 = vunpack.c.0.s8 %v1687
          %v1689 = vlaneseq
          %v1690 = vshrl.u32 %v1689, 7
          %v1691 = vsub.s32 %v1688, %v1690
          %v1692 = vrot.slane %v1685, %v1691
          %v1694 = vunpack.c.l.s4 1966171168
          %v1695 = vunpack.c.0.s8 %v1694
          %v1696 = vlaneseq
          %v1697 = vshrl.u32 %v1696, 7
          %v1698 = vsub.s32 %v1695, %v1697
          %v1699 = vrot.slane %v1692, %v1698
          %1701 = vst.msk [vmem:[%s778] sm:$0x3] %vm1663, %v1699
          %v1702 = vld [vmem:[%s758] sm:$0x3]
          %v1704 = vlaneseq
          %v1705 = vshrl.u32 %v1704, 7
          %v1706 = vsub.s32 0, %v1705
          %v1707 = vrot.slane %v1702, %v1706
          %v1708 = vlaneseq
          %v1709 = vshrl.u32 %v1708, 7
          %v1710 = vsub.s32 1, %v1709
          %v1711 = vrot.slane %v1702, %v1710
          %v1714 = vadd.f32 %v1624, %v1707
          %v1715 = vadd.f32 %v1625, %v1711
          %v1716 = vadd.f32 %v1626, %v1707
          %v1717 = vadd.f32 %v1627, %v1711
          %v1718 = vpack.c.bf16 %v1716, %v1714
          %v1719 = vpack.c.bf16 %v1717, %v1715
          %v1722 = vunpack.c.l.b16 %v1718
          %v1723 = vunpack.c.l.b16 %v1719
          %v1724 = vunpack.c.h.b16 %v1718
          %v1725 = vunpack.c.h.b16 %v1719
          %v1726 = vpack.c.b16 %v1723, %v1722
          %v1727 = vpack.c.b16 %v1725, %v1724
          %1730 = vst [vmem:[%s722] sm:$0xff] %v1726
          %1731 = vst [vmem:[%s722 + $0x8] sm:$0xff] %v1727
        $region78: #{conv_block.6} parent=65 // pred_fallthru
          _
        %s1732 = sand.u32 %s128, 1
        %s1733 = sand.u32 %s128, 1
        %s1734 = smul.addr %s1733, 16
        %s1735 = scalar_lea.vmem [#allocation4], %s1734
        %s1736 = smul.u32 2, %s23
        %p1737 = scmp.lt.s32.totalorder %s22, 0
        %s1738 = scalar_select %p1737, %s22, 0
        %p1739 = scmp.lt.s32.totalorder %s1736, 3
        %s1740 = scalar_select %p1739, %s1736, 3
        %s1741 = smul.addr %s1738, 4
        %s1742 = sadd.s32 %s1740, %s1741
        %s1743 = scalar_lea.vmem %s4, %s1742
        %s1744 = smul.u32 2, %s23
        %p1745 = scmp.lt.s32.totalorder %s22, 0
        %s1746 = scalar_select %p1745, %s22, 0
        %p1747 = scmp.lt.s32.totalorder %s1744, 3
        %s1748 = scalar_select %p1747, %s1744, 3
        %s1749 = smul.addr %s1746, 4
        %s1750 = sadd.s32 %s1748, %s1749
        %s1751 = scalar_lea.vmem %s5, %s1750
        // Predicated region
        $region79: #{conv_block.6} parent=65 // pred_check
          %p1752 = pneg %p138
        $region80: #{conv_block.6} parent=65 // pred_check_branch
          %1754 = sbr.rel (%p1752) target = $region82
        $region81: #{conv_block.6} parent=65 // pred_region
          %s1755 = smul.u32 2, %s22
          %s1756 = smul.u32 2, %s23
          %s1757 = smul.addr %s1755, 4
          %s1758 = sadd.s32 %s1756, %s1757
          %s1759 = smul.addr %s1758, 4
          %s1760 = scalar_lea.vmem %s3, %s1759
          // Predicated region
          $region83: #{conv_block.6} parent=81 // pred_check
            _
          $region84: #{conv_block.6} parent=81 // pred_check_branch
            %1762 = sbr.rel (0) target = $region86
          $region85: #{conv_block.6} parent=81 // pred_region
            // Predicated region
            $region87: #{conv_block.6} parent=85 // pred_check
              _
            $region88: #{conv_block.6} parent=85 // pred_check_branch
              %1764 = sbr.rel (0) target = $region90
            $region89: #{conv_block.6} parent=85 // pred_region
              // Predicated region
              $region102: #{conv_block.6} parent=89 // pred_check
                _
              $region103: #{conv_block.6} parent=89 // pred_check_branch
                %1782 = sbr.rel (0) target = $region105
              $region104: #{conv_block.6} parent=89 // pred_region
                loop: start=0, step=1, limit=1
                $region106: #{conv_block.6} parent=104 // loop_pre_header
                  _
                $region107: #{conv_block.6} parent=104 // loop_header
                  %s1784 = sphi 0, %s1788
                  %p1785 = scmp.ge.s32.totalorder %s1784, 1
                  %s1789 = sphi %s1735, %s1735
                  %s1790 = sphi %s1760, %s1760
                $region108: #{conv_block.6} parent=104 // loop_header_branch
                  %1787 = sbr.rel (%p1785) target = $region112
                $region109: #{conv_block.6} parent=104 // loop_body
                  %v1791 = vld [vmem:[%s1789] sm:$0xff]
                  %1792 = vst [vmem:[%s1790] sm:$0xff] %v1791
                  %v1793 = vld [vmem:[%s1789 + $0x8] sm:$0xff]
                  %1794 = vst [vmem:[%s1790 + $0x10] sm:$0xff] %v1793
                $region110: #{conv_block.6} parent=104 // loop_footer
                  %s1788 = sadd.s32 1, %s1784
                $region111: #{conv_block.6} parent=104 // loop_footer_branch
                  %1783 = sbr.rel target = $region107
                $region112: #{conv_block.6} parent=104 // loop_exit
                  _
              $region105: #{conv_block.6} parent=89 // pred_fallthru
                _
              // Predicated region
              $region113: #{conv_block.6} parent=89 // pred_check
                _
              $region114: #{conv_block.6} parent=89 // pred_check_branch
                %1796 = sbr.rel target = $region116
              $region115: #{conv_block.6} parent=89 // pred_region
                _
              $region116: #{conv_block.6} parent=89 // pred_fallthru
                _
            $region90: #{conv_block.6} parent=85 // pred_fallthru
              _
            // Predicated region
            $region91: #{conv_block.6} parent=85 // pred_check
              _
            $region92: #{conv_block.6} parent=85 // pred_check_branch
              %1766 = sbr.rel target = $region94
            $region93: #{conv_block.6} parent=85 // pred_region
              %s1768 = ssub.s32 256, 1
              loop: start=0, step=1, limit=1
              $region95: #{conv_block.6} parent=93 // loop_pre_header
                _
              $region96: #{conv_block.6} parent=93 // loop_header
                %s1770 = sphi 0, %s1774
                %p1771 = scmp.ge.s32.totalorder %s1770, 1
                %s1775 = sphi %s1735, %s1735
                %s1776 = sphi %s1760, %s1760
              $region97: #{conv_block.6} parent=93 // loop_header_branch
                %1773 = sbr.rel (%p1771) target = $region101
              $region98: #{conv_block.6} parent=93 // loop_body
                %v1777 = vld [vmem:[%s1775] sm:%s1768]
                %1778 = vst [vmem:[%s1776] sm:%s1768] %v1777
                %v1779 = vld [vmem:[%s1775 + $0x8] sm:%s1768]
                %1780 = vst [vmem:[%s1776 + $0x10] sm:%s1768] %v1779
              $region99: #{conv_block.6} parent=93 // loop_footer
                %s1774 = sadd.s32 1, %s1770
              $region100: #{conv_block.6} parent=93 // loop_footer_branch
                %1769 = sbr.rel target = $region96
              $region101: #{conv_block.6} parent=93 // loop_exit
                _
            $region94: #{conv_block.6} parent=85 // pred_fallthru
              _
          $region86: #{conv_block.6} parent=81 // pred_fallthru
            _
          %1797 = vnop
        $region82: #{conv_block.6} parent=65 // pred_fallthru
          _
        // Predicated region
        $region117: #{conv_block.6} parent=65 // pred_check
          %p1798 = pneg %p166
        $region118: #{conv_block.6} parent=65 // pred_check_branch
          %1800 = sbr.rel (%p1798) target = $region120
        $region119: #{conv_block.6} parent=65 // pred_region
          %s1801 = smul.u32 2, %s23
        $region120: #{conv_block.6} parent=65 // pred_fallthru
          _
        // Predicated region
        $region121: #{conv_block.6} parent=65 // pred_check
          %p1802 = pneg %p194
        $region122: #{conv_block.6} parent=65 // pred_check_branch
          %1804 = sbr.rel (%p1802) target = $region124
        $region123: #{conv_block.6} parent=65 // pred_region
          %s1805 = smul.u32 2, %s23
        $region124: #{conv_block.6} parent=65 // pred_fallthru
          _
      $region66: #{conv_block.6} parent=5 // pred_fallthru
        _
      %p1806 = scmp.le.s32.totalorder 2, %s12
      // Predicated region
      $region125: #{conv_block.6} parent=5 // pred_check
        %p1807 = pneg %p1806
      $region126: #{conv_block.6} parent=5 // pred_check_branch
        %1809 = sbr.rel (%p1807) target = $region128
      $region127: #{conv_block.6} parent=5 // pred_region
        %s1810 = ssub.s32 %s12, 2
        // Predicated region
        $region129: #{conv_block.6} parent=127 // pred_check
          %p1811 = pneg %p144
        $region130: #{conv_block.6} parent=127 // pred_check_branch
          %1813 = sbr.rel (%p1811) target = $region132
        $region131: #{conv_block.6} parent=127 // pred_region
          %s1814 = sand.u32 %s129, 1
          %s1815 = sand.u32 %s129, 1
          %s1816 = smul.addr %s1815, 16
          %s1817 = scalar_lea.vmem [#allocation4], %s1816
        $region132: #{conv_block.6} parent=127 // pred_fallthru
          _
        // Predicated region
        $region133: #{conv_block.6} parent=127 // pred_check
          %p1818 = pneg %p172
        $region134: #{conv_block.6} parent=127 // pred_check_branch
          %1820 = sbr.rel (%p1818) target = $region136
        $region135: #{conv_block.6} parent=127 // pred_region
          %s1821 = smul.u32 2, %s26
          %p1822 = scmp.lt.s32.totalorder %s25, 0
          %s1823 = scalar_select %p1822, %s25, 0
          %p1824 = scmp.lt.s32.totalorder %s1821, 3
          %s1825 = scalar_select %p1824, %s1821, 3
          %s1826 = smul.addr %s1823, 4
          %s1827 = sadd.s32 %s1825, %s1826
          %s1828 = scalar_lea.vmem %s4, %s1827
        $region136: #{conv_block.6} parent=127 // pred_fallthru
          _
        // Predicated region
        $region137: #{conv_block.6} parent=127 // pred_check
          %p1829 = pneg %p200
        $region138: #{conv_block.6} parent=127 // pred_check_branch
          %1831 = sbr.rel (%p1829) target = $region140
        $region139: #{conv_block.6} parent=127 // pred_region
          %s1832 = smul.u32 2, %s26
          %p1833 = scmp.lt.s32.totalorder %s25, 0
          %s1834 = scalar_select %p1833, %s25, 0
          %p1835 = scmp.lt.s32.totalorder %s1832, 3
          %s1836 = scalar_select %p1835, %s1832, 3
          %s1837 = smul.addr %s1834, 4
          %s1838 = sadd.s32 %s1836, %s1837
          %s1839 = scalar_lea.vmem %s5, %s1838
        $region140: #{conv_block.6} parent=127 // pred_fallthru
          _
      $region128: #{conv_block.6} parent=5 // pred_fallthru
        _
    $region6: #{conv_block.6} parent=1 // loop_footer
      %s16 = sadd.s32 1, %s12
    $region7: #{conv_block.6} parent=1 // loop_footer_branch
      %11 = sbr.rel target = $region3
    $region8: #{conv_block.6} parent=1 // loop_exit
      _

// kernel: conv_block.7
$region0: #{conv_block.7}
  #allocation0 [shape = 'u32[]', space=smem, size = 0x4, offset = 0x4, fixed_abs, tag = 'smem constant byte address 0x4 - core index']
  #allocation1 [shape = 'u32[144,128]{1,0:T(1,128)}', space=vmem, size = 0x12000, scoped, tag = 'internal scratch']
  %s0 = inlined_call_operand.vmem [shape: bf16[16,512], index: 0, kind: input, shape index: {}]
  %s1 = inlined_call_operand.vmem [shape: f32[1,512], index: 1, kind: input, shape index: {}]
  %s2 = inlined_call_operand.vmem [shape: f32[1,512], index: 2, kind: input, shape index: {}]
  %s3 = inlined_call_operand.vmem [shape: f32[16,512], index: 3, kind: output, shape index: {}]
  %s4 = sld [smem:[#allocation0]]
  $region102: #{conv_block.7} parent=0
    _
  %s6 = ssub.s32 1, %s4
  %s7 = scalar_select 0, %s6, %s4
  $region1: #{conv_block.7} parent=0
    #allocation2 [shape = 'u8[16384]{0}', space=vmem, size = 0x4000, scoped, tag = 'input window, operand 0']
    #allocation3 [shape = 'u8[32768]{0}', space=vmem, size = 0x8000, scoped, tag = 'output window, operand 0']
    loop: start=0, step=1, limit=4
    $region2: #{conv_block.7} parent=1 // loop_pre_header
      _
    $region3: #{conv_block.7} parent=1 // loop_header
      %s9 = sphi 0, %s13
      %p10 = scmp.ge.s32.totalorder %s9, 4
      %s16 = sphi 0, %s28
      %s17 = sphi 0, %s24
      %s18 = sphi 0, %s16
      %s19 = sphi 0, %s17
      %s20 = sphi 0, %s18
      %s21 = sphi 0, %s19
      %s33 = sphi 0, %s35
      %s36 = sphi 0, %s33
      %s37 = sphi 0, %s36
      %s53 = sphi 0, %s37
      %s59 = sphi 0, %s61
      %s62 = sphi 0, %s59
      %s63 = sphi 0, %s62
      %s79 = sphi 0, %s63
      %s85 = sphi 0, %s87
      %s88 = sphi 0, %s85
      %s89 = sphi 0, %s88
      %s105 = sphi 0, %s89
      %s113 = sphi 0, %s115
      %s116 = sphi 0, %s113
      %s117 = sphi 0, %s116
      %s133 = sphi 0, %s117
    $region4: #{conv_block.7} parent=1 // loop_header_branch
      %12 = sbr.rel (%p10) target = $region8
    $region5: #{conv_block.7} parent=1 // loop_body
      %s14 = ssub.s32 %s9, 1
      %s15 = ssub.s32 %s9, 2
      %s22 = sadd.s32 1, %s17
      %p23 = scmp.ge.s32.totalorder %s22, 2
      %s24 = scalar_select %p23, 0, %s22
      %s25 = sadd.s32 1, %s16
      %s26 = scalar_select %p23, %s25, %s16
      %p27 = scmp.ge.s32.totalorder %s26, 1
      %s28 = scalar_select %p27, 0, %s26
      %s29 = ssub.s32 %s16, %s28
      %s30 = ssub.s32 %s17, %s24
      %s31 = sor.u32 %s29, %s30
      %p32 = scmp.eq.s32.totalorder %s31, 0
      %s34 = sadd.s32 %s33, 1
      %s35 = scalar_select %p32, %s33, %s34
      %p38 = pneg %p32
      %p39 = scmp.eq.s32.totalorder %s9, 1
      %p40 = por %p38, %p39
      %p41 = scmp.ne.s32.totalorder %s33, %s36
      %p42 = scmp.eq.s32.totalorder %s9, 0
      %p43 = por %p41, %p42
      %p44 = scmp.ne.s32.totalorder %s33, %s36
      %p45 = scmp.eq.s32.totalorder %s14, 1
      %p46 = por %p44, %p45
      %p47 = scmp.ne.s32.totalorder %s36, %s37
      %p48 = scmp.eq.s32.totalorder %s14, 0
      %p49 = por %p47, %p48
      %p50 = scmp.ne.s32.totalorder %s36, %s37
      %p51 = scmp.eq.s32.totalorder %s15, 1
      %p52 = por %p50, %p51
      %p54 = scmp.ne.s32.totalorder %s37, %s53
      %p55 = scmp.eq.s32.totalorder %s15, 0
      %p56 = por %p54, %p55
      %s57 = ssub.s32 %s17, %s24
      %p58 = scmp.eq.s32.totalorder %s57, 0
      %s60 = sadd.s32 %s59, 1
      %s61 = scalar_select %p58, %s59, %s60
      %p64 = pneg %p58
      %p65 = scmp.eq.s32.totalorder %s9, 1
      %p66 = por %p64, %p65
      %p67 = scmp.ne.s32.totalorder %s59, %s62
      %p68 = scmp.eq.s32.totalorder %s9, 0
      %p69 = por %p67, %p68
      %p70 = scmp.ne.s32.totalorder %s59, %s62
      %p71 = scmp.eq.s32.totalorder %s14, 1
      %p72 = por %p70, %p71
      %p73 = scmp.ne.s32.totalorder %s62, %s63
      %p74 = scmp.eq.s32.totalorder %s14, 0
      %p75 = por %p73, %p74
      %p76 = scmp.ne.s32.totalorder %s62, %s63
      %p77 = scmp.eq.s32.totalorder %s15, 1
      %p78 = por %p76, %p77
      %p80 = scmp.ne.s32.totalorder %s63, %s79
      %p81 = scmp.eq.s32.totalorder %s15, 0
      %p82 = por %p80, %p81
      %s83 = ssub.s32 %s17, %s24
      %p84 = scmp.eq.s32.totalorder %s83, 0
      %s86 = sadd.s32 %s85, 1
      %s87 = scalar_select %p84, %s85, %s86
      %p90 = pneg %p84
      %p91 = scmp.eq.s32.totalorder %s9, 1
      %p92 = por %p90, %p91
      %p93 = scmp.ne.s32.totalorder %s85, %s88
      %p94 = scmp.eq.s32.totalorder %s9, 0
      %p95 = por %p93, %p94
      %p96 = scmp.ne.s32.totalorder %s85, %s88
      %p97 = scmp.eq.s32.totalorder %s14, 1
      %p98 = por %p96, %p97
      %p99 = scmp.ne.s32.totalorder %s88, %s89
      %p100 = scmp.eq.s32.totalorder %s14, 0
      %p101 = por %p99, %p100
      %p102 = scmp.ne.s32.totalorder %s88, %s89
      %p103 = scmp.eq.s32.totalorder %s15, 1
      %p104 = por %p102, %p103
      %p106 = scmp.ne.s32.totalorder %s89, %s105
      %p107 = scmp.eq.s32.totalorder %s15, 0
      %p108 = por %p106, %p107
      %s109 = ssub.s32 %s16, %s28
      %s110 = ssub.s32 %s17, %s24
      %s111 = sor.u32 %s109, %s110
      %p112 = scmp.eq.s32.totalorder %s111, 0
      %s114 = sadd.s32 %s113, 1
      %s115 = scalar_select %p112, %s113, %s114
      %p118 = pneg %p112
      %p119 = scmp.eq.s32.totalorder %s9, 1
      %p120 = por %p118, %p119
      %p121 = scmp.ne.s32.totalorder %s113, %s116
      %p122 = scmp.eq.s32.totalorder %s9, 0
      %p123 = por %p121, %p122
      %p124 = scmp.ne.s32.totalorder %s113, %s116
      %p125 = scmp.eq.s32.totalorder %s14, 1
      %p126 = por %p124, %p125
      %p127 = scmp.ne.s32.totalorder %s116, %s117
      %p128 = scmp.eq.s32.totalorder %s14, 0
      %p129 = por %p127, %p128
      %p130 = scmp.ne.s32.totalorder %s116, %s117
      %p131 = scmp.eq.s32.totalorder %s15, 1
      %p132 = por %p130, %p131
      %p134 = scmp.ne.s32.totalorder %s117, %s133
      %p135 = scmp.eq.s32.totalorder %s15, 0
      %p136 = por %p134, %p135
      %p137 = scmp.le.s32.totalorder 1, %s9
      %p138 = scmp.lt.s32.totalorder %s9, 3
      %p139 = pnand %p137, %p138
      %p140 = pneg %p139
      // Predicated region
      $region9: #{conv_block.7} parent=5 // pred_check
        _
      $region10: #{conv_block.7} parent=5 // pred_check_branch
        %142 = sbr.rel (%p139) target = $region12
      $region11: #{conv_block.7} parent=5 // pred_region
        %s143 = ssub.s32 %s9, 1
      $region12: #{conv_block.7} parent=5 // pred_fallthru
        _
      %p144 = scmp.lt.s32.totalorder %s9, 2
      // Predicated region
      $region13: #{conv_block.7} parent=5 // pred_check
        %p145 = pneg %p144
      $region14: #{conv_block.7} parent=5 // pred_check_branch
        %147 = sbr.rel (%p145) target = $region16
      $region15: #{conv_block.7} parent=5 // pred_region
        // Predicated region
        $region17: #{conv_block.7} parent=15 // pred_check
          %p148 = pneg %p43
        $region18: #{conv_block.7} parent=15 // pred_check_branch
          %150 = sbr.rel (%p148) target = $region20
        $region19: #{conv_block.7} parent=15 // pred_region
          %s151 = sand.u32 %s33, 1
          %s152 = sand.u32 %s33, 1
          %s153 = smul.addr %s152, 16
          %s154 = scalar_lea.vmem [#allocation2], %s153
          %s155 = smul.u32 2, %s16
          %s156 = smul.u32 2, %s17
          %s157 = smul.addr %s155, 4
          %s158 = sadd.s32 %s156, %s157
          %s159 = smul.addr %s158, 4
          %s160 = scalar_lea.vmem %s0, %s159
          // Predicated region
          $region21: #{conv_block.7} parent=19 // pred_check
            _
          $region22: #{conv_block.7} parent=19 // pred_check_branch
            %162 = sbr.rel (0) target = $region24
          $region23: #{conv_block.7} parent=19 // pred_region
            // Predicated region
            $region25: #{conv_block.7} parent=23 // pred_check
              _
            $region26: #{conv_block.7} parent=23 // pred_check_branch
              %164 = sbr.rel (0) target = $region28
            $region27: #{conv_block.7} parent=23 // pred_region
              // Predicated region
              $region40: #{conv_block.7} parent=27 // pred_check
                _
              $region41: #{conv_block.7} parent=27 // pred_check_branch
                %182 = sbr.rel (0) target = $region43
              $region42: #{conv_block.7} parent=27 // pred_region
                loop: start=0, step=1, limit=1
                $region44: #{conv_block.7} parent=42 // loop_pre_header
                  _
                $region45: #{conv_block.7} parent=42 // loop_header
                  %s184 = sphi 0, %s188
                  %p185 = scmp.ge.s32.totalorder %s184, 1
                  %s189 = sphi %s160, %s160
                  %s190 = sphi %s154, %s154
                $region46: #{conv_block.7} parent=42 // loop_header_branch
                  %187 = sbr.rel (%p185) target = $region50
                $region47: #{conv_block.7} parent=42 // loop_body
                  %v191 = vld [vmem:[%s189] sm:$0xff]
                  %192 = vst [vmem:[%s190] sm:$0xff] %v191
                  %v193 = vld [vmem:[%s189 + $0x10] sm:$0xff]
                  %194 = vst [vmem:[%s190 + $0x8] sm:$0xff] %v193
                $region48: #{conv_block.7} parent=42 // loop_footer
                  %s188 = sadd.s32 1, %s184
                $region49: #{conv_block.7} parent=42 // loop_footer_branch
                  %183 = sbr.rel target = $region45
                $region50: #{conv_block.7} parent=42 // loop_exit
                  _
              $region43: #{conv_block.7} parent=27 // pred_fallthru
                _
              // Predicated region
              $region51: #{conv_block.7} parent=27 // pred_check
                _
              $region52: #{conv_block.7} parent=27 // pred_check_branch
                %196 = sbr.rel target = $region54
              $region53: #{conv_block.7} parent=27 // pred_region
                _
              $region54: #{conv_block.7} parent=27 // pred_fallthru
                _
            $region28: #{conv_block.7} parent=23 // pred_fallthru
              _
            // Predicated region
            $region29: #{conv_block.7} parent=23 // pred_check
              _
            $region30: #{conv_block.7} parent=23 // pred_check_branch
              %166 = sbr.rel target = $region32
            $region31: #{conv_block.7} parent=23 // pred_region
              %s168 = ssub.s32 256, 1
              loop: start=0, step=1, limit=1
              $region33: #{conv_block.7} parent=31 // loop_pre_header
                _
              $region34: #{conv_block.7} parent=31 // loop_header
                %s170 = sphi 0, %s174
                %p171 = scmp.ge.s32.totalorder %s170, 1
                %s175 = sphi %s160, %s160
                %s176 = sphi %s154, %s154
              $region35: #{conv_block.7} parent=31 // loop_header_branch
                %173 = sbr.rel (%p171) target = $region39
              $region36: #{conv_block.7} parent=31 // loop_body
                %v177 = vld [vmem:[%s175] sm:%s168]
                %178 = vst [vmem:[%s176] sm:%s168] %v177
                %v179 = vld [vmem:[%s175 + $0x10] sm:%s168]
                %180 = vst [vmem:[%s176 + $0x8] sm:%s168] %v179
              $region37: #{conv_block.7} parent=31 // loop_footer
                %s174 = sadd.s32 1, %s170
              $region38: #{conv_block.7} parent=31 // loop_footer_branch
                %169 = sbr.rel target = $region34
              $region39: #{conv_block.7} parent=31 // loop_exit
                _
            $region32: #{conv_block.7} parent=23 // pred_fallthru
              _
          $region24: #{conv_block.7} parent=19 // pred_fallthru
            _
          %197 = vnop
        $region20: #{conv_block.7} parent=15 // pred_fallthru
          _
        // Predicated region
        $region55: #{conv_block.7} parent=15 // pred_check
          %p198 = pneg %p69
        $region56: #{conv_block.7} parent=15 // pred_check_branch
          %200 = sbr.rel (%p198) target = $region58
        $region57: #{conv_block.7} parent=15 // pred_region
          %s201 = smul.u32 2, %s17
          %p202 = scmp.lt.s32.totalorder %s201, 3
          %s203 = scalar_select %p202, %s201, 3
          %s204 = scalar_lea.vmem %s1, %s203
          %s205 = smul.u32 2, %s17
        $region58: #{conv_block.7} parent=15 // pred_fallthru
          _
        // Predicated region
        $region59: #{conv_block.7} parent=15 // pred_check
          %p206 = pneg %p95
        $region60: #{conv_block.7} parent=15 // pred_check_branch
          %208 = sbr.rel (%p206) target = $region62
        $region61: #{conv_block.7} parent=15 // pred_region
          %s209 = smul.u32 2, %s17
          %p210 = scmp.lt.s32.totalorder %s209, 3
          %s211 = scalar_select %p210, %s209, 3
          %s212 = scalar_lea.vmem %s2, %s211
          %s213 = smul.u32 2, %s17
        $region62: #{conv_block.7} parent=15 // pred_fallthru
          _
      $region16: #{conv_block.7} parent=5 // pred_fallthru
        _
      %p214 = scmp.le.s32.totalorder 1, %s9
      %p215 = scmp.lt.s32.totalorder %s9, 3
      %p216 = pnand %p214, %p215
      %p217 = pneg %p216
      // Predicated region
      $region63: #{conv_block.7} parent=5 // pred_check
        _
      $region64: #{conv_block.7} parent=5 // pred_check_branch
        %219 = sbr.rel (%p216) target = $region66
      $region65: #{conv_block.7} parent=5 // pred_region
        %s220 = ssub.s32 %s9, 1
        %s221 = sand.u32 %s36, 1
        %s222 = sand.u32 %s36, 1
        %s223 = smul.addr %s222, 16
        %s224 = scalar_lea.vmem [#allocation2], %s223
        // Predicated region
        $region67: #{conv_block.7} parent=65 // pred_check
          %p225 = pneg %p49
        $region68: #{conv_block.7} parent=65 // pred_check_branch
          %227 = sbr.rel (%p225) target = $region70
        $region69: #{conv_block.7} parent=65 // pred_region
          _
        $region70: #{conv_block.7} parent=65 // pred_fallthru
          _
        %s228 = sand.u32 %s36, 1
        %s229 = sand.u32 %s36, 1
        %s230 = smul.addr %s229, 16
        %s231 = scalar_lea.vmem [#allocation2], %s230
        %p232 = pneg %p49
        %p233 = pneg %p46
        %s234 = smul.u32 2, %s19
        %p235 = scmp.lt.s32.totalorder %s234, 3
        %s236 = scalar_select %p235, %s234, 3
        %s237 = scalar_lea.vmem %s1, %s236
        %p238 = pneg %p75
        %p239 = pneg %p72
        %s240 = smul.u32 2, %s19
        %p241 = scmp.lt.s32.totalorder %s240, 3
        %s242 = scalar_select %p241, %s240, 3
        %s243 = scalar_lea.vmem %s2, %s242
        %p244 = pneg %p101
        %p245 = pneg %p98
        %p246 = pneg %p129
        %p247 = pneg %p126
        %s248 = sand.u32 %s116, 1
        %s249 = sand.u32 %s116, 1
        %s250 = smul.addr %s249, 32
        %s251 = scalar_lea.vmem [#allocation3], %s250
        %s252 = smul.u32 2, %s18
        %s253 = smul.u32 2, %s19
        %s254 = smul.u32 2, %s19
        %p255 = scmp.lt.s32.totalorder %s254, 3
        %s256 = scalar_select %p255, %s254, 3
        %s257 = scalar_lea.vmem %s1, %s256
        %s258 = smul.u32 2, %s19
        %s259 = smul.u32 2, %s19
        %p260 = scmp.lt.s32.totalorder %s259, 3
        %s261 = scalar_select %p260, %s259, 3
        %s262 = scalar_lea.vmem %s2, %s261
        %s263 = smul.u32 2, %s19
        %s264 = smul.u32 2, %s18
        %s265 = smul.u32 2, %s19
        %v266 = vld [vmem:[%s224] sm:$0xff]
        %v267 = vld [vmem:[%s224 + $0x8] sm:$0xff]
        %v268 = vunpack.c.l.bf16 %v266
        %v269 = vunpack.c.h.bf16 %v266
        %v270 = vunpack.c.l.bf16 %v267
        %v271 = vunpack.c.h.bf16 %v267
        %v272 = vld [vmem:[%s257] sm:$0x3]
        %v274 = vlaneseq
        %v275 = vshrl.u32 %v274, 7
        %v276 = vsub.s32 0, %v275
        %v277 = vrot.slane %v272, %v276
        %v278 = vlaneseq
        %v279 = vshrl.u32 %v278, 7
        %v280 = vsub.s32 1, %v279
        %v281 = vrot.slane %v272, %v280
        %v284 = vmul.f32 %v268, %v277
        %v285 = vmul.f32 %v269, %v281
        %v286 = vmul.f32 %v270, %v277
        %v287 = vmul.f32 %v271, %v281
        %v288 = vld [vmem:[%s262] sm:$0x3]
        %v290 = vlaneseq
        %v291 = vshrl.u32 %v290, 7
        %v292 = vsub.s32 0, %v291
        %v293 = vrot.slane %v288, %v292
        %v294 = vlaneseq
        %v295 = vshrl.u32 %v294, 7
        %v296 = vsub.s32 1, %v295
        %v297 = vrot.slane %v288, %v296
        %v300 = vadd.f32 %v284, %v293
        %v301 = vadd.f32 %v285, %v297
        %v302 = vadd.f32 %v286, %v293
        %v303 = vadd.f32 %v287, %v297
        %v304 = vmax.f32 %v300, 0.0
        %v305 = vmax.f32 %v301, 0.0
        %v306 = vmax.f32 %v302, 0.0
        %v307 = vmax.f32 %v303, 0.0
        %308 = vst [vmem:[%s251] sm:$0xff] %v304
        %309 = vst [vmem:[%s251 + $0x8] sm:$0xff] %v305
        %310 = vst [vmem:[%s251 + $0x10] sm:$0xff] %v306
        %311 = vst [vmem:[%s251 + $0x18] sm:$0xff] %v307
        %s312 = sand.u32 %s116, 1
        %s313 = sand.u32 %s116, 1
        %s314 = smul.addr %s313, 32
        %s315 = scalar_lea.vmem [#allocation3], %s314
        // Predicated region
        $region71: #{conv_block.7} parent=65 // pred_check
          %p316 = pneg %p126
        $region72: #{conv_block.7} parent=65 // pred_check_branch
          %318 = sbr.rel (%p316) target = $region74
        $region73: #{conv_block.7} parent=65 // pred_region
          %s319 = smul.u32 2, %s18
          %s320 = smul.u32 2, %s19
          %s321 = smul.addr %s319, 4
          %s322 = sadd.s32 %s320, %s321
          %s323 = smul.addr %s322, 8
          %s324 = scalar_lea.vmem %s3, %s323
          // Predicated region
          $region75: #{conv_block.7} parent=73 // pred_check
            _
          $region76: #{conv_block.7} parent=73 // pred_check_branch
            %326 = sbr.rel (0) target = $region78
          $region77: #{conv_block.7} parent=73 // pred_region
            // Predicated region
            $region79: #{conv_block.7} parent=77 // pred_check
              _
            $region80: #{conv_block.7} parent=77 // pred_check_branch
              %328 = sbr.rel (0) target = $region82
            $region81: #{conv_block.7} parent=77 // pred_region
              loop: start=0, step=1, limit=1
              $region83: #{conv_block.7} parent=81 // loop_pre_header
                _
              $region84: #{conv_block.7} parent=81 // loop_header
                %s330 = sphi 0, %s334
                %p331 = scmp.ge.s32.totalorder %s330, 1
                %s335 = sphi %s315, %s315
                %s336 = sphi %s324, %s324
              $region85: #{conv_block.7} parent=81 // loop_header_branch
                %333 = sbr.rel (%p331) target = $region89
              $region86: #{conv_block.7} parent=81 // loop_body
                %v337 = vld [vmem:[%s335] sm:$0xff]
                %338 = vst [vmem:[%s336] sm:$0xff] %v337
                %v339 = vld [vmem:[%s335 + $0x8] sm:$0xff]
                %340 = vst [vmem:[%s336 + $0x8] sm:$0xff] %v339
                %v341 = vld [vmem:[%s335 + $0x10] sm:$0xff]
                %342 = vst [vmem:[%s336 + $0x20] sm:$0xff] %v341
                %v343 = vld [vmem:[%s335 + $0x18] sm:$0xff]
                %344 = vst [vmem:[%s336 + $0x28] sm:$0xff] %v343
              $region87: #{conv_block.7} parent=81 // loop_footer
                %s334 = sadd.s32 1, %s330
              $region88: #{conv_block.7} parent=81 // loop_footer_branch
                %329 = sbr.rel target = $region84
              $region89: #{conv_block.7} parent=81 // loop_exit
                _
            $region82: #{conv_block.7} parent=77 // pred_fallthru
              _
            // Predicated region
            $region90: #{conv_block.7} parent=77 // pred_check
              _
            $region91: #{conv_block.7} parent=77 // pred_check_branch
              %346 = sbr.rel target = $region93
            $region92: #{conv_block.7} parent=77 // pred_region
              _
            $region93: #{conv_block.7} parent=77 // pred_fallthru
              _
          $region78: #{conv_block.7} parent=73 // pred_fallthru
            _
          %347 = vnop
        $region74: #{conv_block.7} parent=65 // pred_fallthru
          _
      $region66: #{conv_block.7} parent=5 // pred_fallthru
        _
      %p348 = scmp.le.s32.totalorder 2, %s9
      // Predicated region
      $region94: #{conv_block.7} parent=5 // pred_check
        %p349 = pneg %p348
      $region95: #{conv_block.7} parent=5 // pred_check_branch
        %351 = sbr.rel (%p349) target = $region97
      $region96: #{conv_block.7} parent=5 // pred_region
        %s352 = ssub.s32 %s9, 2
        // Predicated region
        $region98: #{conv_block.7} parent=96 // pred_check
          %p353 = pneg %p132
        $region99: #{conv_block.7} parent=96 // pred_check_branch
          %355 = sbr.rel (%p353) target = $region101
        $region100: #{conv_block.7} parent=96 // pred_region
          %s356 = sand.u32 %s117, 1
          %s357 = sand.u32 %s117, 1
          %s358 = smul.addr %s357, 32
          %s359 = scalar_lea.vmem [#allocation3], %s358
        $region101: #{conv_block.7} parent=96 // pred_fallthru
          _
      $region97: #{conv_block.7} parent=5 // pred_fallthru
        _
    $region6: #{conv_block.7} parent=1 // loop_footer
      %s13 = sadd.s32 1, %s9
    $region7: #{conv_block.7} parent=1 // loop_footer_branch
      %8 = sbr.rel target = $region3
    $region8: #{conv_block.7} parent=1 // loop_exit
      _

</llo_original>
